<compile_context>
chip_gen: v7x
topology: tpu7x:2x2x1
jax: 0.10.0
libtpu: 0.0.40
codegen_flags: <defaults>
</compile_context>

<pallas_src>
import functools

import jax
import jax.numpy as jnp
from jax.experimental import pallas as pl
from jax.experimental.pallas import tpu as pltpu


def _shift_flat_hw(a, off):
    """a[..., hw] -> a[..., hw + off], zero-filled outside the flattened H*W axis."""
    if off == 0:
        return a
    n = a.shape[-1]
    z = jnp.zeros(a.shape[:-1] + (abs(off),), a.dtype)
    if off > 0:
        return jnp.concatenate([a[..., off:], z], axis=-1)
    return jnp.concatenate([z, a[..., :n + off]], axis=-1)


def action_fused_kernel(x_ref, wshift_ref, wp1_ref, wsq2_ref, wt2_ref, wexp2_ref,
                        wsq3_ref, bnb_ref, wdw_ref, wexp3_ref, o_ref, *, H, W):
    f32 = jnp.float32
    T, C, HW = x_ref.shape
    Cr = wsq3_ref.shape[0]

    x = x_ref[...]                                        # (T, C, HW)

    # ---------------- temporal shift (depthwise Conv1d over T, padding=1) -----
    w = wshift_ref[...]                                   # (3, C, 1)
    zrow = jnp.zeros((1, C, HW), f32)
    x_prev = jnp.concatenate([zrow, x[:-1]], axis=0)      # x[t-1]
    x_next = jnp.concatenate([x[1:], zrow], axis=0)       # x[t+1]
    xs = w[0:1] * x_prev + w[1:2] * x + w[2:3] * x_next   # (T, C, HW)

    # column index along the flattened H*W lane dim (for W-boundary masks)
    col2 = jax.lax.broadcasted_iota(jnp.int32, (1, HW), 1) % W
    col3 = jax.lax.broadcasted_iota(jnp.int32, (1, 1, HW), 2) % W

    # ---------------- P1: spatio-temporal excitation gate ---------------------
    # channel mean -> 3x3x3 conv (zero pad) -> sigmoid; output per (t, hw)
    xm = jnp.mean(xs, axis=1)                             # (T, HW)
    zhw = jnp.zeros((1, HW), f32)
    xmp = jnp.concatenate([zhw, xm, zhw], axis=0)         # (T+2, HW), T-padded
    acc1 = jnp.zeros((T, HW), f32)
    for dh in range(3):
        for dw in range(3):
            off = (dh - 1) * W + (dw - 1)
            plane = _shift_flat_hw(xmp, off)              # spatial shift, reused over dt
            if dw == 0:
                plane = jnp.where(col2 >= 1, plane, 0.0)
            elif dw == 2:
                plane = jnp.where(col2 <= W - 2, plane, 0.0)
            for dt in range(3):
                acc1 = acc1 + wp1_ref[dt * 9 + dh * 3 + dw] * plane[dt:dt + T]
    s1 = jax.nn.sigmoid(acc1)                             # (T, HW)

    # ---------------- P2: channel excitation gate ------------------------------
    # global avg pool -> 1x1 squeeze -> temporal conv1d(k=3) -> ReLU -> 1x1 expand
    pooled2 = jnp.concatenate(
        [jnp.mean(xs[t], axis=1, keepdims=True) for t in range(T)], axis=1)   # (C, T)
    sq = jnp.dot(wsq2_ref[...], pooled2, preferred_element_type=f32)          # (Cr, T)
    zc = jnp.zeros((Cr, 1), f32)
    sqp = jnp.concatenate([zc, sq, zc], axis=1)                               # (Cr, T+2)
    wt2 = wt2_ref[...]                                                        # (3, Cr, Cr)
    conv = (jnp.dot(wt2[0], sqp[:, 0:T], preferred_element_type=f32)
            + jnp.dot(wt2[1], sqp[:, 1:T + 1], preferred_element_type=f32)
            + jnp.dot(wt2[2], sqp[:, 2:T + 2], preferred_element_type=f32))   # (Cr, T)
    conv = jnp.maximum(conv, 0.0)
    s2 = jax.nn.sigmoid(jnp.dot(wexp2_ref[...], conv,
                                preferred_element_type=f32))                  # (C, T)

    # ---------------- P3: motion excitation gate -------------------------------
    # 1x1 squeeze (+BN folded) -> depthwise 3x3 -> frame diff -> pool -> expand
    wsq3 = wsq3_ref[...]                                  # (Cr, C), BN scale folded in
    bnb = bnb_ref[...]                                    # (Cr, 1)
    x3 = jnp.stack(
        [jnp.dot(wsq3, xs[t], preferred_element_type=f32) + bnb for t in range(T)],
        axis=0)                                           # (T, Cr, HW)
    wdw = wdw_ref[...]                                    # (3, 3, Cr, 1)
    acc3 = jnp.zeros((T, Cr, HW), f32)
    for dy in range(3):
        for dx in range(3):
            off = (dy - 1) * W + (dx - 1)
            plane = _shift_flat_hw(x3, off)
            if dx == 0:
                plane = jnp.where(col3 >= 1, plane, 0.0)
            elif dx == 2:
                plane = jnp.where(col3 <= W - 2, plane, 0.0)
            acc3 = acc3 + wdw[dy, dx][None] * plane       # (1,Cr,1) * (T,Cr,HW)
    diff = acc3[1:] - x3[:T - 1]                          # conv(x3)[t+1] - x3[t]
    pooled3 = jnp.concatenate(
        [jnp.mean(diff[t], axis=1, keepdims=True) for t in range(T - 1)]
        + [jnp.zeros((Cr, 1), f32)], axis=1)              # (Cr, T), last frame zero-padded
    s3 = jax.nn.sigmoid(jnp.dot(wexp3_ref[...], pooled3,
                                preferred_element_type=f32))                  # (C, T)

    # ---------------- combine: out = xs * (s1 + s2 + s3 + 3) -------------------
    for t in range(T):
        gate = s1[t:t + 1] + (s2[:, t:t + 1] + s3[:, t:t + 1] + 3.0)   # (C, HW)
        o_ref[t] = xs[t] * gate


# ----------------------------- wrapper -----------------------------------------
def action_forward(x, params, n_segment=3):
    nt, C, H, W = x.shape
    NB = nt // n_segment
    T = n_segment
    HW = H * W
    Cr = params["w_p2_sq"].shape[0]

    # contiguity-preserving (free) reshape to the lane-dense carried layout
    x4 = x.reshape(NB, T, C, HW)

    kernel = functools.partial(action_fused_kernel, H=H, W=W)

    full = lambda b: (b, 0, 0, 0)
    m2 = lambda b: (0, 0)
    m3 = lambda b: (0, 0, 0)
    m4 = lambda b: (0, 0, 0, 0)

    out = pl.pallas_call(
        kernel,
        out_shape=jax.ShapeDtypeStruct((NB, T, C, HW), jnp.float32),
        grid=(NB,),
        in_specs=[
            pl.BlockSpec((None, T, C, HW), full),                       # x
            pl.BlockSpec((3, C, 1), m3),                                # shift weights
            pl.BlockSpec(memory_space=pltpu.MemorySpace.SMEM),          # p1 3x3x3 taps
            pl.BlockSpec((Cr, C), m2),                                  # p2 squeeze
            pl.BlockSpec((3, Cr, Cr), m3),                              # p2 temporal conv
            pl.BlockSpec((C, Cr), m2),                                  # p2 expand
            pl.BlockSpec((Cr, C), m2),                                  # p3 squeeze (BN-scaled)
            pl.BlockSpec((Cr, 1), m2),                                  # p3 BN bias
            pl.BlockSpec((3, 3, Cr, 1), m4),                            # p3 depthwise 3x3
            pl.BlockSpec((C, Cr), m2),                                  # p3 expand
        ],
        out_specs=pl.BlockSpec((None, T, C, HW), full),
        compiler_params=pltpu.CompilerParams(dimension_semantics=("parallel",)),
    )(x4, params["w_shift"], params["w_p1"], params["w_p2_sq"], params["w_p2_t"],
      params["w_p2_exp"], params["w_p3_sq_bn"], params["bn_bias"],
      params["w_p3_dw"], params["w_p3_exp"])

    return out.reshape(nt, C, H, W)


# ----------------------------- parameters --------------------------------------
def init_params(key, C, shift_div=8):
    Cr = C // 16
    fold = C // shift_div
    ks = jax.random.split(key, 7)

    # action_shift: depthwise Conv1d weight (C, 1, 3) initialized as a temporal shift
    w_shift = jnp.zeros((C, 3), jnp.float32)
    w_shift = w_shift.at[:fold, 2].set(1.0)
    w_shift = w_shift.at[fold:2 * fold, 0].set(1.0)
    if 2 * fold < C:
        w_shift = w_shift.at[2 * fold:, 1].set(1.0)
    w_shift_k = jnp.transpose(w_shift, (1, 0)).reshape(3, C, 1)   # [k, c, 0] = W[c, 0, k]

    def u(k, shape, fan_in):
        bound = float(fan_in) ** -0.5
        return jax.random.uniform(k, shape, jnp.float32, -bound, bound)

    w_p1 = u(ks[0], (3, 3, 3), 27).reshape(-1)            # Conv3d(1,1,3,3,3), flattened -> SMEM
    w_p2_sq = u(ks[1], (Cr, C), C)                        # Conv2d 1x1 squeeze
    w_p2_c1 = u(ks[2], (Cr, Cr, 3), Cr * 3)               # Conv1d k=3
    w_p2_exp = u(ks[3], (C, Cr), Cr)                      # Conv2d 1x1 expand
    w_p3_sq = u(ks[4], (Cr, C), C)
    w_p3_dw = u(ks[5], (Cr, 3, 3), 9)                     # depthwise 3x3
    w_p3_exp = u(ks[6], (C, Cr), Cr)

    # BatchNorm2d(Cr), inference mode, deterministic stats (scale folded into squeeze)
    gamma = 1.0 + 0.1 * jnp.arange(Cr, dtype=jnp.float32)
    beta = 0.05 * jnp.arange(Cr, dtype=jnp.float32)
    rmean = 0.01 * jnp.arange(Cr, dtype=jnp.float32)
    rvar = 1.0 + 0.02 * jnp.arange(Cr, dtype=jnp.float32)
    scale = gamma / jnp.sqrt(rvar + 1e-5)
    bias = beta - rmean * scale

    return {
        "w_shift": w_shift_k,                              # (3, C, 1)
        "w_p1": w_p1,                                      # (27,) -> SMEM scalars
        "w_p2_sq": w_p2_sq,                                # (Cr, C)
        "w_p2_t": jnp.transpose(w_p2_c1, (2, 0, 1)),       # (3, Cr, Cr): [k] = W[:, :, k]
        "w_p2_exp": w_p2_exp,                              # (C, Cr)
        "w_p3_sq_bn": w_p3_sq * scale[:, None],            # (Cr, C), BN scale folded
        "bn_bias": bias.reshape(Cr, 1),                    # (Cr, 1)
        "w_p3_dw": jnp.transpose(w_p3_dw, (1, 2, 0))[..., None],  # (3, 3, Cr, 1)
        "w_p3_exp": w_p3_exp,                              # (C, Cr)
    }


if __name__ == "__main__":
    key = jax.random.PRNGKey(0)
    NB, T, C, H, W = 2, 3, 32, 16, 16          # in_channels=32 -> reduced=2, fold=4
    nt = NB * T
    kx, kp = jax.random.split(key)
    x = jax.random.normal(kx, (nt, C, H, W), jnp.float32)
    params = init_params(kp, C)

    out = action_forward(x, params, n_segment=T)
    out = jax.block_until_ready(out)

    assert out.shape == (nt, C, H, W)
    assert bool(jnp.all(jnp.isfinite(out)))
    print("KERNEL_OK")
</pallas_src>

<mosaic_0001>
module attributes {stable_mosaic.version = 11 : i64} {
  func.func @action_fused_kernel(%arg0: i32, %arg1: memref<1x3x32x256xf32, #tpu.memory_space<vmem>>, %arg2: memref<3x32x1xf32, #tpu.memory_space<vmem>>, %arg3: memref<27xf32, #tpu.memory_space<smem>>, %arg4: memref<2x32xf32, #tpu.memory_space<vmem>>, %arg5: memref<3x2x2xf32, #tpu.memory_space<vmem>>, %arg6: memref<32x2xf32, #tpu.memory_space<vmem>>, %arg7: memref<2x32xf32, #tpu.memory_space<vmem>>, %arg8: memref<2x1xf32, #tpu.memory_space<vmem>>, %arg9: memref<3x3x2x1xf32, #tpu.memory_space<vmem>>, %arg10: memref<32x2xf32, #tpu.memory_space<vmem>>, %arg11: memref<1x3x32x256xf32, #tpu.memory_space<vmem>>) attributes {dimension_semantics = [#tpu.dimension_semantics<parallel>], iteration_bounds = array<i64: 2>, scalar_prefetch = 0 : i64, scratch_operands = 0 : i64, tpu.core_type = #tpu.core_type<tc>, window_params = [{transform_indices = @transform_0, window_bounds = array<i64: 1, 3, 32, 256>}, {pipeline_mode = #tpu.pipeline_mode<synchronous>, transform_indices = @transform_1, window_bounds = array<i64: 3, 32, 1>}, {transform_indices = @transform_2, window_bounds = array<i64: 27>}, {pipeline_mode = #tpu.pipeline_mode<synchronous>, transform_indices = @transform_3, window_bounds = array<i64: 2, 32>}, {pipeline_mode = #tpu.pipeline_mode<synchronous>, transform_indices = @transform_4, window_bounds = array<i64: 3, 2, 2>}, {pipeline_mode = #tpu.pipeline_mode<synchronous>, transform_indices = @transform_5, window_bounds = array<i64: 32, 2>}, {pipeline_mode = #tpu.pipeline_mode<synchronous>, transform_indices = @transform_6, window_bounds = array<i64: 2, 32>}, {pipeline_mode = #tpu.pipeline_mode<synchronous>, transform_indices = @transform_7, window_bounds = array<i64: 2, 1>}, {pipeline_mode = #tpu.pipeline_mode<synchronous>, transform_indices = @transform_8, window_bounds = array<i64: 3, 3, 2, 1>}, {pipeline_mode = #tpu.pipeline_mode<synchronous>, transform_indices = @transform_9, window_bounds = array<i64: 32, 2>}, {transform_indices = @transform_10, window_bounds = array<i64: 1, 3, 32, 256>}]} {
    %c0 = arith.constant 0 : index
    %c0_0 = arith.constant 0 : index
    %c0_1 = arith.constant 0 : index
    %c0_2 = arith.constant 0 : index
    %0 = vector.load %arg1[%c0, %c0_0, %c0_1, %c0_2] : memref<1x3x32x256xf32, #tpu.memory_space<vmem>>, vector<1x3x32x256xf32>
    %1 = vector.shape_cast %0 : vector<1x3x32x256xf32> to vector<3x32x256xf32>
    %c0_3 = arith.constant 0 : index
    %c0_4 = arith.constant 0 : index
    %c0_5 = arith.constant 0 : index
    %2 = vector.load %arg2[%c0_3, %c0_4, %c0_5] : memref<3x32x1xf32, #tpu.memory_space<vmem>>, vector<3x32x1xf32>
    %cst = arith.constant 0.000000e+00 : f32
    %3 = vector.broadcast %cst : f32 to vector<1x32x256xf32>
    %4 = vector.extract_strided_slice %1 {offsets = [0, 0, 0], sizes = [2, 32, 256], strides = [1, 1, 1]} : vector<3x32x256xf32> to vector<2x32x256xf32>
    %5 = tpu.concatenate %3, %4 in 0 : vector<1x32x256xf32>, vector<2x32x256xf32> -> vector<3x32x256xf32>
    %6 = vector.extract_strided_slice %1 {offsets = [1, 0, 0], sizes = [2, 32, 256], strides = [1, 1, 1]} : vector<3x32x256xf32> to vector<2x32x256xf32>
    %7 = tpu.concatenate %6, %3 in 0 : vector<2x32x256xf32>, vector<1x32x256xf32> -> vector<3x32x256xf32>
    %8 = vector.extract_strided_slice %2 {offsets = [0, 0, 0], sizes = [1, 32, 1], strides = [1, 1, 1]} : vector<3x32x1xf32> to vector<1x32x1xf32>
    %9 = vector.broadcast %8 : vector<1x32x1xf32> to vector<3x32x256xf32>
    %10 = arith.mulf %9, %5 : vector<3x32x256xf32>
    %11 = vector.extract_strided_slice %2 {offsets = [1, 0, 0], sizes = [1, 32, 1], strides = [1, 1, 1]} : vector<3x32x1xf32> to vector<1x32x1xf32>
    %12 = vector.broadcast %11 : vector<1x32x1xf32> to vector<3x32x256xf32>
    %13 = arith.mulf %12, %1 : vector<3x32x256xf32>
    %14 = arith.addf %10, %13 : vector<3x32x256xf32>
    %15 = vector.extract_strided_slice %2 {offsets = [2, 0, 0], sizes = [1, 32, 1], strides = [1, 1, 1]} : vector<3x32x1xf32> to vector<1x32x1xf32>
    %16 = vector.broadcast %15 : vector<1x32x1xf32> to vector<3x32x256xf32>
    %17 = arith.mulf %16, %7 : vector<3x32x256xf32>
    %18 = arith.addf %14, %17 : vector<3x32x256xf32>
    %19 = tpu.iota {dimensions = array<i32: 1>} : vector<1x256xi32>
    %c16_i32 = arith.constant 16 : i32
    %c0_i32 = arith.constant 0 : i32
    %20 = arith.cmpi eq, %c16_i32, %c0_i32 : i32
    %c1_i32 = arith.constant 1 : i32
    %21 = arith.select %20, %c1_i32, %c16_i32 : i32
    %22 = vector.broadcast %21 : i32 to vector<1x256xi32>
    %23 = arith.remsi %19, %22 : vector<1x256xi32>
    %c0_i32_6 = arith.constant 0 : i32
    %24 = vector.broadcast %c0_i32_6 : i32 to vector<1x256xi32>
    %25 = arith.cmpi ne, %23, %24 : vector<1x256xi32>
    %c0_i32_7 = arith.constant 0 : i32
    %26 = vector.broadcast %c0_i32_7 : i32 to vector<1x256xi32>
    %27 = arith.cmpi slt, %23, %26 : vector<1x256xi32>
    %c0_i32_8 = arith.constant 0 : i32
    %28 = arith.cmpi slt, %21, %c0_i32_8 : i32
    %29 = vector.broadcast %28 : i1 to vector<1x256xi1>
    %30 = vector.broadcast %29 : vector<1x256xi1> to vector<1x256xi1>
    %31 = arith.xori %27, %30 : vector<1x256xi1>
    %32 = arith.andi %31, %25 : vector<1x256xi1>
    %33 = vector.broadcast %21 : i32 to vector<1x256xi32>
    %34 = arith.addi %23, %33 : vector<1x256xi32>
    %35 = arith.select %32, %34, %23 : vector<1x256xi1>, vector<1x256xi32>
    %36 = tpu.iota {dimensions = array<i32: 2>} : vector<1x1x256xi32>
    %c16_i32_9 = arith.constant 16 : i32
    %c0_i32_10 = arith.constant 0 : i32
    %37 = arith.cmpi eq, %c16_i32_9, %c0_i32_10 : i32
    %c1_i32_11 = arith.constant 1 : i32
    %38 = arith.select %37, %c1_i32_11, %c16_i32_9 : i32
    %39 = vector.broadcast %38 : i32 to vector<1x1x256xi32>
    %40 = arith.remsi %36, %39 : vector<1x1x256xi32>
    %c0_i32_12 = arith.constant 0 : i32
    %41 = vector.broadcast %c0_i32_12 : i32 to vector<1x1x256xi32>
    %42 = arith.cmpi ne, %40, %41 : vector<1x1x256xi32>
    %c0_i32_13 = arith.constant 0 : i32
    %43 = vector.broadcast %c0_i32_13 : i32 to vector<1x1x256xi32>
    %44 = arith.cmpi slt, %40, %43 : vector<1x1x256xi32>
    %c0_i32_14 = arith.constant 0 : i32
    %45 = arith.cmpi slt, %38, %c0_i32_14 : i32
    %46 = vector.broadcast %45 : i1 to vector<1x1x256xi1>
    %47 = vector.broadcast %46 : vector<1x1x256xi1> to vector<1x1x256xi1>
    %48 = arith.xori %44, %47 : vector<1x1x256xi1>
    %49 = arith.andi %48, %42 : vector<1x1x256xi1>
    %50 = vector.broadcast %38 : i32 to vector<1x1x256xi32>
    %51 = arith.addi %40, %50 : vector<1x1x256xi32>
    %52 = arith.select %49, %51, %40 : vector<1x1x256xi1>, vector<1x1x256xi32>
    %cst_15 = arith.constant dense<0.000000e+00> : vector<3x256xf32>
    %53 = vector.multi_reduction <add>, %18, %cst_15 [1] : vector<3x32x256xf32> to vector<3x256xf32>
    %cst_16 = arith.constant 3.200000e+01 : f32
    %54 = vector.broadcast %cst_16 : f32 to vector<3x256xf32>
    %55 = arith.divf %53, %54 : vector<3x256xf32>
    %cst_17 = arith.constant 0.000000e+00 : f32
    %56 = vector.broadcast %cst_17 : f32 to vector<1x256xf32>
    %57 = tpu.concatenate %56, %55, %56 in 0 : vector<1x256xf32>, vector<3x256xf32>, vector<1x256xf32> -> vector<5x256xf32>
    %cst_18 = arith.constant 0.000000e+00 : f32
    %58 = vector.broadcast %cst_18 : f32 to vector<3x256xf32>
    %cst_19 = arith.constant 0.000000e+00 : f32
    %59 = vector.broadcast %cst_19 : f32 to vector<5x17xf32>
    %60 = vector.extract_strided_slice %57 {offsets = [0, 0], sizes = [5, 239], strides = [1, 1]} : vector<5x256xf32> to vector<5x239xf32>
    %61 = tpu.concatenate %59, %60 in 1 : vector<5x17xf32>, vector<5x239xf32> -> vector<5x256xf32>
    %c1_i32_20 = arith.constant 1 : i32
    %62 = vector.broadcast %c1_i32_20 : i32 to vector<1x256xi32>
    %63 = arith.cmpi sge, %35, %62 : vector<1x256xi32>
    %cst_21 = arith.constant 0.000000e+00 : f32
    %64 = vector.shape_cast %63 : vector<1x256xi1> to vector<1x256xi1>
    %65 = vector.broadcast %64 : vector<1x256xi1> to vector<5x256xi1>
    %66 = vector.broadcast %cst_21 : f32 to vector<5x256xf32>
    %67 = arith.select %65, %61, %66 : vector<5x256xi1>, vector<5x256xf32>
    %c0_22 = arith.constant 0 : index
    %68 = memref.load %arg3[%c0_22] : memref<27xf32, #tpu.memory_space<smem>>
    %69 = vector.extract_strided_slice %67 {offsets = [0, 0], sizes = [3, 256], strides = [1, 1]} : vector<5x256xf32> to vector<3x256xf32>
    %70 = vector.broadcast %68 : f32 to vector<3x256xf32>
    %71 = arith.mulf %70, %69 : vector<3x256xf32>
    %72 = arith.addf %58, %71 : vector<3x256xf32>
    %c9 = arith.constant 9 : index
    %73 = memref.load %arg3[%c9] : memref<27xf32, #tpu.memory_space<smem>>
    %74 = vector.extract_strided_slice %67 {offsets = [1, 0], sizes = [3, 256], strides = [1, 1]} : vector<5x256xf32> to vector<3x256xf32>
    %75 = vector.broadcast %73 : f32 to vector<3x256xf32>
    %76 = arith.mulf %75, %74 : vector<3x256xf32>
    %77 = arith.addf %72, %76 : vector<3x256xf32>
    %c18 = arith.constant 18 : index
    %78 = memref.load %arg3[%c18] : memref<27xf32, #tpu.memory_space<smem>>
    %79 = vector.extract_strided_slice %67 {offsets = [2, 0], sizes = [3, 256], strides = [1, 1]} : vector<5x256xf32> to vector<3x256xf32>
    %80 = vector.broadcast %78 : f32 to vector<3x256xf32>
    %81 = arith.mulf %80, %79 : vector<3x256xf32>
    %82 = arith.addf %77, %81 : vector<3x256xf32>
    %cst_23 = arith.constant 0.000000e+00 : f32
    %83 = vector.broadcast %cst_23 : f32 to vector<5x16xf32>
    %84 = vector.extract_strided_slice %57 {offsets = [0, 0], sizes = [5, 240], strides = [1, 1]} : vector<5x256xf32> to vector<5x240xf32>
    %85 = tpu.concatenate %83, %84 in 1 : vector<5x16xf32>, vector<5x240xf32> -> vector<5x256xf32>
    %c1 = arith.constant 1 : index
    %86 = memref.load %arg3[%c1] : memref<27xf32, #tpu.memory_space<smem>>
    %87 = vector.extract_strided_slice %85 {offsets = [0, 0], sizes = [3, 256], strides = [1, 1]} : vector<5x256xf32> to vector<3x256xf32>
    %88 = vector.broadcast %86 : f32 to vector<3x256xf32>
    %89 = arith.mulf %88, %87 : vector<3x256xf32>
    %90 = arith.addf %82, %89 : vector<3x256xf32>
    %c10 = arith.constant 10 : index
    %91 = memref.load %arg3[%c10] : memref<27xf32, #tpu.memory_space<smem>>
    %92 = vector.extract_strided_slice %85 {offsets = [1, 0], sizes = [3, 256], strides = [1, 1]} : vector<5x256xf32> to vector<3x256xf32>
    %93 = vector.broadcast %91 : f32 to vector<3x256xf32>
    %94 = arith.mulf %93, %92 : vector<3x256xf32>
    %95 = arith.addf %90, %94 : vector<3x256xf32>
    %c19 = arith.constant 19 : index
    %96 = memref.load %arg3[%c19] : memref<27xf32, #tpu.memory_space<smem>>
    %97 = vector.extract_strided_slice %85 {offsets = [2, 0], sizes = [3, 256], strides = [1, 1]} : vector<5x256xf32> to vector<3x256xf32>
    %98 = vector.broadcast %96 : f32 to vector<3x256xf32>
    %99 = arith.mulf %98, %97 : vector<3x256xf32>
    %100 = arith.addf %95, %99 : vector<3x256xf32>
    %cst_24 = arith.constant 0.000000e+00 : f32
    %101 = vector.broadcast %cst_24 : f32 to vector<5x15xf32>
    %102 = vector.extract_strided_slice %57 {offsets = [0, 0], sizes = [5, 241], strides = [1, 1]} : vector<5x256xf32> to vector<5x241xf32>
    %103 = tpu.concatenate %101, %102 in 1 : vector<5x15xf32>, vector<5x241xf32> -> vector<5x256xf32>
    %c14_i32 = arith.constant 14 : i32
    %104 = vector.broadcast %c14_i32 : i32 to vector<1x256xi32>
    %105 = arith.cmpi sle, %35, %104 : vector<1x256xi32>
    %cst_25 = arith.constant 0.000000e+00 : f32
    %106 = vector.shape_cast %105 : vector<1x256xi1> to vector<1x256xi1>
    %107 = vector.broadcast %106 : vector<1x256xi1> to vector<5x256xi1>
    %108 = vector.broadcast %cst_25 : f32 to vector<5x256xf32>
    %109 = arith.select %107, %103, %108 : vector<5x256xi1>, vector<5x256xf32>
    %c2 = arith.constant 2 : index
    %110 = memref.load %arg3[%c2] : memref<27xf32, #tpu.memory_space<smem>>
    %111 = vector.extract_strided_slice %109 {offsets = [0, 0], sizes = [3, 256], strides = [1, 1]} : vector<5x256xf32> to vector<3x256xf32>
    %112 = vector.broadcast %110 : f32 to vector<3x256xf32>
    %113 = arith.mulf %112, %111 : vector<3x256xf32>
    %114 = arith.addf %100, %113 : vector<3x256xf32>
    %c11 = arith.constant 11 : index
    %115 = memref.load %arg3[%c11] : memref<27xf32, #tpu.memory_space<smem>>
    %116 = vector.extract_strided_slice %109 {offsets = [1, 0], sizes = [3, 256], strides = [1, 1]} : vector<5x256xf32> to vector<3x256xf32>
    %117 = vector.broadcast %115 : f32 to vector<3x256xf32>
    %118 = arith.mulf %117, %116 : vector<3x256xf32>
    %119 = arith.addf %114, %118 : vector<3x256xf32>
    %c20 = arith.constant 20 : index
    %120 = memref.load %arg3[%c20] : memref<27xf32, #tpu.memory_space<smem>>
    %121 = vector.extract_strided_slice %109 {offsets = [2, 0], sizes = [3, 256], strides = [1, 1]} : vector<5x256xf32> to vector<3x256xf32>
    %122 = vector.broadcast %120 : f32 to vector<3x256xf32>
    %123 = arith.mulf %122, %121 : vector<3x256xf32>
    %124 = arith.addf %119, %123 : vector<3x256xf32>
    %cst_26 = arith.constant 0.000000e+00 : f32
    %125 = vector.broadcast %cst_26 : f32 to vector<5x1xf32>
    %126 = vector.extract_strided_slice %57 {offsets = [0, 0], sizes = [5, 255], strides = [1, 1]} : vector<5x256xf32> to vector<5x255xf32>
    %127 = tpu.concatenate %125, %126 in 1 : vector<5x1xf32>, vector<5x255xf32> -> vector<5x256xf32>
    %c1_i32_27 = arith.constant 1 : i32
    %128 = vector.broadcast %c1_i32_27 : i32 to vector<1x256xi32>
    %129 = arith.cmpi sge, %35, %128 : vector<1x256xi32>
    %cst_28 = arith.constant 0.000000e+00 : f32
    %130 = vector.shape_cast %129 : vector<1x256xi1> to vector<1x256xi1>
    %131 = vector.broadcast %130 : vector<1x256xi1> to vector<5x256xi1>
    %132 = vector.broadcast %cst_28 : f32 to vector<5x256xf32>
    %133 = arith.select %131, %127, %132 : vector<5x256xi1>, vector<5x256xf32>
    %c3 = arith.constant 3 : index
    %134 = memref.load %arg3[%c3] : memref<27xf32, #tpu.memory_space<smem>>
    %135 = vector.extract_strided_slice %133 {offsets = [0, 0], sizes = [3, 256], strides = [1, 1]} : vector<5x256xf32> to vector<3x256xf32>
    %136 = vector.broadcast %134 : f32 to vector<3x256xf32>
    %137 = arith.mulf %136, %135 : vector<3x256xf32>
    %138 = arith.addf %124, %137 : vector<3x256xf32>
    %c12 = arith.constant 12 : index
    %139 = memref.load %arg3[%c12] : memref<27xf32, #tpu.memory_space<smem>>
    %140 = vector.extract_strided_slice %133 {offsets = [1, 0], sizes = [3, 256], strides = [1, 1]} : vector<5x256xf32> to vector<3x256xf32>
    %141 = vector.broadcast %139 : f32 to vector<3x256xf32>
    %142 = arith.mulf %141, %140 : vector<3x256xf32>
    %143 = arith.addf %138, %142 : vector<3x256xf32>
    %c21 = arith.constant 21 : index
    %144 = memref.load %arg3[%c21] : memref<27xf32, #tpu.memory_space<smem>>
    %145 = vector.extract_strided_slice %133 {offsets = [2, 0], sizes = [3, 256], strides = [1, 1]} : vector<5x256xf32> to vector<3x256xf32>
    %146 = vector.broadcast %144 : f32 to vector<3x256xf32>
    %147 = arith.mulf %146, %145 : vector<3x256xf32>
    %148 = arith.addf %143, %147 : vector<3x256xf32>
    %c4 = arith.constant 4 : index
    %149 = memref.load %arg3[%c4] : memref<27xf32, #tpu.memory_space<smem>>
    %150 = vector.extract_strided_slice %57 {offsets = [0, 0], sizes = [3, 256], strides = [1, 1]} : vector<5x256xf32> to vector<3x256xf32>
    %151 = vector.broadcast %149 : f32 to vector<3x256xf32>
    %152 = arith.mulf %151, %150 : vector<3x256xf32>
    %153 = arith.addf %148, %152 : vector<3x256xf32>
    %c13 = arith.constant 13 : index
    %154 = memref.load %arg3[%c13] : memref<27xf32, #tpu.memory_space<smem>>
    %155 = vector.extract_strided_slice %57 {offsets = [1, 0], sizes = [3, 256], strides = [1, 1]} : vector<5x256xf32> to vector<3x256xf32>
    %156 = vector.broadcast %154 : f32 to vector<3x256xf32>
    %157 = arith.mulf %156, %155 : vector<3x256xf32>
    %158 = arith.addf %153, %157 : vector<3x256xf32>
    %c22 = arith.constant 22 : index
    %159 = memref.load %arg3[%c22] : memref<27xf32, #tpu.memory_space<smem>>
    %160 = vector.extract_strided_slice %57 {offsets = [2, 0], sizes = [3, 256], strides = [1, 1]} : vector<5x256xf32> to vector<3x256xf32>
    %161 = vector.broadcast %159 : f32 to vector<3x256xf32>
    %162 = arith.mulf %161, %160 : vector<3x256xf32>
    %163 = arith.addf %158, %162 : vector<3x256xf32>
    %cst_29 = arith.constant 0.000000e+00 : f32
    %164 = vector.broadcast %cst_29 : f32 to vector<5x1xf32>
    %165 = vector.extract_strided_slice %57 {offsets = [0, 1], sizes = [5, 255], strides = [1, 1]} : vector<5x256xf32> to vector<5x255xf32>
    %166 = tpu.concatenate %165, %164 in 1 : vector<5x255xf32>, vector<5x1xf32> -> vector<5x256xf32>
    %c14_i32_30 = arith.constant 14 : i32
    %167 = vector.broadcast %c14_i32_30 : i32 to vector<1x256xi32>
    %168 = arith.cmpi sle, %35, %167 : vector<1x256xi32>
    %cst_31 = arith.constant 0.000000e+00 : f32
    %169 = vector.shape_cast %168 : vector<1x256xi1> to vector<1x256xi1>
    %170 = vector.broadcast %169 : vector<1x256xi1> to vector<5x256xi1>
    %171 = vector.broadcast %cst_31 : f32 to vector<5x256xf32>
    %172 = arith.select %170, %166, %171 : vector<5x256xi1>, vector<5x256xf32>
    %c5 = arith.constant 5 : index
    %173 = memref.load %arg3[%c5] : memref<27xf32, #tpu.memory_space<smem>>
    %174 = vector.extract_strided_slice %172 {offsets = [0, 0], sizes = [3, 256], strides = [1, 1]} : vector<5x256xf32> to vector<3x256xf32>
    %175 = vector.broadcast %173 : f32 to vector<3x256xf32>
    %176 = arith.mulf %175, %174 : vector<3x256xf32>
    %177 = arith.addf %163, %176 : vector<3x256xf32>
    %c14 = arith.constant 14 : index
    %178 = memref.load %arg3[%c14] : memref<27xf32, #tpu.memory_space<smem>>
    %179 = vector.extract_strided_slice %172 {offsets = [1, 0], sizes = [3, 256], strides = [1, 1]} : vector<5x256xf32> to vector<3x256xf32>
    %180 = vector.broadcast %178 : f32 to vector<3x256xf32>
    %181 = arith.mulf %180, %179 : vector<3x256xf32>
    %182 = arith.addf %177, %181 : vector<3x256xf32>
    %c23 = arith.constant 23 : index
    %183 = memref.load %arg3[%c23] : memref<27xf32, #tpu.memory_space<smem>>
    %184 = vector.extract_strided_slice %172 {offsets = [2, 0], sizes = [3, 256], strides = [1, 1]} : vector<5x256xf32> to vector<3x256xf32>
    %185 = vector.broadcast %183 : f32 to vector<3x256xf32>
    %186 = arith.mulf %185, %184 : vector<3x256xf32>
    %187 = arith.addf %182, %186 : vector<3x256xf32>
    %cst_32 = arith.constant 0.000000e+00 : f32
    %188 = vector.broadcast %cst_32 : f32 to vector<5x15xf32>
    %189 = vector.extract_strided_slice %57 {offsets = [0, 15], sizes = [5, 241], strides = [1, 1]} : vector<5x256xf32> to vector<5x241xf32>
    %190 = tpu.concatenate %189, %188 in 1 : vector<5x241xf32>, vector<5x15xf32> -> vector<5x256xf32>
    %c1_i32_33 = arith.constant 1 : i32
    %191 = vector.broadcast %c1_i32_33 : i32 to vector<1x256xi32>
    %192 = arith.cmpi sge, %35, %191 : vector<1x256xi32>
    %cst_34 = arith.constant 0.000000e+00 : f32
    %193 = vector.shape_cast %192 : vector<1x256xi1> to vector<1x256xi1>
    %194 = vector.broadcast %193 : vector<1x256xi1> to vector<5x256xi1>
    %195 = vector.broadcast %cst_34 : f32 to vector<5x256xf32>
    %196 = arith.select %194, %190, %195 : vector<5x256xi1>, vector<5x256xf32>
    %c6 = arith.constant 6 : index
    %197 = memref.load %arg3[%c6] : memref<27xf32, #tpu.memory_space<smem>>
    %198 = vector.extract_strided_slice %196 {offsets = [0, 0], sizes = [3, 256], strides = [1, 1]} : vector<5x256xf32> to vector<3x256xf32>
    %199 = vector.broadcast %197 : f32 to vector<3x256xf32>
    %200 = arith.mulf %199, %198 : vector<3x256xf32>
    %201 = arith.addf %187, %200 : vector<3x256xf32>
    %c15 = arith.constant 15 : index
    %202 = memref.load %arg3[%c15] : memref<27xf32, #tpu.memory_space<smem>>
    %203 = vector.extract_strided_slice %196 {offsets = [1, 0], sizes = [3, 256], strides = [1, 1]} : vector<5x256xf32> to vector<3x256xf32>
    %204 = vector.broadcast %202 : f32 to vector<3x256xf32>
    %205 = arith.mulf %204, %203 : vector<3x256xf32>
    %206 = arith.addf %201, %205 : vector<3x256xf32>
    %c24 = arith.constant 24 : index
    %207 = memref.load %arg3[%c24] : memref<27xf32, #tpu.memory_space<smem>>
    %208 = vector.extract_strided_slice %196 {offsets = [2, 0], sizes = [3, 256], strides = [1, 1]} : vector<5x256xf32> to vector<3x256xf32>
    %209 = vector.broadcast %207 : f32 to vector<3x256xf32>
    %210 = arith.mulf %209, %208 : vector<3x256xf32>
    %211 = arith.addf %206, %210 : vector<3x256xf32>
    %cst_35 = arith.constant 0.000000e+00 : f32
    %212 = vector.broadcast %cst_35 : f32 to vector<5x16xf32>
    %213 = vector.extract_strided_slice %57 {offsets = [0, 16], sizes = [5, 240], strides = [1, 1]} : vector<5x256xf32> to vector<5x240xf32>
    %214 = tpu.concatenate %213, %212 in 1 : vector<5x240xf32>, vector<5x16xf32> -> vector<5x256xf32>
    %c7 = arith.constant 7 : index
    %215 = memref.load %arg3[%c7] : memref<27xf32, #tpu.memory_space<smem>>
    %216 = vector.extract_strided_slice %214 {offsets = [0, 0], sizes = [3, 256], strides = [1, 1]} : vector<5x256xf32> to vector<3x256xf32>
    %217 = vector.broadcast %215 : f32 to vector<3x256xf32>
    %218 = arith.mulf %217, %216 : vector<3x256xf32>
    %219 = arith.addf %211, %218 : vector<3x256xf32>
    %c16 = arith.constant 16 : index
    %220 = memref.load %arg3[%c16] : memref<27xf32, #tpu.memory_space<smem>>
    %221 = vector.extract_strided_slice %214 {offsets = [1, 0], sizes = [3, 256], strides = [1, 1]} : vector<5x256xf32> to vector<3x256xf32>
    %222 = vector.broadcast %220 : f32 to vector<3x256xf32>
    %223 = arith.mulf %222, %221 : vector<3x256xf32>
    %224 = arith.addf %219, %223 : vector<3x256xf32>
    %c25 = arith.constant 25 : index
    %225 = memref.load %arg3[%c25] : memref<27xf32, #tpu.memory_space<smem>>
    %226 = vector.extract_strided_slice %214 {offsets = [2, 0], sizes = [3, 256], strides = [1, 1]} : vector<5x256xf32> to vector<3x256xf32>
    %227 = vector.broadcast %225 : f32 to vector<3x256xf32>
    %228 = arith.mulf %227, %226 : vector<3x256xf32>
    %229 = arith.addf %224, %228 : vector<3x256xf32>
    %cst_36 = arith.constant 0.000000e+00 : f32
    %230 = vector.broadcast %cst_36 : f32 to vector<5x17xf32>
    %231 = vector.extract_strided_slice %57 {offsets = [0, 17], sizes = [5, 239], strides = [1, 1]} : vector<5x256xf32> to vector<5x239xf32>
    %232 = tpu.concatenate %231, %230 in 1 : vector<5x239xf32>, vector<5x17xf32> -> vector<5x256xf32>
    %c14_i32_37 = arith.constant 14 : i32
    %233 = vector.broadcast %c14_i32_37 : i32 to vector<1x256xi32>
    %234 = arith.cmpi sle, %35, %233 : vector<1x256xi32>
    %cst_38 = arith.constant 0.000000e+00 : f32
    %235 = vector.shape_cast %234 : vector<1x256xi1> to vector<1x256xi1>
    %236 = vector.broadcast %235 : vector<1x256xi1> to vector<5x256xi1>
    %237 = vector.broadcast %cst_38 : f32 to vector<5x256xf32>
    %238 = arith.select %236, %232, %237 : vector<5x256xi1>, vector<5x256xf32>
    %c8 = arith.constant 8 : index
    %239 = memref.load %arg3[%c8] : memref<27xf32, #tpu.memory_space<smem>>
    %240 = vector.extract_strided_slice %238 {offsets = [0, 0], sizes = [3, 256], strides = [1, 1]} : vector<5x256xf32> to vector<3x256xf32>
    %241 = vector.broadcast %239 : f32 to vector<3x256xf32>
    %242 = arith.mulf %241, %240 : vector<3x256xf32>
    %243 = arith.addf %229, %242 : vector<3x256xf32>
    %c17 = arith.constant 17 : index
    %244 = memref.load %arg3[%c17] : memref<27xf32, #tpu.memory_space<smem>>
    %245 = vector.extract_strided_slice %238 {offsets = [1, 0], sizes = [3, 256], strides = [1, 1]} : vector<5x256xf32> to vector<3x256xf32>
    %246 = vector.broadcast %244 : f32 to vector<3x256xf32>
    %247 = arith.mulf %246, %245 : vector<3x256xf32>
    %248 = arith.addf %243, %247 : vector<3x256xf32>
    %c26 = arith.constant 26 : index
    %249 = memref.load %arg3[%c26] : memref<27xf32, #tpu.memory_space<smem>>
    %250 = vector.extract_strided_slice %238 {offsets = [2, 0], sizes = [3, 256], strides = [1, 1]} : vector<5x256xf32> to vector<3x256xf32>
    %251 = vector.broadcast %249 : f32 to vector<3x256xf32>
    %252 = arith.mulf %251, %250 : vector<3x256xf32>
    %253 = arith.addf %248, %252 : vector<3x256xf32>
    %254 = arith.negf %253 : vector<3x256xf32>
    %255 = math.exp %254 : vector<3x256xf32>
    %cst_39 = arith.constant 1.000000e+00 : f32
    %256 = vector.broadcast %cst_39 : f32 to vector<3x256xf32>
    %257 = arith.addf %256, %255 : vector<3x256xf32>
    %258 = arith.divf %256, %257 : vector<3x256xf32>
    %259 = vector.extract_strided_slice %18 {offsets = [0, 0, 0], sizes = [1, 32, 256], strides = [1, 1, 1]} : vector<3x32x256xf32> to vector<1x32x256xf32>
    %260 = vector.shape_cast %259 : vector<1x32x256xf32> to vector<32x256xf32>
    %cst_40 = arith.constant dense<0.000000e+00> : vector<32xf32>
    %261 = vector.multi_reduction <add>, %260, %cst_40 [1] : vector<32x256xf32> to vector<32xf32>
    %262 = vector.shape_cast %261 : vector<32xf32> to vector<32x1xf32>
    %cst_41 = arith.constant 2.560000e+02 : f32
    %263 = vector.broadcast %cst_41 : f32 to vector<32x1xf32>
    %264 = arith.divf %262, %263 : vector<32x1xf32>
    %265 = vector.extract_strided_slice %18 {offsets = [1, 0, 0], sizes = [1, 32, 256], strides = [1, 1, 1]} : vector<3x32x256xf32> to vector<1x32x256xf32>
    %266 = vector.shape_cast %265 : vector<1x32x256xf32> to vector<32x256xf32>
    %cst_42 = arith.constant dense<0.000000e+00> : vector<32xf32>
    %267 = vector.multi_reduction <add>, %266, %cst_42 [1] : vector<32x256xf32> to vector<32xf32>
    %268 = vector.shape_cast %267 : vector<32xf32> to vector<32x1xf32>
    %cst_43 = arith.constant 2.560000e+02 : f32
    %269 = vector.broadcast %cst_43 : f32 to vector<32x1xf32>
    %270 = arith.divf %268, %269 : vector<32x1xf32>
    %271 = vector.extract_strided_slice %18 {offsets = [2, 0, 0], sizes = [1, 32, 256], strides = [1, 1, 1]} : vector<3x32x256xf32> to vector<1x32x256xf32>
    %272 = vector.shape_cast %271 : vector<1x32x256xf32> to vector<32x256xf32>
    %cst_44 = arith.constant dense<0.000000e+00> : vector<32xf32>
    %273 = vector.multi_reduction <add>, %272, %cst_44 [1] : vector<32x256xf32> to vector<32xf32>
    %274 = vector.shape_cast %273 : vector<32xf32> to vector<32x1xf32>
    %cst_45 = arith.constant 2.560000e+02 : f32
    %275 = vector.broadcast %cst_45 : f32 to vector<32x1xf32>
    %276 = arith.divf %274, %275 : vector<32x1xf32>
    %277 = tpu.concatenate %264, %270, %276 in 1 : vector<32x1xf32>, vector<32x1xf32>, vector<32x1xf32> -> vector<32x3xf32>
    %c0_46 = arith.constant 0 : index
    %c0_47 = arith.constant 0 : index
    %278 = vector.load %arg4[%c0_46, %c0_47] : memref<2x32xf32, #tpu.memory_space<vmem>>, vector<2x32xf32>
    %cst_48 = arith.constant dense<0.000000e+00> : vector<2x3xf32>
    %279 = tpu.matmul %278, %277, %cst_48 {dimension_numbers = #tpu.dot_dimension_numbers<[1], [0], [0], [1], [0, 0, 1, 1], [], []>} : vector<2x32xf32>, vector<32x3xf32>, vector<2x3xf32> -> vector<2x3xf32>
    %cst_49 = arith.constant 0.000000e+00 : f32
    %280 = vector.broadcast %cst_49 : f32 to vector<2x1xf32>
    %281 = tpu.concatenate %280, %279, %280 in 1 : vector<2x1xf32>, vector<2x3xf32>, vector<2x1xf32> -> vector<2x5xf32>
    %c0_50 = arith.constant 0 : index
    %c0_51 = arith.constant 0 : index
    %c0_52 = arith.constant 0 : index
    %282 = vector.load %arg5[%c0_50, %c0_51, %c0_52] : memref<3x2x2xf32, #tpu.memory_space<vmem>>, vector<3x2x2xf32>
    %283 = vector.extract_strided_slice %282 {offsets = [0, 0, 0], sizes = [1, 2, 2], strides = [1, 1, 1]} : vector<3x2x2xf32> to vector<1x2x2xf32>
    %284 = vector.shape_cast %283 : vector<1x2x2xf32> to vector<2x2xf32>
    %285 = vector.extract_strided_slice %281 {offsets = [0, 0], sizes = [2, 3], strides = [1, 1]} : vector<2x5xf32> to vector<2x3xf32>
    %cst_53 = arith.constant dense<0.000000e+00> : vector<2x3xf32>
    %286 = tpu.matmul %284, %285, %cst_53 {dimension_numbers = #tpu.dot_dimension_numbers<[1], [0], [0], [1], [0, 0, 1, 1], [], []>} : vector<2x2xf32>, vector<2x3xf32>, vector<2x3xf32> -> vector<2x3xf32>
    %287 = vector.extract_strided_slice %282 {offsets = [1, 0, 0], sizes = [1, 2, 2], strides = [1, 1, 1]} : vector<3x2x2xf32> to vector<1x2x2xf32>
    %288 = vector.shape_cast %287 : vector<1x2x2xf32> to vector<2x2xf32>
    %289 = vector.extract_strided_slice %281 {offsets = [0, 1], sizes = [2, 3], strides = [1, 1]} : vector<2x5xf32> to vector<2x3xf32>
    %cst_54 = arith.constant dense<0.000000e+00> : vector<2x3xf32>
    %290 = tpu.matmul %288, %289, %cst_54 {dimension_numbers = #tpu.dot_dimension_numbers<[1], [0], [0], [1], [0, 0, 1, 1], [], []>} : vector<2x2xf32>, vector<2x3xf32>, vector<2x3xf32> -> vector<2x3xf32>
    %291 = arith.addf %286, %290 : vector<2x3xf32>
    %292 = vector.extract_strided_slice %282 {offsets = [2, 0, 0], sizes = [1, 2, 2], strides = [1, 1, 1]} : vector<3x2x2xf32> to vector<1x2x2xf32>
    %293 = vector.shape_cast %292 : vector<1x2x2xf32> to vector<2x2xf32>
    %294 = vector.extract_strided_slice %281 {offsets = [0, 2], sizes = [2, 3], strides = [1, 1]} : vector<2x5xf32> to vector<2x3xf32>
    %cst_55 = arith.constant dense<0.000000e+00> : vector<2x3xf32>
    %295 = tpu.matmul %293, %294, %cst_55 {dimension_numbers = #tpu.dot_dimension_numbers<[1], [0], [0], [1], [0, 0, 1, 1], [], []>} : vector<2x2xf32>, vector<2x3xf32>, vector<2x3xf32> -> vector<2x3xf32>
    %296 = arith.addf %291, %295 : vector<2x3xf32>
    %cst_56 = arith.constant 0.000000e+00 : f32
    %297 = vector.broadcast %cst_56 : f32 to vector<2x3xf32>
    %298 = arith.maximumf %296, %297 : vector<2x3xf32>
    %c0_57 = arith.constant 0 : index
    %c0_58 = arith.constant 0 : index
    %299 = vector.load %arg6[%c0_57, %c0_58] : memref<32x2xf32, #tpu.memory_space<vmem>>, vector<32x2xf32>
    %cst_59 = arith.constant dense<0.000000e+00> : vector<32x3xf32>
    %300 = tpu.matmul %299, %298, %cst_59 {dimension_numbers = #tpu.dot_dimension_numbers<[1], [0], [0], [1], [0, 0, 1, 1], [], []>} : vector<32x2xf32>, vector<2x3xf32>, vector<32x3xf32> -> vector<32x3xf32>
    %301 = arith.negf %300 : vector<32x3xf32>
    %302 = math.exp %301 : vector<32x3xf32>
    %cst_60 = arith.constant 1.000000e+00 : f32
    %303 = vector.broadcast %cst_60 : f32 to vector<32x3xf32>
    %304 = arith.addf %303, %302 : vector<32x3xf32>
    %305 = arith.divf %303, %304 : vector<32x3xf32>
    %c0_61 = arith.constant 0 : index
    %c0_62 = arith.constant 0 : index
    %306 = vector.load %arg7[%c0_61, %c0_62] : memref<2x32xf32, #tpu.memory_space<vmem>>, vector<2x32xf32>
    %c0_63 = arith.constant 0 : index
    %c0_64 = arith.constant 0 : index
    %307 = vector.load %arg8[%c0_63, %c0_64] : memref<2x1xf32, #tpu.memory_space<vmem>>, vector<2x1xf32>
    %308 = vector.extract_strided_slice %18 {offsets = [0, 0, 0], sizes = [1, 32, 256], strides = [1, 1, 1]} : vector<3x32x256xf32> to vector<1x32x256xf32>
    %309 = vector.shape_cast %308 : vector<1x32x256xf32> to vector<32x256xf32>
    %cst_65 = arith.constant dense<0.000000e+00> : vector<2x256xf32>
    %310 = tpu.matmul %306, %309, %cst_65 {dimension_numbers = #tpu.dot_dimension_numbers<[1], [0], [0], [1], [0, 0, 1, 1], [], []>} : vector<2x32xf32>, vector<32x256xf32>, vector<2x256xf32> -> vector<2x256xf32>
    %311 = vector.broadcast %307 : vector<2x1xf32> to vector<2x256xf32>
    %312 = arith.addf %310, %311 : vector<2x256xf32>
    %313 = vector.extract_strided_slice %18 {offsets = [1, 0, 0], sizes = [1, 32, 256], strides = [1, 1, 1]} : vector<3x32x256xf32> to vector<1x32x256xf32>
    %314 = vector.shape_cast %313 : vector<1x32x256xf32> to vector<32x256xf32>
    %cst_66 = arith.constant dense<0.000000e+00> : vector<2x256xf32>
    %315 = tpu.matmul %306, %314, %cst_66 {dimension_numbers = #tpu.dot_dimension_numbers<[1], [0], [0], [1], [0, 0, 1, 1], [], []>} : vector<2x32xf32>, vector<32x256xf32>, vector<2x256xf32> -> vector<2x256xf32>
    %316 = vector.broadcast %307 : vector<2x1xf32> to vector<2x256xf32>
    %317 = arith.addf %315, %316 : vector<2x256xf32>
    %318 = vector.extract_strided_slice %18 {offsets = [2, 0, 0], sizes = [1, 32, 256], strides = [1, 1, 1]} : vector<3x32x256xf32> to vector<1x32x256xf32>
    %319 = vector.shape_cast %318 : vector<1x32x256xf32> to vector<32x256xf32>
    %cst_67 = arith.constant dense<0.000000e+00> : vector<2x256xf32>
    %320 = tpu.matmul %306, %319, %cst_67 {dimension_numbers = #tpu.dot_dimension_numbers<[1], [0], [0], [1], [0, 0, 1, 1], [], []>} : vector<2x32xf32>, vector<32x256xf32>, vector<2x256xf32> -> vector<2x256xf32>
    %321 = vector.broadcast %307 : vector<2x1xf32> to vector<2x256xf32>
    %322 = arith.addf %320, %321 : vector<2x256xf32>
    %323 = vector.shape_cast %312 : vector<2x256xf32> to vector<1x2x256xf32>
    %324 = vector.shape_cast %317 : vector<2x256xf32> to vector<1x2x256xf32>
    %325 = vector.shape_cast %322 : vector<2x256xf32> to vector<1x2x256xf32>
    %326 = tpu.concatenate %323, %324, %325 in 0 : vector<1x2x256xf32>, vector<1x2x256xf32>, vector<1x2x256xf32> -> vector<3x2x256xf32>
    %c0_68 = arith.constant 0 : index
    %c0_69 = arith.constant 0 : index
    %c0_70 = arith.constant 0 : index
    %c0_71 = arith.constant 0 : index
    %327 = vector.load %arg9[%c0_68, %c0_69, %c0_70, %c0_71] : memref<3x3x2x1xf32, #tpu.memory_space<vmem>>, vector<3x3x2x1xf32>
    %cst_72 = arith.constant 0.000000e+00 : f32
    %328 = vector.broadcast %cst_72 : f32 to vector<3x2x256xf32>
    %cst_73 = arith.constant 0.000000e+00 : f32
    %329 = vector.broadcast %cst_73 : f32 to vector<3x2x17xf32>
    %330 = vector.extract_strided_slice %326 {offsets = [0, 0, 0], sizes = [3, 2, 239], strides = [1, 1, 1]} : vector<3x2x256xf32> to vector<3x2x239xf32>
    %331 = tpu.concatenate %329, %330 in 2 : vector<3x2x17xf32>, vector<3x2x239xf32> -> vector<3x2x256xf32>
    %c1_i32_74 = arith.constant 1 : i32
    %332 = vector.broadcast %c1_i32_74 : i32 to vector<1x1x256xi32>
    %333 = arith.cmpi sge, %52, %332 : vector<1x1x256xi32>
    %cst_75 = arith.constant 0.000000e+00 : f32
    %334 = vector.shape_cast %333 : vector<1x1x256xi1> to vector<1x1x256xi1>
    %335 = vector.broadcast %334 : vector<1x1x256xi1> to vector<3x2x256xi1>
    %336 = vector.broadcast %cst_75 : f32 to vector<3x2x256xf32>
    %337 = arith.select %335, %331, %336 : vector<3x2x256xi1>, vector<3x2x256xf32>
    %338 = vector.extract_strided_slice %327 {offsets = [0, 0, 0, 0], sizes = [1, 1, 2, 1], strides = [1, 1, 1, 1]} : vector<3x3x2x1xf32> to vector<1x1x2x1xf32>
    %339 = vector.shape_cast %338 : vector<1x1x2x1xf32> to vector<2x1xf32>
    %340 = vector.shape_cast %339 : vector<2x1xf32> to vector<1x2x1xf32>
    %341 = vector.broadcast %340 : vector<1x2x1xf32> to vector<3x2x256xf32>
    %342 = arith.mulf %341, %337 : vector<3x2x256xf32>
    %343 = arith.addf %328, %342 : vector<3x2x256xf32>
    %cst_76 = arith.constant 0.000000e+00 : f32
    %344 = vector.broadcast %cst_76 : f32 to vector<3x2x16xf32>
    %345 = vector.extract_strided_slice %326 {offsets = [0, 0, 0], sizes = [3, 2, 240], strides = [1, 1, 1]} : vector<3x2x256xf32> to vector<3x2x240xf32>
    %346 = tpu.concatenate %344, %345 in 2 : vector<3x2x16xf32>, vector<3x2x240xf32> -> vector<3x2x256xf32>
    %347 = vector.extract_strided_slice %327 {offsets = [0, 1, 0, 0], sizes = [1, 1, 2, 1], strides = [1, 1, 1, 1]} : vector<3x3x2x1xf32> to vector<1x1x2x1xf32>
    %348 = vector.shape_cast %347 : vector<1x1x2x1xf32> to vector<2x1xf32>
    %349 = vector.shape_cast %348 : vector<2x1xf32> to vector<1x2x1xf32>
    %350 = vector.broadcast %349 : vector<1x2x1xf32> to vector<3x2x256xf32>
    %351 = arith.mulf %350, %346 : vector<3x2x256xf32>
    %352 = arith.addf %343, %351 : vector<3x2x256xf32>
    %cst_77 = arith.constant 0.000000e+00 : f32
    %353 = vector.broadcast %cst_77 : f32 to vector<3x2x15xf32>
    %354 = vector.extract_strided_slice %326 {offsets = [0, 0, 0], sizes = [3, 2, 241], strides = [1, 1, 1]} : vector<3x2x256xf32> to vector<3x2x241xf32>
    %355 = tpu.concatenate %353, %354 in 2 : vector<3x2x15xf32>, vector<3x2x241xf32> -> vector<3x2x256xf32>
    %c14_i32_78 = arith.constant 14 : i32
    %356 = vector.broadcast %c14_i32_78 : i32 to vector<1x1x256xi32>
    %357 = arith.cmpi sle, %52, %356 : vector<1x1x256xi32>
    %cst_79 = arith.constant 0.000000e+00 : f32
    %358 = vector.shape_cast %357 : vector<1x1x256xi1> to vector<1x1x256xi1>
    %359 = vector.broadcast %358 : vector<1x1x256xi1> to vector<3x2x256xi1>
    %360 = vector.broadcast %cst_79 : f32 to vector<3x2x256xf32>
    %361 = arith.select %359, %355, %360 : vector<3x2x256xi1>, vector<3x2x256xf32>
    %362 = vector.extract_strided_slice %327 {offsets = [0, 2, 0, 0], sizes = [1, 1, 2, 1], strides = [1, 1, 1, 1]} : vector<3x3x2x1xf32> to vector<1x1x2x1xf32>
    %363 = vector.shape_cast %362 : vector<1x1x2x1xf32> to vector<2x1xf32>
    %364 = vector.shape_cast %363 : vector<2x1xf32> to vector<1x2x1xf32>
    %365 = vector.broadcast %364 : vector<1x2x1xf32> to vector<3x2x256xf32>
    %366 = arith.mulf %365, %361 : vector<3x2x256xf32>
    %367 = arith.addf %352, %366 : vector<3x2x256xf32>
    %cst_80 = arith.constant 0.000000e+00 : f32
    %368 = vector.broadcast %cst_80 : f32 to vector<3x2x1xf32>
    %369 = vector.extract_strided_slice %326 {offsets = [0, 0, 0], sizes = [3, 2, 255], strides = [1, 1, 1]} : vector<3x2x256xf32> to vector<3x2x255xf32>
    %370 = tpu.concatenate %368, %369 in 2 : vector<3x2x1xf32>, vector<3x2x255xf32> -> vector<3x2x256xf32>
    %c1_i32_81 = arith.constant 1 : i32
    %371 = vector.broadcast %c1_i32_81 : i32 to vector<1x1x256xi32>
    %372 = arith.cmpi sge, %52, %371 : vector<1x1x256xi32>
    %cst_82 = arith.constant 0.000000e+00 : f32
    %373 = vector.shape_cast %372 : vector<1x1x256xi1> to vector<1x1x256xi1>
    %374 = vector.broadcast %373 : vector<1x1x256xi1> to vector<3x2x256xi1>
    %375 = vector.broadcast %cst_82 : f32 to vector<3x2x256xf32>
    %376 = arith.select %374, %370, %375 : vector<3x2x256xi1>, vector<3x2x256xf32>
    %377 = vector.extract_strided_slice %327 {offsets = [1, 0, 0, 0], sizes = [1, 1, 2, 1], strides = [1, 1, 1, 1]} : vector<3x3x2x1xf32> to vector<1x1x2x1xf32>
    %378 = vector.shape_cast %377 : vector<1x1x2x1xf32> to vector<2x1xf32>
    %379 = vector.shape_cast %378 : vector<2x1xf32> to vector<1x2x1xf32>
    %380 = vector.broadcast %379 : vector<1x2x1xf32> to vector<3x2x256xf32>
    %381 = arith.mulf %380, %376 : vector<3x2x256xf32>
    %382 = arith.addf %367, %381 : vector<3x2x256xf32>
    %383 = vector.extract_strided_slice %327 {offsets = [1, 1, 0, 0], sizes = [1, 1, 2, 1], strides = [1, 1, 1, 1]} : vector<3x3x2x1xf32> to vector<1x1x2x1xf32>
    %384 = vector.shape_cast %383 : vector<1x1x2x1xf32> to vector<2x1xf32>
    %385 = vector.shape_cast %384 : vector<2x1xf32> to vector<1x2x1xf32>
    %386 = vector.broadcast %385 : vector<1x2x1xf32> to vector<3x2x256xf32>
    %387 = arith.mulf %386, %326 : vector<3x2x256xf32>
    %388 = arith.addf %382, %387 : vector<3x2x256xf32>
    %cst_83 = arith.constant 0.000000e+00 : f32
    %389 = vector.broadcast %cst_83 : f32 to vector<3x2x1xf32>
    %390 = vector.extract_strided_slice %326 {offsets = [0, 0, 1], sizes = [3, 2, 255], strides = [1, 1, 1]} : vector<3x2x256xf32> to vector<3x2x255xf32>
    %391 = tpu.concatenate %390, %389 in 2 : vector<3x2x255xf32>, vector<3x2x1xf32> -> vector<3x2x256xf32>
    %c14_i32_84 = arith.constant 14 : i32
    %392 = vector.broadcast %c14_i32_84 : i32 to vector<1x1x256xi32>
    %393 = arith.cmpi sle, %52, %392 : vector<1x1x256xi32>
    %cst_85 = arith.constant 0.000000e+00 : f32
    %394 = vector.shape_cast %393 : vector<1x1x256xi1> to vector<1x1x256xi1>
    %395 = vector.broadcast %394 : vector<1x1x256xi1> to vector<3x2x256xi1>
    %396 = vector.broadcast %cst_85 : f32 to vector<3x2x256xf32>
    %397 = arith.select %395, %391, %396 : vector<3x2x256xi1>, vector<3x2x256xf32>
    %398 = vector.extract_strided_slice %327 {offsets = [1, 2, 0, 0], sizes = [1, 1, 2, 1], strides = [1, 1, 1, 1]} : vector<3x3x2x1xf32> to vector<1x1x2x1xf32>
    %399 = vector.shape_cast %398 : vector<1x1x2x1xf32> to vector<2x1xf32>
    %400 = vector.shape_cast %399 : vector<2x1xf32> to vector<1x2x1xf32>
    %401 = vector.broadcast %400 : vector<1x2x1xf32> to vector<3x2x256xf32>
    %402 = arith.mulf %401, %397 : vector<3x2x256xf32>
    %403 = arith.addf %388, %402 : vector<3x2x256xf32>
    %cst_86 = arith.constant 0.000000e+00 : f32
    %404 = vector.broadcast %cst_86 : f32 to vector<3x2x15xf32>
    %405 = vector.extract_strided_slice %326 {offsets = [0, 0, 15], sizes = [3, 2, 241], strides = [1, 1, 1]} : vector<3x2x256xf32> to vector<3x2x241xf32>
    %406 = tpu.concatenate %405, %404 in 2 : vector<3x2x241xf32>, vector<3x2x15xf32> -> vector<3x2x256xf32>
    %c1_i32_87 = arith.constant 1 : i32
    %407 = vector.broadcast %c1_i32_87 : i32 to vector<1x1x256xi32>
    %408 = arith.cmpi sge, %52, %407 : vector<1x1x256xi32>
    %cst_88 = arith.constant 0.000000e+00 : f32
    %409 = vector.shape_cast %408 : vector<1x1x256xi1> to vector<1x1x256xi1>
    %410 = vector.broadcast %409 : vector<1x1x256xi1> to vector<3x2x256xi1>
    %411 = vector.broadcast %cst_88 : f32 to vector<3x2x256xf32>
    %412 = arith.select %410, %406, %411 : vector<3x2x256xi1>, vector<3x2x256xf32>
    %413 = vector.extract_strided_slice %327 {offsets = [2, 0, 0, 0], sizes = [1, 1, 2, 1], strides = [1, 1, 1, 1]} : vector<3x3x2x1xf32> to vector<1x1x2x1xf32>
    %414 = vector.shape_cast %413 : vector<1x1x2x1xf32> to vector<2x1xf32>
    %415 = vector.shape_cast %414 : vector<2x1xf32> to vector<1x2x1xf32>
    %416 = vector.broadcast %415 : vector<1x2x1xf32> to vector<3x2x256xf32>
    %417 = arith.mulf %416, %412 : vector<3x2x256xf32>
    %418 = arith.addf %403, %417 : vector<3x2x256xf32>
    %cst_89 = arith.constant 0.000000e+00 : f32
    %419 = vector.broadcast %cst_89 : f32 to vector<3x2x16xf32>
    %420 = vector.extract_strided_slice %326 {offsets = [0, 0, 16], sizes = [3, 2, 240], strides = [1, 1, 1]} : vector<3x2x256xf32> to vector<3x2x240xf32>
    %421 = tpu.concatenate %420, %419 in 2 : vector<3x2x240xf32>, vector<3x2x16xf32> -> vector<3x2x256xf32>
    %422 = vector.extract_strided_slice %327 {offsets = [2, 1, 0, 0], sizes = [1, 1, 2, 1], strides = [1, 1, 1, 1]} : vector<3x3x2x1xf32> to vector<1x1x2x1xf32>
    %423 = vector.shape_cast %422 : vector<1x1x2x1xf32> to vector<2x1xf32>
    %424 = vector.shape_cast %423 : vector<2x1xf32> to vector<1x2x1xf32>
    %425 = vector.broadcast %424 : vector<1x2x1xf32> to vector<3x2x256xf32>
    %426 = arith.mulf %425, %421 : vector<3x2x256xf32>
    %427 = arith.addf %418, %426 : vector<3x2x256xf32>
    %cst_90 = arith.constant 0.000000e+00 : f32
    %428 = vector.broadcast %cst_90 : f32 to vector<3x2x17xf32>
    %429 = vector.extract_strided_slice %326 {offsets = [0, 0, 17], sizes = [3, 2, 239], strides = [1, 1, 1]} : vector<3x2x256xf32> to vector<3x2x239xf32>
    %430 = tpu.concatenate %429, %428 in 2 : vector<3x2x239xf32>, vector<3x2x17xf32> -> vector<3x2x256xf32>
    %c14_i32_91 = arith.constant 14 : i32
    %431 = vector.broadcast %c14_i32_91 : i32 to vector<1x1x256xi32>
    %432 = arith.cmpi sle, %52, %431 : vector<1x1x256xi32>
    %cst_92 = arith.constant 0.000000e+00 : f32
    %433 = vector.shape_cast %432 : vector<1x1x256xi1> to vector<1x1x256xi1>
    %434 = vector.broadcast %433 : vector<1x1x256xi1> to vector<3x2x256xi1>
    %435 = vector.broadcast %cst_92 : f32 to vector<3x2x256xf32>
    %436 = arith.select %434, %430, %435 : vector<3x2x256xi1>, vector<3x2x256xf32>
    %437 = vector.extract_strided_slice %327 {offsets = [2, 2, 0, 0], sizes = [1, 1, 2, 1], strides = [1, 1, 1, 1]} : vector<3x3x2x1xf32> to vector<1x1x2x1xf32>
    %438 = vector.shape_cast %437 : vector<1x1x2x1xf32> to vector<2x1xf32>
    %439 = vector.shape_cast %438 : vector<2x1xf32> to vector<1x2x1xf32>
    %440 = vector.broadcast %439 : vector<1x2x1xf32> to vector<3x2x256xf32>
    %441 = arith.mulf %440, %436 : vector<3x2x256xf32>
    %442 = arith.addf %427, %441 : vector<3x2x256xf32>
    %443 = vector.extract_strided_slice %442 {offsets = [1, 0, 0], sizes = [2, 2, 256], strides = [1, 1, 1]} : vector<3x2x256xf32> to vector<2x2x256xf32>
    %444 = vector.extract_strided_slice %326 {offsets = [0, 0, 0], sizes = [2, 2, 256], strides = [1, 1, 1]} : vector<3x2x256xf32> to vector<2x2x256xf32>
    %445 = arith.subf %443, %444 : vector<2x2x256xf32>
    %446 = vector.extract_strided_slice %445 {offsets = [0, 0, 0], sizes = [1, 2, 256], strides = [1, 1, 1]} : vector<2x2x256xf32> to vector<1x2x256xf32>
    %447 = vector.shape_cast %446 : vector<1x2x256xf32> to vector<2x256xf32>
    %cst_93 = arith.constant dense<0.000000e+00> : vector<2xf32>
    %448 = vector.multi_reduction <add>, %447, %cst_93 [1] : vector<2x256xf32> to vector<2xf32>
    %449 = vector.shape_cast %448 : vector<2xf32> to vector<2x1xf32>
    %cst_94 = arith.constant 2.560000e+02 : f32
    %450 = vector.broadcast %cst_94 : f32 to vector<2x1xf32>
    %451 = arith.divf %449, %450 : vector<2x1xf32>
    %452 = vector.extract_strided_slice %445 {offsets = [1, 0, 0], sizes = [1, 2, 256], strides = [1, 1, 1]} : vector<2x2x256xf32> to vector<1x2x256xf32>
    %453 = vector.shape_cast %452 : vector<1x2x256xf32> to vector<2x256xf32>
    %cst_95 = arith.constant dense<0.000000e+00> : vector<2xf32>
    %454 = vector.multi_reduction <add>, %453, %cst_95 [1] : vector<2x256xf32> to vector<2xf32>
    %455 = vector.shape_cast %454 : vector<2xf32> to vector<2x1xf32>
    %cst_96 = arith.constant 2.560000e+02 : f32
    %456 = vector.broadcast %cst_96 : f32 to vector<2x1xf32>
    %457 = arith.divf %455, %456 : vector<2x1xf32>
    %cst_97 = arith.constant 0.000000e+00 : f32
    %458 = vector.broadcast %cst_97 : f32 to vector<2x1xf32>
    %459 = tpu.concatenate %451, %457, %458 in 1 : vector<2x1xf32>, vector<2x1xf32>, vector<2x1xf32> -> vector<2x3xf32>
    %c0_98 = arith.constant 0 : index
    %c0_99 = arith.constant 0 : index
    %460 = vector.load %arg10[%c0_98, %c0_99] : memref<32x2xf32, #tpu.memory_space<vmem>>, vector<32x2xf32>
    %cst_100 = arith.constant dense<0.000000e+00> : vector<32x3xf32>
    %461 = tpu.matmul %460, %459, %cst_100 {dimension_numbers = #tpu.dot_dimension_numbers<[1], [0], [0], [1], [0, 0, 1, 1], [], []>} : vector<32x2xf32>, vector<2x3xf32>, vector<32x3xf32> -> vector<32x3xf32>
    %462 = arith.negf %461 : vector<32x3xf32>
    %463 = math.exp %462 : vector<32x3xf32>
    %cst_101 = arith.constant 1.000000e+00 : f32
    %464 = vector.broadcast %cst_101 : f32 to vector<32x3xf32>
    %465 = arith.addf %464, %463 : vector<32x3xf32>
    %466 = arith.divf %464, %465 : vector<32x3xf32>
    %467 = vector.extract_strided_slice %258 {offsets = [0, 0], sizes = [1, 256], strides = [1, 1]} : vector<3x256xf32> to vector<1x256xf32>
    %468 = vector.extract_strided_slice %305 {offsets = [0, 0], sizes = [32, 1], strides = [1, 1]} : vector<32x3xf32> to vector<32x1xf32>
    %469 = vector.extract_strided_slice %466 {offsets = [0, 0], sizes = [32, 1], strides = [1, 1]} : vector<32x3xf32> to vector<32x1xf32>
    %470 = arith.addf %468, %469 : vector<32x1xf32>
    %cst_102 = arith.constant 3.000000e+00 : f32
    %471 = vector.broadcast %cst_102 : f32 to vector<32x1xf32>
    %472 = arith.addf %470, %471 : vector<32x1xf32>
    %473 = vector.broadcast %467 : vector<1x256xf32> to vector<32x256xf32>
    %474 = vector.broadcast %472 : vector<32x1xf32> to vector<32x256xf32>
    %475 = arith.addf %473, %474 : vector<32x256xf32>
    %476 = vector.extract_strided_slice %18 {offsets = [0, 0, 0], sizes = [1, 32, 256], strides = [1, 1, 1]} : vector<3x32x256xf32> to vector<1x32x256xf32>
    %477 = vector.shape_cast %476 : vector<1x32x256xf32> to vector<32x256xf32>
    %478 = arith.mulf %477, %475 : vector<32x256xf32>
    %c0_103 = arith.constant 0 : index
    %c0_104 = arith.constant 0 : index
    %c0_105 = arith.constant 0 : index
    %c0_106 = arith.constant 0 : index
    %479 = vector.load %arg11[%c0_103, %c0_104, %c0_105, %c0_106] : memref<1x3x32x256xf32, #tpu.memory_space<vmem>>, vector<1x1x32x256xf32>
    %480 = vector.shape_cast %479 : vector<1x1x32x256xf32> to vector<32x256xf32>
    %481 = vector.shape_cast %478 : vector<32x256xf32> to vector<1x1x32x256xf32>
    tpu.vector_store %arg11[%c0_103, %c0_104, %c0_105, %c0_106], %481 {strides = array<i32>} : memref<1x3x32x256xf32, #tpu.memory_space<vmem>>, vector<1x1x32x256xf32>,
    %482 = vector.extract_strided_slice %258 {offsets = [1, 0], sizes = [1, 256], strides = [1, 1]} : vector<3x256xf32> to vector<1x256xf32>
    %483 = vector.extract_strided_slice %305 {offsets = [0, 1], sizes = [32, 1], strides = [1, 1]} : vector<32x3xf32> to vector<32x1xf32>
    %484 = vector.extract_strided_slice %466 {offsets = [0, 1], sizes = [32, 1], strides = [1, 1]} : vector<32x3xf32> to vector<32x1xf32>
    %485 = arith.addf %483, %484 : vector<32x1xf32>
    %cst_107 = arith.constant 3.000000e+00 : f32
    %486 = vector.broadcast %cst_107 : f32 to vector<32x1xf32>
    %487 = arith.addf %485, %486 : vector<32x1xf32>
    %488 = vector.broadcast %482 : vector<1x256xf32> to vector<32x256xf32>
    %489 = vector.broadcast %487 : vector<32x1xf32> to vector<32x256xf32>
    %490 = arith.addf %488, %489 : vector<32x256xf32>
    %491 = vector.extract_strided_slice %18 {offsets = [1, 0, 0], sizes = [1, 32, 256], strides = [1, 1, 1]} : vector<3x32x256xf32> to vector<1x32x256xf32>
    %492 = vector.shape_cast %491 : vector<1x32x256xf32> to vector<32x256xf32>
    %493 = arith.mulf %492, %490 : vector<32x256xf32>
    %c0_108 = arith.constant 0 : index
    %c1_109 = arith.constant 1 : index
    %c0_110 = arith.constant 0 : index
    %c0_111 = arith.constant 0 : index
    %494 = vector.load %arg11[%c0_108, %c1_109, %c0_110, %c0_111] : memref<1x3x32x256xf32, #tpu.memory_space<vmem>>, vector<1x1x32x256xf32>
    %495 = vector.shape_cast %494 : vector<1x1x32x256xf32> to vector<32x256xf32>
    %496 = vector.shape_cast %493 : vector<32x256xf32> to vector<1x1x32x256xf32>
    tpu.vector_store %arg11[%c0_108, %c1_109, %c0_110, %c0_111], %496 {strides = array<i32>} : memref<1x3x32x256xf32, #tpu.memory_space<vmem>>, vector<1x1x32x256xf32>,
    %497 = vector.extract_strided_slice %258 {offsets = [2, 0], sizes = [1, 256], strides = [1, 1]} : vector<3x256xf32> to vector<1x256xf32>
    %498 = vector.extract_strided_slice %305 {offsets = [0, 2], sizes = [32, 1], strides = [1, 1]} : vector<32x3xf32> to vector<32x1xf32>
    %499 = vector.extract_strided_slice %466 {offsets = [0, 2], sizes = [32, 1], strides = [1, 1]} : vector<32x3xf32> to vector<32x1xf32>
    %500 = arith.addf %498, %499 : vector<32x1xf32>
    %cst_112 = arith.constant 3.000000e+00 : f32
    %501 = vector.broadcast %cst_112 : f32 to vector<32x1xf32>
    %502 = arith.addf %500, %501 : vector<32x1xf32>
    %503 = vector.broadcast %497 : vector<1x256xf32> to vector<32x256xf32>
    %504 = vector.broadcast %502 : vector<32x1xf32> to vector<32x256xf32>
    %505 = arith.addf %503, %504 : vector<32x256xf32>
    %506 = vector.extract_strided_slice %18 {offsets = [2, 0, 0], sizes = [1, 32, 256], strides = [1, 1, 1]} : vector<3x32x256xf32> to vector<1x32x256xf32>
    %507 = vector.shape_cast %506 : vector<1x32x256xf32> to vector<32x256xf32>
    %508 = arith.mulf %507, %505 : vector<32x256xf32>
    %c0_113 = arith.constant 0 : index
    %c2_114 = arith.constant 2 : index
    %c0_115 = arith.constant 0 : index
    %c0_116 = arith.constant 0 : index
    %509 = vector.load %arg11[%c0_113, %c2_114, %c0_115, %c0_116] : memref<1x3x32x256xf32, #tpu.memory_space<vmem>>, vector<1x1x32x256xf32>
    %510 = vector.shape_cast %509 : vector<1x1x32x256xf32> to vector<32x256xf32>
    %511 = vector.shape_cast %508 : vector<32x256xf32> to vector<1x1x32x256xf32>
    tpu.vector_store %arg11[%c0_113, %c2_114, %c0_115, %c0_116], %511 {strides = array<i32>} : memref<1x3x32x256xf32, #tpu.memory_space<vmem>>, vector<1x1x32x256xf32>,
    return
  }
  func.func @transform_0(%arg0: i32) -> (i32, i32, i32, i32) {
    %c0_i32 = arith.constant 0 : i32
    %c0_i32_0 = arith.constant 0 : i32
    %c0_i32_1 = arith.constant 0 : i32
    %c0_i32_2 = arith.constant 0 : i32
    return %arg0, %c0_i32, %c0_i32_0, %c0_i32_1 : i32, i32, i32, i32
  }
  func.func @transform_1(%arg0: i32) -> (i32, i32, i32) {
    %c0_i32 = arith.constant 0 : i32
    %c0_i32_0 = arith.constant 0 : i32
    %c0_i32_1 = arith.constant 0 : i32
    %c0_i32_2 = arith.constant 0 : i32
    return %c0_i32, %c0_i32_0, %c0_i32_1 : i32, i32, i32
  }
  func.func @transform_2(%arg0: i32) -> i32 {
    %c0_i32 = arith.constant 0 : i32
    %c0_i32_0 = arith.constant 0 : i32
    return %c0_i32 : i32
  }
  func.func @transform_3(%arg0: i32) -> (i32, i32) {
    %c0_i32 = arith.constant 0 : i32
    %c0_i32_0 = arith.constant 0 : i32
    %c0_i32_1 = arith.constant 0 : i32
    return %c0_i32, %c0_i32_0 : i32, i32
  }
  func.func @transform_4(%arg0: i32) -> (i32, i32, i32) {
    %c0_i32 = arith.constant 0 : i32
    %c0_i32_0 = arith.constant 0 : i32
    %c0_i32_1 = arith.constant 0 : i32
    %c0_i32_2 = arith.constant 0 : i32
    return %c0_i32, %c0_i32_0, %c0_i32_1 : i32, i32, i32
  }
  func.func @transform_5(%arg0: i32) -> (i32, i32) {
    %c0_i32 = arith.constant 0 : i32
    %c0_i32_0 = arith.constant 0 : i32
    %c0_i32_1 = arith.constant 0 : i32
    return %c0_i32, %c0_i32_0 : i32, i32
  }
  func.func @transform_6(%arg0: i32) -> (i32, i32) {
    %c0_i32 = arith.constant 0 : i32
    %c0_i32_0 = arith.constant 0 : i32
    %c0_i32_1 = arith.constant 0 : i32
    return %c0_i32, %c0_i32_0 : i32, i32
  }
  func.func @transform_7(%arg0: i32) -> (i32, i32) {
    %c0_i32 = arith.constant 0 : i32
    %c0_i32_0 = arith.constant 0 : i32
    %c0_i32_1 = arith.constant 0 : i32
    return %c0_i32, %c0_i32_0 : i32, i32
  }
  func.func @transform_8(%arg0: i32) -> (i32, i32, i32, i32) {
    %c0_i32 = arith.constant 0 : i32
    %c0_i32_0 = arith.constant 0 : i32
    %c0_i32_1 = arith.constant 0 : i32
    %c0_i32_2 = arith.constant 0 : i32
    %c0_i32_3 = arith.constant 0 : i32
    return %c0_i32, %c0_i32_0, %c0_i32_1, %c0_i32_2 : i32, i32, i32, i32
  }
  func.func @transform_9(%arg0: i32) -> (i32, i32) {
    %c0_i32 = arith.constant 0 : i32
    %c0_i32_0 = arith.constant 0 : i32
    %c0_i32_1 = arith.constant 0 : i32
    return %c0_i32, %c0_i32_0 : i32, i32
  }
  func.func @transform_10(%arg0: i32) -> (i32, i32, i32, i32) {
    %c0_i32 = arith.constant 0 : i32
    %c0_i32_0 = arith.constant 0 : i32
    %c0_i32_1 = arith.constant 0 : i32
    %c0_i32_2 = arith.constant 0 : i32
    return %arg0, %c0_i32, %c0_i32_0, %c0_i32_1 : i32, i32, i32, i32
  }
}

</mosaic_0001>

<llo_original>
// kernel: tpu_custom_call.1
$region0: #{tpu_custom_call.1}
  #allocation0 [shape = 'u32[]', space=smem, size = 0x4, offset = 0x4, fixed_abs, tag = 'smem constant byte address 0x4 - core index']
  #allocation1 [shape = 'u32[144,128]{1,0:T(1,128)}', space=vmem, size = 0x12000, scoped, tag = 'internal scratch']
  %s0 = inlined_call_operand.hbm [shape: f32[2,3,32,256], index: 0, kind: input, shape index: {}]
  %s1 = inlined_call_operand.vmem [shape: f32[3,32,1], index: 1, kind: input, shape index: {}]
  %s2 = inlined_call_operand.vmem [shape: f32[27], index: 2, kind: input, shape index: {}]
  %s3 = inlined_call_operand.vmem [shape: f32[2,32], index: 3, kind: input, shape index: {}]
  %s4 = inlined_call_operand.vmem [shape: f32[3,2,2], index: 4, kind: input, shape index: {}]
  %s5 = inlined_call_operand.vmem [shape: f32[32,2], index: 5, kind: input, shape index: {}]
  %s6 = inlined_call_operand.vmem [shape: f32[2,32], index: 6, kind: input, shape index: {}]
  %s7 = inlined_call_operand.vmem [shape: f32[2,1], index: 7, kind: input, shape index: {}]
  %s8 = inlined_call_operand.vmem [shape: f32[3,3,2,1], index: 8, kind: input, shape index: {}]
  %s9 = inlined_call_operand.vmem [shape: f32[32,2], index: 9, kind: input, shape index: {}]
  %s10 = inlined_call_operand.hbm [shape: f32[2,3,32,256], index: 10, kind: output, shape index: {}]
  %s11 = sld [smem:[#allocation0]]
  $region81: #{tpu_custom_call.1} parent=0
    _
  %s13 = ssub.s32 1, %s11
  %s14 = scalar_select 0, %s13, %s11
  $region1: #{tpu_custom_call.1} parent=0
    #allocation2 [shape = 'u8[196608]{0}', space=vmem, size = 0x30000, scoped, tag = 'input window, operand 0']
    #allocation3 [shape = 's32[2]{0}', space=sflag, size = 0x8, scoped, tag = 'scoped memory for tpu_custom_call.1']
    #allocation4 [shape = 's32[2]{0}', space=sflag, size = 0x8, scoped, tag = 'scoped memory for tpu_custom_call.1']
    #allocation5 [shape = 's32[2]{0}', space=sflag, size = 0x8, scoped, tag = 'scoped memory for tpu_custom_call.1']
    #allocation6 [shape = 'u8[512]{0}', space=smem, size = 0x200, scoped, tag = 'input window, operand 2, single buffered']
    #allocation7 [shape = 'u8[196608]{0}', space=vmem, size = 0x30000, scoped, tag = 'output window, operand 0']
    %15 = vsyncpa [#allocation3], 0
    %s16 = scalar_lea.sflag [#allocation3], 1
    %17 = vsyncpa %s16, 0
    %18 = vsyncpa [#allocation5], 0
    %19 = vsyncpa [#allocation4], 0
    %s20 = scalar_lea.sflag [#allocation4], 1
    %21 = vsyncpa %s20, 0
    loop: start=0, step=1, limit=4
    $region2: #{tpu_custom_call.1} parent=1 // loop_pre_header
      _
    $region3: #{tpu_custom_call.1} parent=1 // loop_header
      %s23 = sphi 0, %s27
      %p24 = scmp.ge.s32.totalorder %s23, 4
      %s33 = sphi 0, %s35
      %s36 = sphi 0, %s33
      %s37 = sphi 0, %s36
      %s53 = sphi 0, %s37
      %s57 = sphi 0, %s57
      %s59 = sphi 0, %s57
      %s60 = sphi 0, %s59
      %s74 = sphi 0, %s60
      %s78 = sphi 0, %s78
      %s80 = sphi 0, %s78
      %s81 = sphi 0, %s80
      %s95 = sphi 0, %s81
      %s99 = sphi 0, %s99
      %s101 = sphi 0, %s99
      %s102 = sphi 0, %s101
      %s116 = sphi 0, %s102
      %s120 = sphi 0, %s120
      %s122 = sphi 0, %s120
      %s123 = sphi 0, %s122
      %s137 = sphi 0, %s123
      %s141 = sphi 0, %s141
      %s143 = sphi 0, %s141
      %s144 = sphi 0, %s143
      %s158 = sphi 0, %s144
      %s162 = sphi 0, %s162
      %s164 = sphi 0, %s162
      %s165 = sphi 0, %s164
      %s179 = sphi 0, %s165
      %s183 = sphi 0, %s183
      %s185 = sphi 0, %s183
      %s186 = sphi 0, %s185
      %s200 = sphi 0, %s186
      %s204 = sphi 0, %s204
      %s206 = sphi 0, %s204
      %s207 = sphi 0, %s206
      %s221 = sphi 0, %s207
      %s225 = sphi 0, %s225
      %s227 = sphi 0, %s225
      %s228 = sphi 0, %s227
      %s242 = sphi 0, %s228
      %s248 = sphi 0, %s250
      %s251 = sphi 0, %s248
      %s252 = sphi 0, %s251
      %s268 = sphi 0, %s252
    $region4: #{tpu_custom_call.1} parent=1 // loop_header_branch
      %26 = sbr.rel (%p24) target = $region8
    $region5: #{tpu_custom_call.1} parent=1 // loop_body
      %s28 = ssub.s32 %s23, 1
      %s29 = ssub.s32 %s23, 2
      %s30 = sadd.s32 %s23, 1
      %s31 = ssub.s32 %s23, %s30
      %p32 = scmp.eq.s32.totalorder %s31, 0
      %s34 = sadd.s32 %s33, 1
      %s35 = scalar_select %p32, %s33, %s34
      %p38 = pneg %p32
      %p39 = scmp.eq.s32.totalorder %s23, 1
      %p40 = por %p38, %p39
      %p41 = scmp.ne.s32.totalorder %s33, %s36
      %p42 = scmp.eq.s32.totalorder %s23, 0
      %p43 = por %p41, %p42
      %p44 = scmp.ne.s32.totalorder %s33, %s36
      %p45 = scmp.eq.s32.totalorder %s28, 1
      %p46 = por %p44, %p45
      %p47 = scmp.ne.s32.totalorder %s36, %s37
      %p48 = scmp.eq.s32.totalorder %s28, 0
      %p49 = por %p47, %p48
      %p50 = scmp.ne.s32.totalorder %s36, %s37
      %p51 = scmp.eq.s32.totalorder %s29, 1
      %p52 = por %p50, %p51
      %p54 = scmp.ne.s32.totalorder %s37, %s53
      %p55 = scmp.eq.s32.totalorder %s29, 0
      %p56 = por %p54, %p55
      %s58 = sadd.s32 %s57, 1
      %p61 = scmp.eq.s32.totalorder %s23, 1
      %p62 = scmp.ne.s32.totalorder %s57, %s59
      %p63 = scmp.eq.s32.totalorder %s23, 0
      %p64 = por %p62, %p63
      %p65 = scmp.ne.s32.totalorder %s57, %s59
      %p66 = scmp.eq.s32.totalorder %s28, 1
      %p67 = por %p65, %p66
      %p68 = scmp.ne.s32.totalorder %s59, %s60
      %p69 = scmp.eq.s32.totalorder %s28, 0
      %p70 = por %p68, %p69
      %p71 = scmp.ne.s32.totalorder %s59, %s60
      %p72 = scmp.eq.s32.totalorder %s29, 1
      %p73 = por %p71, %p72
      %p75 = scmp.ne.s32.totalorder %s60, %s74
      %p76 = scmp.eq.s32.totalorder %s29, 0
      %p77 = por %p75, %p76
      %s79 = sadd.s32 %s78, 1
      %p82 = scmp.eq.s32.totalorder %s23, 1
      %p83 = scmp.ne.s32.totalorder %s78, %s80
      %p84 = scmp.eq.s32.totalorder %s23, 0
      %p85 = por %p83, %p84
      %p86 = scmp.ne.s32.totalorder %s78, %s80
      %p87 = scmp.eq.s32.totalorder %s28, 1
      %p88 = por %p86, %p87
      %p89 = scmp.ne.s32.totalorder %s80, %s81
      %p90 = scmp.eq.s32.totalorder %s28, 0
      %p91 = por %p89, %p90
      %p92 = scmp.ne.s32.totalorder %s80, %s81
      %p93 = scmp.eq.s32.totalorder %s29, 1
      %p94 = por %p92, %p93
      %p96 = scmp.ne.s32.totalorder %s81, %s95
      %p97 = scmp.eq.s32.totalorder %s29, 0
      %p98 = por %p96, %p97
      %s100 = sadd.s32 %s99, 1
      %p103 = scmp.eq.s32.totalorder %s23, 1
      %p104 = scmp.ne.s32.totalorder %s99, %s101
      %p105 = scmp.eq.s32.totalorder %s23, 0
      %p106 = por %p104, %p105
      %p107 = scmp.ne.s32.totalorder %s99, %s101
      %p108 = scmp.eq.s32.totalorder %s28, 1
      %p109 = por %p107, %p108
      %p110 = scmp.ne.s32.totalorder %s101, %s102
      %p111 = scmp.eq.s32.totalorder %s28, 0
      %p112 = por %p110, %p111
      %p113 = scmp.ne.s32.totalorder %s101, %s102
      %p114 = scmp.eq.s32.totalorder %s29, 1
      %p115 = por %p113, %p114
      %p117 = scmp.ne.s32.totalorder %s102, %s116
      %p118 = scmp.eq.s32.totalorder %s29, 0
      %p119 = por %p117, %p118
      %s121 = sadd.s32 %s120, 1
      %p124 = scmp.eq.s32.totalorder %s23, 1
      %p125 = scmp.ne.s32.totalorder %s120, %s122
      %p126 = scmp.eq.s32.totalorder %s23, 0
      %p127 = por %p125, %p126
      %p128 = scmp.ne.s32.totalorder %s120, %s122
      %p129 = scmp.eq.s32.totalorder %s28, 1
      %p130 = por %p128, %p129
      %p131 = scmp.ne.s32.totalorder %s122, %s123
      %p132 = scmp.eq.s32.totalorder %s28, 0
      %p133 = por %p131, %p132
      %p134 = scmp.ne.s32.totalorder %s122, %s123
      %p135 = scmp.eq.s32.totalorder %s29, 1
      %p136 = por %p134, %p135
      %p138 = scmp.ne.s32.totalorder %s123, %s137
      %p139 = scmp.eq.s32.totalorder %s29, 0
      %p140 = por %p138, %p139
      %s142 = sadd.s32 %s141, 1
      %p145 = scmp.eq.s32.totalorder %s23, 1
      %p146 = scmp.ne.s32.totalorder %s141, %s143
      %p147 = scmp.eq.s32.totalorder %s23, 0
      %p148 = por %p146, %p147
      %p149 = scmp.ne.s32.totalorder %s141, %s143
      %p150 = scmp.eq.s32.totalorder %s28, 1
      %p151 = por %p149, %p150
      %p152 = scmp.ne.s32.totalorder %s143, %s144
      %p153 = scmp.eq.s32.totalorder %s28, 0
      %p154 = por %p152, %p153
      %p155 = scmp.ne.s32.totalorder %s143, %s144
      %p156 = scmp.eq.s32.totalorder %s29, 1
      %p157 = por %p155, %p156
      %p159 = scmp.ne.s32.totalorder %s144, %s158
      %p160 = scmp.eq.s32.totalorder %s29, 0
      %p161 = por %p159, %p160
      %s163 = sadd.s32 %s162, 1
      %p166 = scmp.eq.s32.totalorder %s23, 1
      %p167 = scmp.ne.s32.totalorder %s162, %s164
      %p168 = scmp.eq.s32.totalorder %s23, 0
      %p169 = por %p167, %p168
      %p170 = scmp.ne.s32.totalorder %s162, %s164
      %p171 = scmp.eq.s32.totalorder %s28, 1
      %p172 = por %p170, %p171
      %p173 = scmp.ne.s32.totalorder %s164, %s165
      %p174 = scmp.eq.s32.totalorder %s28, 0
      %p175 = por %p173, %p174
      %p176 = scmp.ne.s32.totalorder %s164, %s165
      %p177 = scmp.eq.s32.totalorder %s29, 1
      %p178 = por %p176, %p177
      %p180 = scmp.ne.s32.totalorder %s165, %s179
      %p181 = scmp.eq.s32.totalorder %s29, 0
      %p182 = por %p180, %p181
      %s184 = sadd.s32 %s183, 1
      %p187 = scmp.eq.s32.totalorder %s23, 1
      %p188 = scmp.ne.s32.totalorder %s183, %s185
      %p189 = scmp.eq.s32.totalorder %s23, 0
      %p190 = por %p188, %p189
      %p191 = scmp.ne.s32.totalorder %s183, %s185
      %p192 = scmp.eq.s32.totalorder %s28, 1
      %p193 = por %p191, %p192
      %p194 = scmp.ne.s32.totalorder %s185, %s186
      %p195 = scmp.eq.s32.totalorder %s28, 0
      %p196 = por %p194, %p195
      %p197 = scmp.ne.s32.totalorder %s185, %s186
      %p198 = scmp.eq.s32.totalorder %s29, 1
      %p199 = por %p197, %p198
      %p201 = scmp.ne.s32.totalorder %s186, %s200
      %p202 = scmp.eq.s32.totalorder %s29, 0
      %p203 = por %p201, %p202
      %s205 = sadd.s32 %s204, 1
      %p208 = scmp.eq.s32.totalorder %s23, 1
      %p209 = scmp.ne.s32.totalorder %s204, %s206
      %p210 = scmp.eq.s32.totalorder %s23, 0
      %p211 = por %p209, %p210
      %p212 = scmp.ne.s32.totalorder %s204, %s206
      %p213 = scmp.eq.s32.totalorder %s28, 1
      %p214 = por %p212, %p213
      %p215 = scmp.ne.s32.totalorder %s206, %s207
      %p216 = scmp.eq.s32.totalorder %s28, 0
      %p217 = por %p215, %p216
      %p218 = scmp.ne.s32.totalorder %s206, %s207
      %p219 = scmp.eq.s32.totalorder %s29, 1
      %p220 = por %p218, %p219
      %p222 = scmp.ne.s32.totalorder %s207, %s221
      %p223 = scmp.eq.s32.totalorder %s29, 0
      %p224 = por %p222, %p223
      %s226 = sadd.s32 %s225, 1
      %p229 = scmp.eq.s32.totalorder %s23, 1
      %p230 = scmp.ne.s32.totalorder %s225, %s227
      %p231 = scmp.eq.s32.totalorder %s23, 0
      %p232 = por %p230, %p231
      %p233 = scmp.ne.s32.totalorder %s225, %s227
      %p234 = scmp.eq.s32.totalorder %s28, 1
      %p235 = por %p233, %p234
      %p236 = scmp.ne.s32.totalorder %s227, %s228
      %p237 = scmp.eq.s32.totalorder %s28, 0
      %p238 = por %p236, %p237
      %p239 = scmp.ne.s32.totalorder %s227, %s228
      %p240 = scmp.eq.s32.totalorder %s29, 1
      %p241 = por %p239, %p240
      %p243 = scmp.ne.s32.totalorder %s228, %s242
      %p244 = scmp.eq.s32.totalorder %s29, 0
      %p245 = por %p243, %p244
      %s246 = ssub.s32 %s23, %s30
      %p247 = scmp.eq.s32.totalorder %s246, 0
      %s249 = sadd.s32 %s248, 1
      %s250 = scalar_select %p247, %s248, %s249
      %p253 = pneg %p247
      %p254 = scmp.eq.s32.totalorder %s23, 1
      %p255 = por %p253, %p254
      %p256 = scmp.ne.s32.totalorder %s248, %s251
      %p257 = scmp.eq.s32.totalorder %s23, 0
      %p258 = por %p256, %p257
      %p259 = scmp.ne.s32.totalorder %s248, %s251
      %p260 = scmp.eq.s32.totalorder %s28, 1
      %p261 = por %p259, %p260
      %p262 = scmp.ne.s32.totalorder %s251, %s252
      %p263 = scmp.eq.s32.totalorder %s28, 0
      %p264 = por %p262, %p263
      %p265 = scmp.ne.s32.totalorder %s251, %s252
      %p266 = scmp.eq.s32.totalorder %s29, 1
      %p267 = por %p265, %p266
      %p269 = scmp.ne.s32.totalorder %s252, %s268
      %p270 = scmp.eq.s32.totalorder %s29, 0
      %p271 = por %p269, %p270
      %p272 = scmp.le.s32.totalorder 1, %s23
      %p273 = scmp.lt.s32.totalorder %s23, 3
      %p274 = pnand %p272, %p273
      %p275 = pneg %p274
      // Predicated region
      $region9: #{tpu_custom_call.1} parent=5 // pred_check
        _
      $region10: #{tpu_custom_call.1} parent=5 // pred_check_branch
        %277 = sbr.rel (%p274) target = $region12
      $region11: #{tpu_custom_call.1} parent=5 // pred_region
        %s278 = ssub.s32 %s23, 1
        // Predicated region
        $region13: #{tpu_custom_call.1} parent=11 // pred_check
          %p279 = pneg %p70
        $region14: #{tpu_custom_call.1} parent=11 // pred_check_branch
          %281 = sbr.rel (%p279) target = $region16
        $region15: #{tpu_custom_call.1} parent=11 // pred_region
          _
        $region16: #{tpu_custom_call.1} parent=11 // pred_fallthru
          _
        // Predicated region
        $region17: #{tpu_custom_call.1} parent=11 // pred_check
          %p282 = pneg %p91
        $region18: #{tpu_custom_call.1} parent=11 // pred_check_branch
          %284 = sbr.rel (%p282) target = $region20
        $region19: #{tpu_custom_call.1} parent=11 // pred_region
          %s286 = ssub.s32 16, 16
          %287 = vsyncadd [#allocation5], %s286
          %s289 = sshll.u32 %s2, 4
          %s290 = int_to_ptr.vmem [resolvable:$true] %s289
          %292 = dma.vmem_to_smem %s290, 16, [#allocation6], [#allocation5]
        $region20: #{tpu_custom_call.1} parent=11 // pred_fallthru
          _
        // Predicated region
        $region21: #{tpu_custom_call.1} parent=11 // pred_check
          %p293 = pneg %p112
        $region22: #{tpu_custom_call.1} parent=11 // pred_check_branch
          %295 = sbr.rel (%p293) target = $region24
        $region23: #{tpu_custom_call.1} parent=11 // pred_region
          _
        $region24: #{tpu_custom_call.1} parent=11 // pred_fallthru
          _
        // Predicated region
        $region25: #{tpu_custom_call.1} parent=11 // pred_check
          %p296 = pneg %p133
        $region26: #{tpu_custom_call.1} parent=11 // pred_check_branch
          %298 = sbr.rel (%p296) target = $region28
        $region27: #{tpu_custom_call.1} parent=11 // pred_region
          _
        $region28: #{tpu_custom_call.1} parent=11 // pred_fallthru
          _
        // Predicated region
        $region29: #{tpu_custom_call.1} parent=11 // pred_check
          %p299 = pneg %p154
        $region30: #{tpu_custom_call.1} parent=11 // pred_check_branch
          %301 = sbr.rel (%p299) target = $region32
        $region31: #{tpu_custom_call.1} parent=11 // pred_region
          _
        $region32: #{tpu_custom_call.1} parent=11 // pred_fallthru
          _
        // Predicated region
        $region33: #{tpu_custom_call.1} parent=11 // pred_check
          %p302 = pneg %p175
        $region34: #{tpu_custom_call.1} parent=11 // pred_check_branch
          %304 = sbr.rel (%p302) target = $region36
        $region35: #{tpu_custom_call.1} parent=11 // pred_region
          _
        $region36: #{tpu_custom_call.1} parent=11 // pred_fallthru
          _
        // Predicated region
        $region37: #{tpu_custom_call.1} parent=11 // pred_check
          %p305 = pneg %p196
        $region38: #{tpu_custom_call.1} parent=11 // pred_check_branch
          %307 = sbr.rel (%p305) target = $region40
        $region39: #{tpu_custom_call.1} parent=11 // pred_region
          _
        $region40: #{tpu_custom_call.1} parent=11 // pred_fallthru
          _
        // Predicated region
        $region41: #{tpu_custom_call.1} parent=11 // pred_check
          %p308 = pneg %p217
        $region42: #{tpu_custom_call.1} parent=11 // pred_check_branch
          %310 = sbr.rel (%p308) target = $region44
        $region43: #{tpu_custom_call.1} parent=11 // pred_region
          _
        $region44: #{tpu_custom_call.1} parent=11 // pred_fallthru
          _
        // Predicated region
        $region45: #{tpu_custom_call.1} parent=11 // pred_check
          %p311 = pneg %p238
        $region46: #{tpu_custom_call.1} parent=11 // pred_check_branch
          %313 = sbr.rel (%p311) target = $region48
        $region47: #{tpu_custom_call.1} parent=11 // pred_region
          _
        $region48: #{tpu_custom_call.1} parent=11 // pred_fallthru
          _
      $region12: #{tpu_custom_call.1} parent=5 // pred_fallthru
        _
      %p314 = scmp.lt.s32.totalorder %s23, 2
      // Predicated region
      $region49: #{tpu_custom_call.1} parent=5 // pred_check
        %p315 = pneg %p314
      $region50: #{tpu_custom_call.1} parent=5 // pred_check_branch
        %317 = sbr.rel (%p315) target = $region52
      $region51: #{tpu_custom_call.1} parent=5 // pred_region
        // Predicated region
        $region53: #{tpu_custom_call.1} parent=51 // pred_check
          %p318 = pneg %p43
        $region54: #{tpu_custom_call.1} parent=51 // pred_check_branch
          %320 = sbr.rel (%p318) target = $region56
        $region55: #{tpu_custom_call.1} parent=51 // pred_region
          %s321 = sand.u32 %s33, 1
          %s322 = scalar_lea.sflag [#allocation3], %s321
          %s323 = sand.u32 %s33, 1
          %s324 = smul.addr %s323, 192
          %s325 = scalar_lea.vmem [#allocation2], %s324
          %s327 = ssub.s32 3072, 3072
          %328 = vsyncadd %s322, %s327
          %s329 = smul.addr %s23, 24
          %s330 = smul.addr %s329, 128
          %s331 = scalar_lea.hbm %s0, %s330
          %s332 = sshll.u32 %s325, 4
          %s333 = int_to_ptr.vmem [resolvable:$true] %s332
          %338 = dma.hbm_to_vmem [thread:$0]  %s331, 3072, %s333, %s322, 256, 256, 16
        $region56: #{tpu_custom_call.1} parent=51 // pred_fallthru
          _
      $region52: #{tpu_custom_call.1} parent=5 // pred_fallthru
        _
      %p339 = scmp.le.s32.totalorder 1, %s23
      %p340 = scmp.lt.s32.totalorder %s23, 3
      %p341 = pnand %p339, %p340
      %p342 = pneg %p341
      // Predicated region
      $region57: #{tpu_custom_call.1} parent=5 // pred_check
        _
      $region58: #{tpu_custom_call.1} parent=5 // pred_check_branch
        %344 = sbr.rel (%p341) target = $region60
      $region59: #{tpu_custom_call.1} parent=5 // pred_region
        %s345 = ssub.s32 %s23, 1
        %s346 = sand.u32 %s36, 1
        %s347 = scalar_lea.sflag [#allocation3], %s346
        %s348 = sand.u32 %s36, 1
        %s349 = smul.addr %s348, 192
        %s350 = scalar_lea.vmem [#allocation2], %s349
        // Predicated region
        $region61: #{tpu_custom_call.1} parent=59 // pred_check
          %p351 = pneg %p49
        $region62: #{tpu_custom_call.1} parent=59 // pred_check_branch
          %353 = sbr.rel (%p351) target = $region64
        $region63: #{tpu_custom_call.1} parent=59 // pred_region
          %354 = dma.done %s347, 3072
        $region64: #{tpu_custom_call.1} parent=59 // pred_fallthru
          _
        // Predicated region
        $region65: #{tpu_custom_call.1} parent=59 // pred_check
          %p355 = pneg %p91
        $region66: #{tpu_custom_call.1} parent=59 // pred_check_branch
          %357 = sbr.rel (%p355) target = $region68
        $region67: #{tpu_custom_call.1} parent=59 // pred_region
          %358 = dma.done [#allocation5], 16
        $region68: #{tpu_custom_call.1} parent=59 // pred_fallthru
          _
        %359 = sfence
        %s360 = sand.u32 %s36, 1
        %s361 = scalar_lea.sflag [#allocation3], %s360
        %s362 = sand.u32 %s36, 1
        %s363 = smul.addr %s362, 192
        %s364 = scalar_lea.vmem [#allocation2], %s363
        %p365 = pneg %p49
        %p366 = pneg %p46
        %p367 = pneg %p70
        %p368 = pneg %p67
        %p369 = pneg %p91
        %p370 = pneg %p88
        %p371 = pneg %p112
        %p372 = pneg %p109
        %p373 = pneg %p133
        %p374 = pneg %p130
        %p375 = pneg %p154
        %p376 = pneg %p151
        %p377 = pneg %p175
        %p378 = pneg %p172
        %p379 = pneg %p196
        %p380 = pneg %p193
        %p381 = pneg %p217
        %p382 = pneg %p214
        %p383 = pneg %p238
        %p384 = pneg %p235
        %p385 = pneg %p264
        %p386 = pneg %p261
        %s387 = sand.u32 %s251, 1
        %s388 = scalar_lea.sflag [#allocation4], %s387
        %s389 = sand.u32 %s251, 1
        %s390 = smul.addr %s389, 192
        %s391 = scalar_lea.vmem [#allocation7], %s390
        %v392 = vld [vmem:[%s350] sm:$0xff]
        %v393 = vld [vmem:[%s350 + $0x8] sm:$0xff]
        %v394 = vld [vmem:[%s350 + $0x10] sm:$0xff]
        %v395 = vld [vmem:[%s350 + $0x18] sm:$0xff]
        %v396 = vld [vmem:[%s350 + $0x20] sm:$0xff]
        %v397 = vld [vmem:[%s350 + $0x28] sm:$0xff]
        %v398 = vld [vmem:[%s350 + $0x30] sm:$0xff]
        %v399 = vld [vmem:[%s350 + $0x38] sm:$0xff]
        %v400 = vld [vmem:[%s350 + $0x40] sm:$0xff]
        %v401 = vld [vmem:[%s350 + $0x48] sm:$0xff]
        %v402 = vld [vmem:[%s350 + $0x50] sm:$0xff]
        %v403 = vld [vmem:[%s350 + $0x58] sm:$0xff]
        %v404 = vld [vmem:[%s350 + $0x60] sm:$0xff]
        %v405 = vld [vmem:[%s350 + $0x68] sm:$0xff]
        %v406 = vld [vmem:[%s350 + $0x70] sm:$0xff]
        %v407 = vld [vmem:[%s350 + $0x78] sm:$0xff]
        %v408 = vld [vmem:[%s350 + $0x80] sm:$0xff]
        %v409 = vld [vmem:[%s350 + $0x88] sm:$0xff]
        %v410 = vld [vmem:[%s350 + $0x90] sm:$0xff]
        %v411 = vld [vmem:[%s350 + $0x98] sm:$0xff]
        %v412 = vld [vmem:[%s350 + $0xa0] sm:$0xff]
        %v413 = vld [vmem:[%s350 + $0xa8] sm:$0xff]
        %v414 = vld [vmem:[%s350 + $0xb0] sm:$0xff]
        %v415 = vld [vmem:[%s350 + $0xb8] sm:$0xff]
        %v416 = vld [vmem:[%s1] sm:$0xff]
        %v417 = vld [vmem:[%s1 + $0x8] sm:$0xff]
        %v418 = vld [vmem:[%s1 + $0x10] sm:$0xff]
        %v419 = vld [vmem:[%s1 + $0x18] sm:$0xff]
        %v420 = vld [vmem:[%s1 + $0x20] sm:$0xff]
        %v421 = vld [vmem:[%s1 + $0x28] sm:$0xff]
        %v422 = vld [vmem:[%s1 + $0x30] sm:$0xff]
        %v423 = vld [vmem:[%s1 + $0x38] sm:$0xff]
        %v424 = vld [vmem:[%s1 + $0x40] sm:$0xff]
        %v425 = vld [vmem:[%s1 + $0x48] sm:$0xff]
        %v426 = vld [vmem:[%s1 + $0x50] sm:$0xff]
        %v427 = vld [vmem:[%s1 + $0x58] sm:$0xff]
        %429 = vset.pattern.permute.xlu0 0
        %430 = vperm.xlu0 %429, %v416
        %v431 = vpop.permute.xlu0 %430
        %434 = vset.pattern.permute.xlu0 0
        %435 = vperm.xlu0 %434, %v417
        %v436 = vpop.permute.xlu0 %435
        %439 = vset.pattern.permute.xlu0 0
        %440 = vperm.xlu0 %439, %v418
        %v441 = vpop.permute.xlu0 %440
        %444 = vset.pattern.permute.xlu0 0
        %445 = vperm.xlu0 %444, %v419
        %v446 = vpop.permute.xlu0 %445
        %v448 = vmul.f32 %v431, 0.0
        %v449 = vmul.f32 %v436, 0.0
        %v450 = vmul.f32 %v441, 0.0
        %v451 = vmul.f32 %v446, 0.0
        %v452 = vmul.f32 %v431, %v392
        %v453 = vmul.f32 %v431, %v393
        %v454 = vmul.f32 %v436, %v394
        %v455 = vmul.f32 %v436, %v395
        %v456 = vmul.f32 %v441, %v396
        %v457 = vmul.f32 %v441, %v397
        %v458 = vmul.f32 %v446, %v398
        %v459 = vmul.f32 %v446, %v399
        %v460 = vmul.f32 %v431, %v400
        %v461 = vmul.f32 %v431, %v401
        %v462 = vmul.f32 %v436, %v402
        %v463 = vmul.f32 %v436, %v403
        %v464 = vmul.f32 %v441, %v404
        %v465 = vmul.f32 %v441, %v405
        %v466 = vmul.f32 %v446, %v406
        %v467 = vmul.f32 %v446, %v407
        %469 = vset.pattern.permute.xlu0 0
        %470 = vperm.xlu0 %469, %v420
        %v471 = vpop.permute.xlu0 %470
        %474 = vset.pattern.permute.xlu0 0
        %475 = vperm.xlu0 %474, %v421
        %v476 = vpop.permute.xlu0 %475
        %479 = vset.pattern.permute.xlu0 0
        %480 = vperm.xlu0 %479, %v422
        %v481 = vpop.permute.xlu0 %480
        %484 = vset.pattern.permute.xlu0 0
        %485 = vperm.xlu0 %484, %v423
        %v486 = vpop.permute.xlu0 %485
        %v488 = vmul.f32 %v471, %v392
        %v489 = vmul.f32 %v471, %v393
        %v490 = vmul.f32 %v476, %v394
        %v491 = vmul.f32 %v476, %v395
        %v492 = vmul.f32 %v481, %v396
        %v493 = vmul.f32 %v481, %v397
        %v494 = vmul.f32 %v486, %v398
        %v495 = vmul.f32 %v486, %v399
        %v496 = vmul.f32 %v471, %v400
        %v497 = vmul.f32 %v471, %v401
        %v498 = vmul.f32 %v476, %v402
        %v499 = vmul.f32 %v476, %v403
        %v500 = vmul.f32 %v481, %v404
        %v501 = vmul.f32 %v481, %v405
        %v502 = vmul.f32 %v486, %v406
        %v503 = vmul.f32 %v486, %v407
        %v504 = vmul.f32 %v471, %v408
        %v505 = vmul.f32 %v471, %v409
        %v506 = vmul.f32 %v476, %v410
        %v507 = vmul.f32 %v476, %v411
        %v508 = vmul.f32 %v481, %v412
        %v509 = vmul.f32 %v481, %v413
        %v510 = vmul.f32 %v486, %v414
        %v511 = vmul.f32 %v486, %v415
        %v512 = vadd.f32 %v448, %v488
        %v513 = vadd.f32 %v448, %v489
        %v514 = vadd.f32 %v449, %v490
        %v515 = vadd.f32 %v449, %v491
        %v516 = vadd.f32 %v450, %v492
        %v517 = vadd.f32 %v450, %v493
        %v518 = vadd.f32 %v451, %v494
        %v519 = vadd.f32 %v451, %v495
        %v520 = vadd.f32 %v452, %v496
        %v521 = vadd.f32 %v453, %v497
        %v522 = vadd.f32 %v454, %v498
        %v523 = vadd.f32 %v455, %v499
        %v524 = vadd.f32 %v456, %v500
        %v525 = vadd.f32 %v457, %v501
        %v526 = vadd.f32 %v458, %v502
        %v527 = vadd.f32 %v459, %v503
        %v528 = vadd.f32 %v460, %v504
        %v529 = vadd.f32 %v461, %v505
        %v530 = vadd.f32 %v462, %v506
        %v531 = vadd.f32 %v463, %v507
        %v532 = vadd.f32 %v464, %v508
        %v533 = vadd.f32 %v465, %v509
        %v534 = vadd.f32 %v466, %v510
        %v535 = vadd.f32 %v467, %v511
        %537 = vset.pattern.permute.xlu0 0
        %538 = vperm.xlu0 %537, %v424
        %v539 = vpop.permute.xlu0 %538
        %542 = vset.pattern.permute.xlu0 0
        %543 = vperm.xlu0 %542, %v425
        %v544 = vpop.permute.xlu0 %543
        %547 = vset.pattern.permute.xlu0 0
        %548 = vperm.xlu0 %547, %v426
        %v549 = vpop.permute.xlu0 %548
        %552 = vset.pattern.permute.xlu0 0
        %553 = vperm.xlu0 %552, %v427
        %v554 = vpop.permute.xlu0 %553
        %v556 = vmul.f32 %v539, %v400
        %v557 = vmul.f32 %v539, %v401
        %v558 = vmul.f32 %v544, %v402
        %v559 = vmul.f32 %v544, %v403
        %v560 = vmul.f32 %v549, %v404
        %v561 = vmul.f32 %v549, %v405
        %v562 = vmul.f32 %v554, %v406
        %v563 = vmul.f32 %v554, %v407
        %v564 = vmul.f32 %v539, %v408
        %v565 = vmul.f32 %v539, %v409
        %v566 = vmul.f32 %v544, %v410
        %v567 = vmul.f32 %v544, %v411
        %v568 = vmul.f32 %v549, %v412
        %v569 = vmul.f32 %v549, %v413
        %v570 = vmul.f32 %v554, %v414
        %v571 = vmul.f32 %v554, %v415
        %v572 = vmul.f32 %v539, 0.0
        %v573 = vmul.f32 %v544, 0.0
        %v574 = vmul.f32 %v549, 0.0
        %v575 = vmul.f32 %v554, 0.0
        %v576 = vadd.f32 %v512, %v556
        %v577 = vadd.f32 %v513, %v557
        %v578 = vadd.f32 %v514, %v558
        %v579 = vadd.f32 %v515, %v559
        %v580 = vadd.f32 %v516, %v560
        %v581 = vadd.f32 %v517, %v561
        %v582 = vadd.f32 %v518, %v562
        %v583 = vadd.f32 %v519, %v563
        %v584 = vadd.f32 %v520, %v564
        %v585 = vadd.f32 %v521, %v565
        %v586 = vadd.f32 %v522, %v566
        %v587 = vadd.f32 %v523, %v567
        %v588 = vadd.f32 %v524, %v568
        %v589 = vadd.f32 %v525, %v569
        %v590 = vadd.f32 %v526, %v570
        %v591 = vadd.f32 %v527, %v571
        %v592 = vadd.f32 %v528, %v572
        %v593 = vadd.f32 %v529, %v572
        %v594 = vadd.f32 %v530, %v573
        %v595 = vadd.f32 %v531, %v573
        %v596 = vadd.f32 %v532, %v574
        %v597 = vadd.f32 %v533, %v574
        %v598 = vadd.f32 %v534, %v575
        %v599 = vadd.f32 %v535, %v575
        %v600 = vlaneseq
        %v601 = vand.u32 %v600, 127
        %v602 = vadd.s32 %v601, 128
        %vm603 = vcmp.lt.s32.totalorder %v601, 0
        %v604 = vsub.s32 0, %v601
        %v605 = vsel %vm603, %v604, %v601
        %v606 = vshrl.u32 %v605, 4
        %v607 = vand.u32 %v605, 15
        %v608 = vsub.s32 0, %v607
        %v609 = vsel %vm603, %v608, %v607
        %vm610 = vcmp.lt.s32.totalorder %v602, 0
        %v611 = vsub.s32 0, %v602
        %v612 = vsel %vm610, %v611, %v602
        %v613 = vshrl.u32 %v612, 4
        %v614 = vand.u32 %v612, 15
        %v615 = vsub.s32 0, %v614
        %v616 = vsel %vm610, %v615, %v614
        %vm617 = vcmp.ne.s32.totalorder %v609, 0
        %vm618 = vcmp.ne.s32.totalorder %v616, 0
        %vm619 = vcmp.lt.s32.totalorder %v609, 0
        %vm620 = vcmp.lt.s32.totalorder %v616, 0
        %vm621 = vmand %vm619, %vm617
        %vm622 = vmand %vm620, %vm618
        %v623 = vadd.s32 %v609, 16
        %v624 = vadd.s32 %v616, 16
        %v625 = vsel %vm621, %v623, %v609
        %v626 = vsel %vm622, %v624, %v616
        %v627 = vadd.f32 %v576, %v578
        %v628 = vadd.f32 %v627, %v580
        %v629 = vadd.f32 %v628, %v582
        %v630 = vrot.slane %v629, 4
        %v631 = vadd.f32 %v629, %v630
        %v632 = vrot.slane %v631, 2
        %v633 = vadd.f32 %v631, %v632
        %v634 = vrot.slane %v633, 1
        %v635 = vadd.f32 %v633, %v634
        %v636 = vadd.f32 %v577, %v579
        %v637 = vadd.f32 %v636, %v581
        %v638 = vadd.f32 %v637, %v583
        %v639 = vrot.slane %v638, 4
        %v640 = vadd.f32 %v638, %v639
        %v641 = vrot.slane %v640, 2
        %v642 = vadd.f32 %v640, %v641
        %v643 = vrot.slane %v642, 1
        %v644 = vadd.f32 %v642, %v643
        %v645 = vadd.f32 %v584, %v586
        %v646 = vadd.f32 %v645, %v588
        %v647 = vadd.f32 %v646, %v590
        %v648 = vrot.slane %v647, 4
        %v649 = vadd.f32 %v647, %v648
        %v650 = vrot.slane %v649, 2
        %v651 = vadd.f32 %v649, %v650
        %v652 = vrot.slane %v651, 1
        %v653 = vadd.f32 %v651, %v652
        %v654 = vadd.f32 %v585, %v587
        %v655 = vadd.f32 %v654, %v589
        %v656 = vadd.f32 %v655, %v591
        %v657 = vrot.slane %v656, 4
        %v658 = vadd.f32 %v656, %v657
        %v659 = vrot.slane %v658, 2
        %v660 = vadd.f32 %v658, %v659
        %v661 = vrot.slane %v660, 1
        %v662 = vadd.f32 %v660, %v661
        %v663 = vadd.f32 %v592, %v594
        %v664 = vadd.f32 %v663, %v596
        %v665 = vadd.f32 %v664, %v598
        %v666 = vrot.slane %v665, 4
        %v667 = vadd.f32 %v665, %v666
        %v668 = vrot.slane %v667, 2
        %v669 = vadd.f32 %v667, %v668
        %v670 = vrot.slane %v669, 1
        %v671 = vadd.f32 %v669, %v670
        %v672 = vadd.f32 %v593, %v595
        %v673 = vadd.f32 %v672, %v597
        %v674 = vadd.f32 %v673, %v599
        %v675 = vrot.slane %v674, 4
        %v676 = vadd.f32 %v674, %v675
        %v677 = vrot.slane %v676, 2
        %v678 = vadd.f32 %v676, %v677
        %v679 = vrot.slane %v678, 1
        %v680 = vadd.f32 %v678, %v679
        %v681 = vrcp.pop 32.0
        %v682 = vmul.f32 %v635, %v681
        %v683 = vmul.f32 %v644, %v681
        %v684 = vmul.f32 %v653, %v681
        %v685 = vmul.f32 %v662, %v681
        %v686 = vmul.f32 %v671, %v681
        %v687 = vmul.f32 %v680, %v681
        %vm694 = vcmask 1042434
        %v695 = vsel %vm694, %v684, %v682
        %vm696 = vcmask 1043459
        %v697 = vsel %vm696, %v686, %v695
        %v698 = vsel %vm694, %v685, %v683
        %v699 = vsel %vm696, %v687, %v698
        %vm702 = vcmask 1040384
        %v703 = vsel %vm702, 0.0, %v697
        %v704 = vsel %vm702, 0.0, %v699
        %vm705 = vcmask 1043456
        %v706 = vsel %vm705, %v703, 0.0
        %v707 = vsel %vm705, %v704, 0.0
        %710 = vrot.lane.b32.xlu0 %v706, 17
        %v711 = vpop.permute.xlu0 %710
        %712 = vrot.lane.b32.xlu0 %v707, 17
        %v713 = vpop.permute.xlu0 %712
        %vm714 = vcmask 138240
        %v715 = vsel %vm714, %v711, %v713
        %v718 = vsel %vm714, 0.0, %v711
        %vm719 = vcmp.ge.s32.totalorder %v625, 1
        %vm720 = vcmp.ge.s32.totalorder %v626, 1
        %v721 = vsel %vm719, 1, 0
        %v722 = vsel %vm720, 1, 0
        %vm723 = vcmp.eq.s32.totalorder %v721, 1
        %vm724 = vcmp.eq.s32.totalorder %v722, 1
        %v725 = vsel %vm723, %v718, 0.0
        %v726 = vsel %vm724, %v715, 0.0
        %s727 = sld [smem:[#allocation6]]
        %v728 = vstv %s727
        %v729 = vmul.f32 %v728, %v725
        %v730 = vmul.f32 %v728, %v726
        %v731 = vadd.f32 %v729, 0.0
        %v732 = vadd.f32 %v730, 0.0
        %s733 = sld [smem:[#allocation6 + $0x9]]
        %v734 = vstv %s733
        %v735 = vmul.f32 %v734, %v725
        %v736 = vmul.f32 %v734, %v726
        %v739 = vrot.slane %v735, 1
        %v740 = vrot.slane %v736, 1
        %v743 = vadd.f32 %v731, %v739
        %v744 = vadd.f32 %v732, %v740
        %s745 = sld [smem:[#allocation6 + $0x12]]
        %v746 = vstv %s745
        %v747 = vmul.f32 %v746, %v725
        %v748 = vmul.f32 %v746, %v726
        %v751 = vrot.slane %v747, 2
        %v752 = vrot.slane %v748, 2
        %v755 = vadd.f32 %v743, %v751
        %v756 = vadd.f32 %v744, %v752
        %757 = vrot.lane.b32.xlu0 %v706, 16
        %v758 = vpop.permute.xlu0 %757
        %759 = vrot.lane.b32.xlu0 %v707, 16
        %v760 = vpop.permute.xlu0 %759
        %vm761 = vcmask 130048
        %v762 = vsel %vm761, %v758, %v760
        %v765 = vsel %vm761, 0.0, %v758
        %s766 = sld [smem:[#allocation6 + $0x1]]
        %v767 = vstv %s766
        %v768 = vmul.f32 %v767, %v765
        %v769 = vmul.f32 %v767, %v762
        %v770 = vadd.f32 %v755, %v768
        %v771 = vadd.f32 %v756, %v769
        %s772 = sld [smem:[#allocation6 + $0xa]]
        %v773 = vstv %s772
        %v774 = vmul.f32 %v773, %v765
        %v775 = vmul.f32 %v773, %v762
        %v778 = vrot.slane %v774, 1
        %v779 = vrot.slane %v775, 1
        %v782 = vadd.f32 %v770, %v778
        %v783 = vadd.f32 %v771, %v779
        %s784 = sld [smem:[#allocation6 + $0x13]]
        %v785 = vstv %s784
        %v786 = vmul.f32 %v785, %v765
        %v787 = vmul.f32 %v785, %v762
        %v790 = vrot.slane %v786, 2
        %v791 = vrot.slane %v787, 2
        %v794 = vadd.f32 %v782, %v790
        %v795 = vadd.f32 %v783, %v791
        %796 = vrot.lane.b32.xlu0 %v706, 15
        %v797 = vpop.permute.xlu0 %796
        %798 = vrot.lane.b32.xlu0 %v707, 15
        %v799 = vpop.permute.xlu0 %798
        %vm800 = vcmask 121856
        %v801 = vsel %vm800, %v797, %v799
        %v804 = vsel %vm800, 0.0, %v797
        %vm805 = vcmp.le.s32.totalorder %v625, 14
        %vm806 = vcmp.le.s32.totalorder %v626, 14
        %v807 = vsel %vm805, 1, 0
        %v808 = vsel %vm806, 1, 0
        %vm809 = vcmp.eq.s32.totalorder %v807, 1
        %vm810 = vcmp.eq.s32.totalorder %v808, 1
        %v811 = vsel %vm809, %v804, 0.0
        %v812 = vsel %vm810, %v801, 0.0
        %s813 = sld [smem:[#allocation6 + $0x2]]
        %v814 = vstv %s813
        %v815 = vmul.f32 %v814, %v811
        %v816 = vmul.f32 %v814, %v812
        %v817 = vadd.f32 %v794, %v815
        %v818 = vadd.f32 %v795, %v816
        %s819 = sld [smem:[#allocation6 + $0xb]]
        %v820 = vstv %s819
        %v821 = vmul.f32 %v820, %v811
        %v822 = vmul.f32 %v820, %v812
        %v825 = vrot.slane %v821, 1
        %v826 = vrot.slane %v822, 1
        %v829 = vadd.f32 %v817, %v825
        %v830 = vadd.f32 %v818, %v826
        %s831 = sld [smem:[#allocation6 + $0x14]]
        %v832 = vstv %s831
        %v833 = vmul.f32 %v832, %v811
        %v834 = vmul.f32 %v832, %v812
        %v837 = vrot.slane %v833, 2
        %v838 = vrot.slane %v834, 2
        %v841 = vadd.f32 %v829, %v837
        %v842 = vadd.f32 %v830, %v838
        %843 = vrot.lane.b32.xlu0 %v706, 1
        %v844 = vpop.permute.xlu0 %843
        %845 = vrot.lane.b32.xlu0 %v707, 1
        %v846 = vpop.permute.xlu0 %845
        %vm847 = vcmask 7168
        %v848 = vsel %vm847, %v844, %v846
        %v851 = vsel %vm847, 0.0, %v844
        %v852 = vsel %vm723, %v851, 0.0
        %v853 = vsel %vm724, %v848, 0.0
        %s854 = sld [smem:[#allocation6 + $0x3]]
        %v855 = vstv %s854
        %v856 = vmul.f32 %v855, %v852
        %v857 = vmul.f32 %v855, %v853
        %v858 = vadd.f32 %v841, %v856
        %v859 = vadd.f32 %v842, %v857
        %s860 = sld [smem:[#allocation6 + $0xc]]
        %v861 = vstv %s860
        %v862 = vmul.f32 %v861, %v852
        %v863 = vmul.f32 %v861, %v853
        %v866 = vrot.slane %v862, 1
        %v867 = vrot.slane %v863, 1
        %v870 = vadd.f32 %v858, %v866
        %v871 = vadd.f32 %v859, %v867
        %s872 = sld [smem:[#allocation6 + $0x15]]
        %v873 = vstv %s872
        %v874 = vmul.f32 %v873, %v852
        %v875 = vmul.f32 %v873, %v853
        %v878 = vrot.slane %v874, 2
        %v879 = vrot.slane %v875, 2
        %v882 = vadd.f32 %v870, %v878
        %v883 = vadd.f32 %v871, %v879
        %s884 = sld [smem:[#allocation6 + $0x4]]
        %v885 = vstv %s884
        %v886 = vmul.f32 %v885, %v706
        %v887 = vmul.f32 %v885, %v707
        %v888 = vadd.f32 %v882, %v886
        %v889 = vadd.f32 %v883, %v887
        %s890 = sld [smem:[#allocation6 + $0xd]]
        %v891 = vstv %s890
        %v892 = vmul.f32 %v891, %v706
        %v893 = vmul.f32 %v891, %v707
        %v896 = vrot.slane %v892, 1
        %v897 = vrot.slane %v893, 1
        %v900 = vadd.f32 %v888, %v896
        %v901 = vadd.f32 %v889, %v897
        %s902 = sld [smem:[#allocation6 + $0x16]]
        %v903 = vstv %s902
        %v904 = vmul.f32 %v903, %v706
        %v905 = vmul.f32 %v903, %v707
        %v908 = vrot.slane %v904, 2
        %v909 = vrot.slane %v905, 2
        %v912 = vadd.f32 %v900, %v908
        %v913 = vadd.f32 %v901, %v909
        %914 = vrot.lane.b32.xlu0 %v706, 127
        %v915 = vpop.permute.xlu0 %914
        %916 = vrot.lane.b32.xlu0 %v707, 127
        %v917 = vpop.permute.xlu0 %916
        %vm918 = vcmask 1039360
        %v919 = vsel %vm918, %v915, %v917
        %v922 = vsel %vm918, %v917, 0.0
        %v923 = vsel %vm809, %v919, 0.0
        %v924 = vsel %vm810, %v922, 0.0
        %s925 = sld [smem:[#allocation6 + $0x5]]
        %v926 = vstv %s925
        %v927 = vmul.f32 %v926, %v923
        %v928 = vmul.f32 %v926, %v924
        %v929 = vadd.f32 %v912, %v927
        %v930 = vadd.f32 %v913, %v928
        %s931 = sld [smem:[#allocation6 + $0xe]]
        %v932 = vstv %s931
        %v933 = vmul.f32 %v932, %v923
        %v934 = vmul.f32 %v932, %v924
        %v937 = vrot.slane %v933, 1
        %v938 = vrot.slane %v934, 1
        %v941 = vadd.f32 %v929, %v937
        %v942 = vadd.f32 %v930, %v938
        %s943 = sld [smem:[#allocation6 + $0x17]]
        %v944 = vstv %s943
        %v945 = vmul.f32 %v944, %v923
        %v946 = vmul.f32 %v944, %v924
        %v949 = vrot.slane %v945, 2
        %v950 = vrot.slane %v946, 2
        %v953 = vadd.f32 %v941, %v949
        %v954 = vadd.f32 %v942, %v950
        %955 = vrot.lane.b32.xlu0 %v706, 113
        %v956 = vpop.permute.xlu0 %955
        %957 = vrot.lane.b32.xlu0 %v707, 113
        %v958 = vpop.permute.xlu0 %957
        %vm959 = vcmask 924672
        %v960 = vsel %vm959, %v956, %v958
        %v963 = vsel %vm959, %v958, 0.0
        %v964 = vsel %vm723, %v960, 0.0
        %v965 = vsel %vm724, %v963, 0.0
        %s966 = sld [smem:[#allocation6 + $0x6]]
        %v967 = vstv %s966
        %v968 = vmul.f32 %v967, %v964
        %v969 = vmul.f32 %v967, %v965
        %v970 = vadd.f32 %v953, %v968
        %v971 = vadd.f32 %v954, %v969
        %s972 = sld [smem:[#allocation6 + $0xf]]
        %v973 = vstv %s972
        %v974 = vmul.f32 %v973, %v964
        %v975 = vmul.f32 %v973, %v965
        %v978 = vrot.slane %v974, 1
        %v979 = vrot.slane %v975, 1
        %v982 = vadd.f32 %v970, %v978
        %v983 = vadd.f32 %v971, %v979
        %s984 = sld [smem:[#allocation6 + $0x18]]
        %v985 = vstv %s984
        %v986 = vmul.f32 %v985, %v964
        %v987 = vmul.f32 %v985, %v965
        %v990 = vrot.slane %v986, 2
        %v991 = vrot.slane %v987, 2
        %v994 = vadd.f32 %v982, %v990
        %v995 = vadd.f32 %v983, %v991
        %996 = vrot.lane.b32.xlu0 %v706, 112
        %v997 = vpop.permute.xlu0 %996
        %998 = vrot.lane.b32.xlu0 %v707, 112
        %v999 = vpop.permute.xlu0 %998
        %vm1000 = vcmask 916480
        %v1001 = vsel %vm1000, %v997, %v999
        %v1004 = vsel %vm1000, %v999, 0.0
        %s1005 = sld [smem:[#allocation6 + $0x7]]
        %v1006 = vstv %s1005
        %v1007 = vmul.f32 %v1006, %v1001
        %v1008 = vmul.f32 %v1006, %v1004
        %v1009 = vadd.f32 %v994, %v1007
        %v1010 = vadd.f32 %v995, %v1008
        %s1011 = sld [smem:[#allocation6 + $0x10]]
        %v1012 = vstv %s1011
        %v1013 = vmul.f32 %v1012, %v1001
        %v1014 = vmul.f32 %v1012, %v1004
        %v1017 = vrot.slane %v1013, 1
        %v1018 = vrot.slane %v1014, 1
        %v1021 = vadd.f32 %v1009, %v1017
        %v1022 = vadd.f32 %v1010, %v1018
        %s1023 = sld [smem:[#allocation6 + $0x19]]
        %v1024 = vstv %s1023
        %v1025 = vmul.f32 %v1024, %v1001
        %v1026 = vmul.f32 %v1024, %v1004
        %v1029 = vrot.slane %v1025, 2
        %v1030 = vrot.slane %v1026, 2
        %v1033 = vadd.f32 %v1021, %v1029
        %v1034 = vadd.f32 %v1022, %v1030
        %1035 = vrot.lane.b32.xlu0 %v706, 111
        %v1036 = vpop.permute.xlu0 %1035
        %1037 = vrot.lane.b32.xlu0 %v707, 111
        %v1038 = vpop.permute.xlu0 %1037
        %vm1039 = vcmask 908288
        %v1040 = vsel %vm1039, %v1036, %v1038
        %v1043 = vsel %vm1039, %v1038, 0.0
        %v1044 = vsel %vm809, %v1040, 0.0
        %v1045 = vsel %vm810, %v1043, 0.0
        %s1046 = sld [smem:[#allocation6 + $0x8]]
        %v1047 = vstv %s1046
        %v1048 = vmul.f32 %v1047, %v1044
        %v1049 = vmul.f32 %v1047, %v1045
        %v1050 = vadd.f32 %v1033, %v1048
        %v1051 = vadd.f32 %v1034, %v1049
        %s1052 = sld [smem:[#allocation6 + $0x11]]
        %v1053 = vstv %s1052
        %v1054 = vmul.f32 %v1053, %v1044
        %v1055 = vmul.f32 %v1053, %v1045
        %v1058 = vrot.slane %v1054, 1
        %v1059 = vrot.slane %v1055, 1
        %v1062 = vadd.f32 %v1050, %v1058
        %v1063 = vadd.f32 %v1051, %v1059
        %s1064 = sld [smem:[#allocation6 + $0x1a]]
        %v1065 = vstv %s1064
        %v1066 = vmul.f32 %v1065, %v1044
        %v1067 = vmul.f32 %v1065, %v1045
        %v1070 = vrot.slane %v1066, 2
        %v1071 = vrot.slane %v1067, 2
        %v1074 = vadd.f32 %v1062, %v1070
        %v1075 = vadd.f32 %v1063, %v1071
        %v1076 = vxor.u32 %v1074, 2147483648
        %v1077 = vxor.u32 %v1075, 2147483648
        %v1078 = vmul.f32 %v1076, 1.442695
        %v1079 = vpow.pop %v1078
        %v1080 = vmul.f32 %v1077, 1.442695
        %v1081 = vpow.pop %v1080
        %v1082 = vadd.f32 %v1079, 1.0
        %v1083 = vadd.f32 %v1081, 1.0
        %v1084 = vrcp.pop %v1082
        %v1085 = vmul.f32 1.0, %v1084
        %v1086 = vrcp.pop %v1083
        %v1087 = vmul.f32 1.0, %v1086
        %v1088 = vadd.f32 %v576, %v577
        %1089 = vadd.xlane.f32.xlu0 %v1088
        %v1090 = vpop.xlane.xlu0 %1089
        %v1091 = vadd.f32 %v578, %v579
        %1092 = vadd.xlane.f32.xlu0 %v1091
        %v1093 = vpop.xlane.xlu0 %1092
        %v1094 = vadd.f32 %v580, %v581
        %1095 = vadd.xlane.f32.xlu0 %v1094
        %v1096 = vpop.xlane.xlu0 %1095
        %v1097 = vadd.f32 %v582, %v583
        %1098 = vadd.xlane.f32.xlu0 %v1097
        %v1099 = vpop.xlane.xlu0 %1098
        %v1100 = vrcp.pop 256.0
        %v1101 = vmul.f32 %v1090, %v1100
        %v1102 = vmul.f32 %v1093, %v1100
        %v1103 = vmul.f32 %v1096, %v1100
        %v1104 = vmul.f32 %v1099, %v1100
        %v1105 = vadd.f32 %v584, %v585
        %1106 = vadd.xlane.f32.xlu0 %v1105
        %v1107 = vpop.xlane.xlu0 %1106
        %v1108 = vadd.f32 %v586, %v587
        %1109 = vadd.xlane.f32.xlu0 %v1108
        %v1110 = vpop.xlane.xlu0 %1109
        %v1111 = vadd.f32 %v588, %v589
        %1112 = vadd.xlane.f32.xlu0 %v1111
        %v1113 = vpop.xlane.xlu0 %1112
        %v1114 = vadd.f32 %v590, %v591
        %1115 = vadd.xlane.f32.xlu0 %v1114
        %v1116 = vpop.xlane.xlu0 %1115
        %v1117 = vmul.f32 %v1107, %v1100
        %v1118 = vmul.f32 %v1110, %v1100
        %v1119 = vmul.f32 %v1113, %v1100
        %v1120 = vmul.f32 %v1116, %v1100
        %v1121 = vadd.f32 %v592, %v593
        %1122 = vadd.xlane.f32.xlu0 %v1121
        %v1123 = vpop.xlane.xlu0 %1122
        %v1124 = vadd.f32 %v594, %v595
        %1125 = vadd.xlane.f32.xlu0 %v1124
        %v1126 = vpop.xlane.xlu0 %1125
        %v1127 = vadd.f32 %v596, %v597
        %1128 = vadd.xlane.f32.xlu0 %v1127
        %v1129 = vpop.xlane.xlu0 %1128
        %v1130 = vadd.f32 %v598, %v599
        %1131 = vadd.xlane.f32.xlu0 %v1130
        %v1132 = vpop.xlane.xlu0 %1131
        %v1133 = vmul.f32 %v1123, %v1100
        %v1134 = vmul.f32 %v1126, %v1100
        %v1135 = vmul.f32 %v1129, %v1100
        %v1136 = vmul.f32 %v1132, %v1100
        %v1137 = vsel %vm847, %v1101, %v1117
        %v1138 = vsel %vm847, %v1102, %v1118
        %v1139 = vsel %vm847, %v1103, %v1119
        %v1140 = vsel %vm847, %v1104, %v1120
        %vm1141 = vcmask 15360
        %v1142 = vsel %vm1141, %v1137, %v1133
        %v1143 = vsel %vm1141, %v1138, %v1134
        %v1144 = vsel %vm1141, %v1139, %v1135
        %v1145 = vsel %vm1141, %v1140, %v1136
        %v1146 = vld [vmem:[%s3] sm:$0x3]
        %vm1147 = vcmask 261120
        %v1149 = vsel %vm1147, %v1146, 0
        %1151 = vmatprep.subr.mxu0 0.0
        %1152 = vmatpush1.msra.mxu0 %v1142
        %1153 = vmatprep.subr.mxu0 0.0
        %1154 = vmatpush1.msra.mxu0 %v1143
        %1155 = vmatprep.subr.mxu0 0.0
        %1156 = vmatpush1.msra.mxu0 %v1144
        %1157 = vmatprep.subr.mxu0 0.0
        %1158 = vmatpush1.msra.mxu0 %v1145
        %1159 = vmatprep.subr.mxu0 0.0
        %1160 = vmatpush1.msra.mxu0 0.0
        %1161 = vmatprep.subr.mxu0 0.0
        %1162 = vmatpush1.msra.mxu0 0.0
        %1163 = vmatprep.subr.mxu0 0.0
        %1164 = vmatpush1.msra.mxu0 0.0
        %1165 = vmatprep.subr.mxu0 0.0
        %1166 = vmatpush1.msra.mxu0 0.0
        %1167 = vmatprep.subr.mxu0 0.0
        %1168 = vmatpush1.msra.mxu0 0.0
        %1169 = vmatprep.subr.mxu0 0.0
        %1170 = vmatpush1.msra.mxu0 0.0
        %1171 = vmatprep.subr.mxu0 0.0
        %1172 = vmatpush1.msra.mxu0 0.0
        %1173 = vmatprep.subr.mxu0 0.0
        %1174 = vmatpush1.msra.mxu0 0.0
        %1175 = vmatprep.subr.mxu0 0.0
        %1176 = vmatpush1.msra.mxu0 0.0
        %1177 = vmatprep.subr.mxu0 0.0
        %1178 = vmatpush1.msra.mxu0 0.0
        %1179 = vmatprep.subr.mxu0 0.0
        %1180 = vmatpush1.msra.mxu0 0.0
        %1181 = vmatprep.subr.mxu0 0.0
        %1182 = vmatpush1.msra.mxu0 0.0
        %1183 = vmatprep.subr.mxu0 0.0
        %1184 = vmatpush1.msra.mxu0 0.0
        %1185 = vmatprep.subr.mxu0 0.0
        %1186 = vmatpush1.msra.mxu0 0.0
        %1187 = vmatprep.subr.mxu0 0.0
        %1188 = vmatpush1.msra.mxu0 0.0
        %1189 = vmatprep.subr.mxu0 0.0
        %1190 = vmatpush1.msra.mxu0 0.0
        %1191 = vmatprep.subr.mxu0 0.0
        %1192 = vmatpush1.msra.mxu0 0.0
        %1193 = vmatprep.subr.mxu0 0.0
        %1194 = vmatpush1.msra.mxu0 0.0
        %1195 = vmatprep.subr.mxu0 0.0
        %1196 = vmatpush1.msra.mxu0 0.0
        %1197 = vmatprep.subr.mxu0 0.0
        %1198 = vmatpush1.msra.mxu0 0.0
        %1199 = vmatprep.subr.mxu0 0.0
        %1200 = vmatpush1.msra.mxu0 0.0
        %1201 = vmatprep.subr.mxu0 0.0
        %1202 = vmatpush1.msra.mxu0 0.0
        %1203 = vmatprep.subr.mxu0 0.0
        %1204 = vmatpush1.msra.mxu0 0.0
        %1205 = vmatprep.subr.mxu0 0.0
        %1206 = vmatpush1.msra.mxu0 0.0
        %1207 = vmatprep.subr.mxu0 0.0
        %1208 = vmatpush1.msra.mxu0 0.0
        %1209 = vmatprep.subr.mxu0 0.0
        %1210 = vmatpush1.msra.mxu0 0.0
        %1211 = vmatprep.subr.mxu0 0.0
        %1212 = vmatpush1.msra.mxu0 0.0
        %1213 = vmatprep.subr.mxu0 0.0
        %1214 = vmatpush1.msra.mxu0 0.0
        %1215 = vmatprep.mubr.f32.mxu0 0.0
        %1216 = vmatmul.mubr.f32.gmra.mrb[0].mxu0 %v1149
        %v1217 = vpop.f32.mrb[0].mxu0
        %v1218 = vadd.f32 0.0, %v1217
        %v1219 = vpop.f32.mrb[0].mxu0
        %1220 = vdwg.mxu0
        %1222 = vrot.lane.b32.xlu0 %v1218, 1
        %v1223 = vpop.permute.xlu0 %1222
        %v1225 = vsel %vm847, 0.0, %v1223
        %vm1226 = vcmask 31744
        %v1227 = vsel %vm1226, %v1225, 0.0
        %v1228 = vld [vmem:[%s4] sm:$0x3]
        %v1229 = vld [vmem:[%s4 + $0x2] sm:$0x3]
        %v1230 = vld [vmem:[%s4 + $0x4] sm:$0x3]
        %1232 = vrot.lane.b32.xlu0 %v1227, 127
        %v1233 = vpop.permute.xlu0 %1232
        %v1235 = vsel %vm1141, %v1229, 0
        %vm1237 = vcmask 1041408
        %v1238 = vsel %vm1237, %v1233, 0
        %1240 = vmatprep.subr.mxu0 0.0
        %1241 = vmatpush1.msra.mxu0 %v1238
        %1242 = vmatprep.subr.mxu0 0.0
        %1243 = vmatpush1.msra.mxu0 0.0
        %1244 = vmatprep.subr.mxu0 0.0
        %1245 = vmatpush1.msra.mxu0 0.0
        %1246 = vmatprep.subr.mxu0 0.0
        %1247 = vmatpush1.msra.mxu0 0.0
        %1248 = vmatprep.subr.mxu0 0.0
        %1249 = vmatpush1.msra.mxu0 0.0
        %1250 = vmatprep.subr.mxu0 0.0
        %1251 = vmatpush1.msra.mxu0 0.0
        %1252 = vmatprep.subr.mxu0 0.0
        %1253 = vmatpush1.msra.mxu0 0.0
        %1254 = vmatprep.subr.mxu0 0.0
        %1255 = vmatpush1.msra.mxu0 0.0
        %1256 = vmatprep.subr.mxu0 0.0
        %1257 = vmatpush1.msra.mxu0 0.0
        %1258 = vmatprep.subr.mxu0 0.0
        %1259 = vmatpush1.msra.mxu0 0.0
        %1260 = vmatprep.subr.mxu0 0.0
        %1261 = vmatpush1.msra.mxu0 0.0
        %1262 = vmatprep.subr.mxu0 0.0
        %1263 = vmatpush1.msra.mxu0 0.0
        %1264 = vmatprep.subr.mxu0 0.0
        %1265 = vmatpush1.msra.mxu0 0.0
        %1266 = vmatprep.subr.mxu0 0.0
        %1267 = vmatpush1.msra.mxu0 0.0
        %1268 = vmatprep.subr.mxu0 0.0
        %1269 = vmatpush1.msra.mxu0 0.0
        %1270 = vmatprep.subr.mxu0 0.0
        %1271 = vmatpush1.msra.mxu0 0.0
        %1272 = vmatprep.subr.mxu0 0.0
        %1273 = vmatpush1.msra.mxu0 0.0
        %1274 = vmatprep.subr.mxu0 0.0
        %1275 = vmatpush1.msra.mxu0 0.0
        %1276 = vmatprep.subr.mxu0 0.0
        %1277 = vmatpush1.msra.mxu0 0.0
        %1278 = vmatprep.subr.mxu0 0.0
        %1279 = vmatpush1.msra.mxu0 0.0
        %1280 = vmatprep.subr.mxu0 0.0
        %1281 = vmatpush1.msra.mxu0 0.0
        %1282 = vmatprep.subr.mxu0 0.0
        %1283 = vmatpush1.msra.mxu0 0.0
        %1284 = vmatprep.subr.mxu0 0.0
        %1285 = vmatpush1.msra.mxu0 0.0
        %1286 = vmatprep.subr.mxu0 0.0
        %1287 = vmatpush1.msra.mxu0 0.0
        %1288 = vmatprep.subr.mxu0 0.0
        %1289 = vmatpush1.msra.mxu0 0.0
        %1290 = vmatprep.subr.mxu0 0.0
        %1291 = vmatpush1.msra.mxu0 0.0
        %1292 = vmatprep.subr.mxu0 0.0
        %1293 = vmatpush1.msra.mxu0 0.0
        %1294 = vmatprep.subr.mxu0 0.0
        %1295 = vmatpush1.msra.mxu0 0.0
        %1296 = vmatprep.subr.mxu0 0.0
        %1297 = vmatpush1.msra.mxu0 0.0
        %1298 = vmatprep.subr.mxu0 0.0
        %1299 = vmatpush1.msra.mxu0 0.0
        %1300 = vmatprep.subr.mxu0 0.0
        %1301 = vmatpush1.msra.mxu0 0.0
        %1302 = vmatprep.subr.mxu0 0.0
        %1303 = vmatpush1.msra.mxu0 0.0
        %1304 = vmatprep.mubr.f32.mxu0 0.0
        %1305 = vmatmul.mubr.f32.gmra.mrb[0].mxu0 %v1235
        %v1306 = vpop.f32.mrb[0].mxu0
        %v1307 = vadd.f32 0.0, %v1306
        %v1308 = vpop.f32.mrb[0].mxu0
        %1309 = vdwg.mxu0
        %v1311 = vsel %vm1141, %v1228, 0
        %v1313 = vsel %vm1237, %v1227, 0
        %1315 = vmatprep.subr.mxu0 0.0
        %1316 = vmatpush1.msra.mxu0 %v1313
        %1317 = vmatprep.subr.mxu0 0.0
        %1318 = vmatpush1.msra.mxu0 0.0
        %1319 = vmatprep.subr.mxu0 0.0
        %1320 = vmatpush1.msra.mxu0 0.0
        %1321 = vmatprep.subr.mxu0 0.0
        %1322 = vmatpush1.msra.mxu0 0.0
        %1323 = vmatprep.subr.mxu0 0.0
        %1324 = vmatpush1.msra.mxu0 0.0
        %1325 = vmatprep.subr.mxu0 0.0
        %1326 = vmatpush1.msra.mxu0 0.0
        %1327 = vmatprep.subr.mxu0 0.0
        %1328 = vmatpush1.msra.mxu0 0.0
        %1329 = vmatprep.subr.mxu0 0.0
        %1330 = vmatpush1.msra.mxu0 0.0
        %1331 = vmatprep.subr.mxu0 0.0
        %1332 = vmatpush1.msra.mxu0 0.0
        %1333 = vmatprep.subr.mxu0 0.0
        %1334 = vmatpush1.msra.mxu0 0.0
        %1335 = vmatprep.subr.mxu0 0.0
        %1336 = vmatpush1.msra.mxu0 0.0
        %1337 = vmatprep.subr.mxu0 0.0
        %1338 = vmatpush1.msra.mxu0 0.0
        %1339 = vmatprep.subr.mxu0 0.0
        %1340 = vmatpush1.msra.mxu0 0.0
        %1341 = vmatprep.subr.mxu0 0.0
        %1342 = vmatpush1.msra.mxu0 0.0
        %1343 = vmatprep.subr.mxu0 0.0
        %1344 = vmatpush1.msra.mxu0 0.0
        %1345 = vmatprep.subr.mxu0 0.0
        %1346 = vmatpush1.msra.mxu0 0.0
        %1347 = vmatprep.subr.mxu0 0.0
        %1348 = vmatpush1.msra.mxu0 0.0
        %1349 = vmatprep.subr.mxu0 0.0
        %1350 = vmatpush1.msra.mxu0 0.0
        %1351 = vmatprep.subr.mxu0 0.0
        %1352 = vmatpush1.msra.mxu0 0.0
        %1353 = vmatprep.subr.mxu0 0.0
        %1354 = vmatpush1.msra.mxu0 0.0
        %1355 = vmatprep.subr.mxu0 0.0
        %1356 = vmatpush1.msra.mxu0 0.0
        %1357 = vmatprep.subr.mxu0 0.0
        %1358 = vmatpush1.msra.mxu0 0.0
        %1359 = vmatprep.subr.mxu0 0.0
        %1360 = vmatpush1.msra.mxu0 0.0
        %1361 = vmatprep.subr.mxu0 0.0
        %1362 = vmatpush1.msra.mxu0 0.0
        %1363 = vmatprep.subr.mxu0 0.0
        %1364 = vmatpush1.msra.mxu0 0.0
        %1365 = vmatprep.subr.mxu0 0.0
        %1366 = vmatpush1.msra.mxu0 0.0
        %1367 = vmatprep.subr.mxu0 0.0
        %1368 = vmatpush1.msra.mxu0 0.0
        %1369 = vmatprep.subr.mxu0 0.0
        %1370 = vmatpush1.msra.mxu0 0.0
        %1371 = vmatprep.subr.mxu0 0.0
        %1372 = vmatpush1.msra.mxu0 0.0
        %1373 = vmatprep.subr.mxu0 0.0
        %1374 = vmatpush1.msra.mxu0 0.0
        %1375 = vmatprep.subr.mxu0 0.0
        %1376 = vmatpush1.msra.mxu0 0.0
        %1377 = vmatprep.subr.mxu0 0.0
        %1378 = vmatpush1.msra.mxu0 0.0
        %1379 = vmatprep.mubr.f32.mxu0 0.0
        %1380 = vmatmul.mubr.f32.gmra.mrb[0].mxu0 %v1311
        %v1381 = vpop.f32.mrb[0].mxu0
        %v1382 = vadd.f32 %v1307, %v1381
        %v1383 = vpop.f32.mrb[0].mxu0
        %1384 = vdwg.mxu0
        %1385 = vrot.lane.b32.xlu0 %v1227, 126
        %v1386 = vpop.permute.xlu0 %1385
        %v1388 = vsel %vm1141, %v1230, 0
        %v1390 = vsel %vm1237, %v1386, 0
        %1392 = vmatprep.subr.mxu0 0.0
        %1393 = vmatpush1.msra.mxu0 %v1390
        %1394 = vmatprep.subr.mxu0 0.0
        %1395 = vmatpush1.msra.mxu0 0.0
        %1396 = vmatprep.subr.mxu0 0.0
        %1397 = vmatpush1.msra.mxu0 0.0
        %1398 = vmatprep.subr.mxu0 0.0
        %1399 = vmatpush1.msra.mxu0 0.0
        %1400 = vmatprep.subr.mxu0 0.0
        %1401 = vmatpush1.msra.mxu0 0.0
        %1402 = vmatprep.subr.mxu0 0.0
        %1403 = vmatpush1.msra.mxu0 0.0
        %1404 = vmatprep.subr.mxu0 0.0
        %1405 = vmatpush1.msra.mxu0 0.0
        %1406 = vmatprep.subr.mxu0 0.0
        %1407 = vmatpush1.msra.mxu0 0.0
        %1408 = vmatprep.subr.mxu0 0.0
        %1409 = vmatpush1.msra.mxu0 0.0
        %1410 = vmatprep.subr.mxu0 0.0
        %1411 = vmatpush1.msra.mxu0 0.0
        %1412 = vmatprep.subr.mxu0 0.0
        %1413 = vmatpush1.msra.mxu0 0.0
        %1414 = vmatprep.subr.mxu0 0.0
        %1415 = vmatpush1.msra.mxu0 0.0
        %1416 = vmatprep.subr.mxu0 0.0
        %1417 = vmatpush1.msra.mxu0 0.0
        %1418 = vmatprep.subr.mxu0 0.0
        %1419 = vmatpush1.msra.mxu0 0.0
        %1420 = vmatprep.subr.mxu0 0.0
        %1421 = vmatpush1.msra.mxu0 0.0
        %1422 = vmatprep.subr.mxu0 0.0
        %1423 = vmatpush1.msra.mxu0 0.0
        %1424 = vmatprep.subr.mxu0 0.0
        %1425 = vmatpush1.msra.mxu0 0.0
        %1426 = vmatprep.subr.mxu0 0.0
        %1427 = vmatpush1.msra.mxu0 0.0
        %1428 = vmatprep.subr.mxu0 0.0
        %1429 = vmatpush1.msra.mxu0 0.0
        %1430 = vmatprep.subr.mxu0 0.0
        %1431 = vmatpush1.msra.mxu0 0.0
        %1432 = vmatprep.subr.mxu0 0.0
        %1433 = vmatpush1.msra.mxu0 0.0
        %1434 = vmatprep.subr.mxu0 0.0
        %1435 = vmatpush1.msra.mxu0 0.0
        %1436 = vmatprep.subr.mxu0 0.0
        %1437 = vmatpush1.msra.mxu0 0.0
        %1438 = vmatprep.subr.mxu0 0.0
        %1439 = vmatpush1.msra.mxu0 0.0
        %1440 = vmatprep.subr.mxu0 0.0
        %1441 = vmatpush1.msra.mxu0 0.0
        %1442 = vmatprep.subr.mxu0 0.0
        %1443 = vmatpush1.msra.mxu0 0.0
        %1444 = vmatprep.subr.mxu0 0.0
        %1445 = vmatpush1.msra.mxu0 0.0
        %1446 = vmatprep.subr.mxu0 0.0
        %1447 = vmatpush1.msra.mxu0 0.0
        %1448 = vmatprep.subr.mxu0 0.0
        %1449 = vmatpush1.msra.mxu0 0.0
        %1450 = vmatprep.subr.mxu0 0.0
        %1451 = vmatpush1.msra.mxu0 0.0
        %1452 = vmatprep.subr.mxu0 0.0
        %1453 = vmatpush1.msra.mxu0 0.0
        %1454 = vmatprep.subr.mxu0 0.0
        %1455 = vmatpush1.msra.mxu0 0.0
        %1456 = vmatprep.mubr.f32.mxu0 0.0
        %1457 = vmatmul.mubr.f32.gmra.mrb[0].mxu0 %v1388
        %v1458 = vpop.f32.mrb[0].mxu0
        %v1459 = vadd.f32 0.0, %v1458
        %v1460 = vpop.f32.mrb[0].mxu0
        %1461 = vdwg.mxu0
        %v1462 = vadd.f32 %v1382, %v1459
        %v1463 = vmax.f32 %v1462, 0.0
        %v1464 = vld [vmem:[%s5] sm:$0xff]
        %v1465 = vld [vmem:[%s5 + $0x8] sm:$0xff]
        %v1466 = vld [vmem:[%s5 + $0x10] sm:$0xff]
        %v1467 = vld [vmem:[%s5 + $0x18] sm:$0xff]
        %v1469 = vsel %vm1141, %v1464, 0
        %v1472 = vsel %vm1141, %v1465, 0
        %v1475 = vsel %vm1141, %v1466, 0
        %v1478 = vsel %vm1141, %v1467, 0
        %v1481 = vsel %vm1237, %v1463, 0
        %1483 = vmatprep.subr.mxu0 0.0
        %1484 = vmatpush1.msra.mxu0 %v1481
        %1485 = vmatprep.subr.mxu0 0.0
        %1486 = vmatpush1.msra.mxu0 0.0
        %1487 = vmatprep.subr.mxu0 0.0
        %1488 = vmatpush1.msra.mxu0 0.0
        %1489 = vmatprep.subr.mxu0 0.0
        %1490 = vmatpush1.msra.mxu0 0.0
        %1491 = vmatprep.subr.mxu0 0.0
        %1492 = vmatpush1.msra.mxu0 0.0
        %1493 = vmatprep.subr.mxu0 0.0
        %1494 = vmatpush1.msra.mxu0 0.0
        %1495 = vmatprep.subr.mxu0 0.0
        %1496 = vmatpush1.msra.mxu0 0.0
        %1497 = vmatprep.subr.mxu0 0.0
        %1498 = vmatpush1.msra.mxu0 0.0
        %1499 = vmatprep.subr.mxu0 0.0
        %1500 = vmatpush1.msra.mxu0 0.0
        %1501 = vmatprep.subr.mxu0 0.0
        %1502 = vmatpush1.msra.mxu0 0.0
        %1503 = vmatprep.subr.mxu0 0.0
        %1504 = vmatpush1.msra.mxu0 0.0
        %1505 = vmatprep.subr.mxu0 0.0
        %1506 = vmatpush1.msra.mxu0 0.0
        %1507 = vmatprep.subr.mxu0 0.0
        %1508 = vmatpush1.msra.mxu0 0.0
        %1509 = vmatprep.subr.mxu0 0.0
        %1510 = vmatpush1.msra.mxu0 0.0
        %1511 = vmatprep.subr.mxu0 0.0
        %1512 = vmatpush1.msra.mxu0 0.0
        %1513 = vmatprep.subr.mxu0 0.0
        %1514 = vmatpush1.msra.mxu0 0.0
        %1515 = vmatprep.subr.mxu0 0.0
        %1516 = vmatpush1.msra.mxu0 0.0
        %1517 = vmatprep.subr.mxu0 0.0
        %1518 = vmatpush1.msra.mxu0 0.0
        %1519 = vmatprep.subr.mxu0 0.0
        %1520 = vmatpush1.msra.mxu0 0.0
        %1521 = vmatprep.subr.mxu0 0.0
        %1522 = vmatpush1.msra.mxu0 0.0
        %1523 = vmatprep.subr.mxu0 0.0
        %1524 = vmatpush1.msra.mxu0 0.0
        %1525 = vmatprep.subr.mxu0 0.0
        %1526 = vmatpush1.msra.mxu0 0.0
        %1527 = vmatprep.subr.mxu0 0.0
        %1528 = vmatpush1.msra.mxu0 0.0
        %1529 = vmatprep.subr.mxu0 0.0
        %1530 = vmatpush1.msra.mxu0 0.0
        %1531 = vmatprep.subr.mxu0 0.0
        %1532 = vmatpush1.msra.mxu0 0.0
        %1533 = vmatprep.subr.mxu0 0.0
        %1534 = vmatpush1.msra.mxu0 0.0
        %1535 = vmatprep.subr.mxu0 0.0
        %1536 = vmatpush1.msra.mxu0 0.0
        %1537 = vmatprep.subr.mxu0 0.0
        %1538 = vmatpush1.msra.mxu0 0.0
        %1539 = vmatprep.subr.mxu0 0.0
        %1540 = vmatpush1.msra.mxu0 0.0
        %1541 = vmatprep.subr.mxu0 0.0
        %1542 = vmatpush1.msra.mxu0 0.0
        %1543 = vmatprep.subr.mxu0 0.0
        %1544 = vmatpush1.msra.mxu0 0.0
        %1545 = vmatprep.subr.mxu0 0.0
        %1546 = vmatpush1.msra.mxu0 0.0
        %1547 = vmatprep.mubr.f32.mxu0 0.0
        %1548 = vmatmul.mubr.f32.gmra.mrb[0].mxu0 %v1469
        %v1549 = vpop.f32.mrb[0].mxu0
        %v1550 = vadd.f32 0.0, %v1549
        %v1551 = vpop.f32.mrb[0].mxu0
        %1552 = vmatprep.mubr.f32.mxu0 0.0
        %1553 = vmatmul.mubr.f32.gmra.mrb[0].mxu0 %v1472
        %v1554 = vpop.f32.mrb[0].mxu0
        %v1555 = vadd.f32 0.0, %v1554
        %v1556 = vpop.f32.mrb[0].mxu0
        %1557 = vmatprep.mubr.f32.mxu0 0.0
        %1558 = vmatmul.mubr.f32.gmra.mrb[0].mxu0 %v1475
        %v1559 = vpop.f32.mrb[0].mxu0
        %v1560 = vadd.f32 0.0, %v1559
        %v1561 = vpop.f32.mrb[0].mxu0
        %1562 = vmatprep.mubr.f32.mxu0 0.0
        %1563 = vmatmul.mubr.f32.gmra.mrb[0].mxu0 %v1478
        %v1564 = vpop.f32.mrb[0].mxu0
        %v1565 = vadd.f32 0.0, %v1564
        %v1566 = vpop.f32.mrb[0].mxu0
        %1567 = vdwg.mxu0
        %v1568 = vxor.u32 %v1550, 2147483648
        %v1569 = vxor.u32 %v1555, 2147483648
        %v1570 = vxor.u32 %v1560, 2147483648
        %v1571 = vxor.u32 %v1565, 2147483648
        %v1572 = vmul.f32 %v1568, 1.442695
        %v1573 = vpow.pop %v1572
        %v1574 = vmul.f32 %v1569, 1.442695
        %v1575 = vpow.pop %v1574
        %v1576 = vmul.f32 %v1570, 1.442695
        %v1577 = vpow.pop %v1576
        %v1578 = vmul.f32 %v1571, 1.442695
        %v1579 = vpow.pop %v1578
        %v1580 = vadd.f32 %v1573, 1.0
        %v1581 = vadd.f32 %v1575, 1.0
        %v1582 = vadd.f32 %v1577, 1.0
        %v1583 = vadd.f32 %v1579, 1.0
        %v1584 = vrcp.pop %v1580
        %v1585 = vmul.f32 1.0, %v1584
        %v1586 = vrcp.pop %v1581
        %v1587 = vmul.f32 1.0, %v1586
        %v1588 = vrcp.pop %v1582
        %v1589 = vmul.f32 1.0, %v1588
        %v1590 = vrcp.pop %v1583
        %v1591 = vmul.f32 1.0, %v1590
        %v1592 = vld [vmem:[%s6] sm:$0x3]
        %v1593 = vld [vmem:[%s7] sm:$0x3]
        %1595 = vset.pattern.permute.xlu0 0
        %1596 = vperm.xlu0 %1595, %v1593
        %v1597 = vpop.permute.xlu0 %1596
        %v1600 = vsel %vm1147, %v1592, 0
        %1602 = vmatprep.subr.mxu0 %v577
        %1603 = vmatpush1.msra.mxu0 %v576
        %1604 = vmatprep.subr.mxu0 %v579
        %1605 = vmatpush1.msra.mxu0 %v578
        %1606 = vmatprep.subr.mxu0 %v581
        %1607 = vmatpush1.msra.mxu0 %v580
        %1608 = vmatprep.subr.mxu0 %v583
        %1609 = vmatpush1.msra.mxu0 %v582
        %1610 = vmatprep.subr.mxu0 0.0
        %1611 = vmatpush1.msra.mxu0 0.0
        %1612 = vmatprep.subr.mxu0 0.0
        %1613 = vmatpush1.msra.mxu0 0.0
        %1614 = vmatprep.subr.mxu0 0.0
        %1615 = vmatpush1.msra.mxu0 0.0
        %1616 = vmatprep.subr.mxu0 0.0
        %1617 = vmatpush1.msra.mxu0 0.0
        %1618 = vmatprep.subr.mxu0 0.0
        %1619 = vmatpush1.msra.mxu0 0.0
        %1620 = vmatprep.subr.mxu0 0.0
        %1621 = vmatpush1.msra.mxu0 0.0
        %1622 = vmatprep.subr.mxu0 0.0
        %1623 = vmatpush1.msra.mxu0 0.0
        %1624 = vmatprep.subr.mxu0 0.0
        %1625 = vmatpush1.msra.mxu0 0.0
        %1626 = vmatprep.subr.mxu0 0.0
        %1627 = vmatpush1.msra.mxu0 0.0
        %1628 = vmatprep.subr.mxu0 0.0
        %1629 = vmatpush1.msra.mxu0 0.0
        %1630 = vmatprep.subr.mxu0 0.0
        %1631 = vmatpush1.msra.mxu0 0.0
        %1632 = vmatprep.subr.mxu0 0.0
        %1633 = vmatpush1.msra.mxu0 0.0
        %1634 = vmatprep.subr.mxu0 0.0
        %1635 = vmatpush1.msra.mxu0 0.0
        %1636 = vmatprep.subr.mxu0 0.0
        %1637 = vmatpush1.msra.mxu0 0.0
        %1638 = vmatprep.subr.mxu0 0.0
        %1639 = vmatpush1.msra.mxu0 0.0
        %1640 = vmatprep.subr.mxu0 0.0
        %1641 = vmatpush1.msra.mxu0 0.0
        %1642 = vmatprep.subr.mxu0 0.0
        %1643 = vmatpush1.msra.mxu0 0.0
        %1644 = vmatprep.subr.mxu0 0.0
        %1645 = vmatpush1.msra.mxu0 0.0
        %1646 = vmatprep.subr.mxu0 0.0
        %1647 = vmatpush1.msra.mxu0 0.0
        %1648 = vmatprep.subr.mxu0 0.0
        %1649 = vmatpush1.msra.mxu0 0.0
        %1650 = vmatprep.subr.mxu0 0.0
        %1651 = vmatpush1.msra.mxu0 0.0
        %1652 = vmatprep.subr.mxu0 0.0
        %1653 = vmatpush1.msra.mxu0 0.0
        %1654 = vmatprep.subr.mxu0 0.0
        %1655 = vmatpush1.msra.mxu0 0.0
        %1656 = vmatprep.subr.mxu0 0.0
        %1657 = vmatpush1.msra.mxu0 0.0
        %1658 = vmatprep.subr.mxu0 0.0
        %1659 = vmatpush1.msra.mxu0 0.0
        %1660 = vmatprep.subr.mxu0 0.0
        %1661 = vmatpush1.msra.mxu0 0.0
        %1662 = vmatprep.subr.mxu0 0.0
        %1663 = vmatpush1.msra.mxu0 0.0
        %1664 = vmatprep.subr.mxu0 0.0
        %1665 = vmatpush1.msra.mxu0 0.0
        %1666 = vmatprep.mubr.f32.mxu0 0.0
        %1667 = vmatmul.mubr.f32.gmra.mrb[0].mxu0 %v1600
        %v1668 = vpop.f32.mrb[0].mxu0
        %v1669 = vadd.f32 %v1597, %v1668
        %v1670 = vpop.f32.mrb[0].mxu0
        %v1671 = vadd.f32 %v1597, %v1670
        %1672 = vdwg.mxu0
        %1673 = vmatprep.subr.mxu0 %v585
        %1674 = vmatpush1.msra.mxu0 %v584
        %1675 = vmatprep.subr.mxu0 %v587
        %1676 = vmatpush1.msra.mxu0 %v586
        %1677 = vmatprep.subr.mxu0 %v589
        %1678 = vmatpush1.msra.mxu0 %v588
        %1679 = vmatprep.subr.mxu0 %v591
        %1680 = vmatpush1.msra.mxu0 %v590
        %1681 = vmatprep.subr.mxu0 0.0
        %1682 = vmatpush1.msra.mxu0 0.0
        %1683 = vmatprep.subr.mxu0 0.0
        %1684 = vmatpush1.msra.mxu0 0.0
        %1685 = vmatprep.subr.mxu0 0.0
        %1686 = vmatpush1.msra.mxu0 0.0
        %1687 = vmatprep.subr.mxu0 0.0
        %1688 = vmatpush1.msra.mxu0 0.0
        %1689 = vmatprep.subr.mxu0 0.0
        %1690 = vmatpush1.msra.mxu0 0.0
        %1691 = vmatprep.subr.mxu0 0.0
        %1692 = vmatpush1.msra.mxu0 0.0
        %1693 = vmatprep.subr.mxu0 0.0
        %1694 = vmatpush1.msra.mxu0 0.0
        %1695 = vmatprep.subr.mxu0 0.0
        %1696 = vmatpush1.msra.mxu0 0.0
        %1697 = vmatprep.subr.mxu0 0.0
        %1698 = vmatpush1.msra.mxu0 0.0
        %1699 = vmatprep.subr.mxu0 0.0
        %1700 = vmatpush1.msra.mxu0 0.0
        %1701 = vmatprep.subr.mxu0 0.0
        %1702 = vmatpush1.msra.mxu0 0.0
        %1703 = vmatprep.subr.mxu0 0.0
        %1704 = vmatpush1.msra.mxu0 0.0
        %1705 = vmatprep.subr.mxu0 0.0
        %1706 = vmatpush1.msra.mxu0 0.0
        %1707 = vmatprep.subr.mxu0 0.0
        %1708 = vmatpush1.msra.mxu0 0.0
        %1709 = vmatprep.subr.mxu0 0.0
        %1710 = vmatpush1.msra.mxu0 0.0
        %1711 = vmatprep.subr.mxu0 0.0
        %1712 = vmatpush1.msra.mxu0 0.0
        %1713 = vmatprep.subr.mxu0 0.0
        %1714 = vmatpush1.msra.mxu0 0.0
        %1715 = vmatprep.subr.mxu0 0.0
        %1716 = vmatpush1.msra.mxu0 0.0
        %1717 = vmatprep.subr.mxu0 0.0
        %1718 = vmatpush1.msra.mxu0 0.0
        %1719 = vmatprep.subr.mxu0 0.0
        %1720 = vmatpush1.msra.mxu0 0.0
        %1721 = vmatprep.subr.mxu0 0.0
        %1722 = vmatpush1.msra.mxu0 0.0
        %1723 = vmatprep.subr.mxu0 0.0
        %1724 = vmatpush1.msra.mxu0 0.0
        %1725 = vmatprep.subr.mxu0 0.0
        %1726 = vmatpush1.msra.mxu0 0.0
        %1727 = vmatprep.subr.mxu0 0.0
        %1728 = vmatpush1.msra.mxu0 0.0
        %1729 = vmatprep.subr.mxu0 0.0
        %1730 = vmatpush1.msra.mxu0 0.0
        %1731 = vmatprep.subr.mxu0 0.0
        %1732 = vmatpush1.msra.mxu0 0.0
        %1733 = vmatprep.subr.mxu0 0.0
        %1734 = vmatpush1.msra.mxu0 0.0
        %1735 = vmatprep.subr.mxu0 0.0
        %1736 = vmatpush1.msra.mxu0 0.0
        %1737 = vmatprep.mubr.f32.mxu0 0.0
        %1738 = vmatmul.mubr.f32.gmra.mrb[0].mxu0 %v1600
        %v1739 = vpop.f32.mrb[0].mxu0
        %v1740 = vadd.f32 %v1597, %v1739
        %v1741 = vpop.f32.mrb[0].mxu0
        %v1742 = vadd.f32 %v1597, %v1741
        %1743 = vdwg.mxu0
        %1744 = vmatprep.subr.mxu0 %v593
        %1745 = vmatpush1.msra.mxu0 %v592
        %1746 = vmatprep.subr.mxu0 %v595
        %1747 = vmatpush1.msra.mxu0 %v594
        %1748 = vmatprep.subr.mxu0 %v597
        %1749 = vmatpush1.msra.mxu0 %v596
        %1750 = vmatprep.subr.mxu0 %v599
        %1751 = vmatpush1.msra.mxu0 %v598
        %1752 = vmatprep.subr.mxu0 0.0
        %1753 = vmatpush1.msra.mxu0 0.0
        %1754 = vmatprep.subr.mxu0 0.0
        %1755 = vmatpush1.msra.mxu0 0.0
        %1756 = vmatprep.subr.mxu0 0.0
        %1757 = vmatpush1.msra.mxu0 0.0
        %1758 = vmatprep.subr.mxu0 0.0
        %1759 = vmatpush1.msra.mxu0 0.0
        %1760 = vmatprep.subr.mxu0 0.0
        %1761 = vmatpush1.msra.mxu0 0.0
        %1762 = vmatprep.subr.mxu0 0.0
        %1763 = vmatpush1.msra.mxu0 0.0
        %1764 = vmatprep.subr.mxu0 0.0
        %1765 = vmatpush1.msra.mxu0 0.0
        %1766 = vmatprep.subr.mxu0 0.0
        %1767 = vmatpush1.msra.mxu0 0.0
        %1768 = vmatprep.subr.mxu0 0.0
        %1769 = vmatpush1.msra.mxu0 0.0
        %1770 = vmatprep.subr.mxu0 0.0
        %1771 = vmatpush1.msra.mxu0 0.0
        %1772 = vmatprep.subr.mxu0 0.0
        %1773 = vmatpush1.msra.mxu0 0.0
        %1774 = vmatprep.subr.mxu0 0.0
        %1775 = vmatpush1.msra.mxu0 0.0
        %1776 = vmatprep.subr.mxu0 0.0
        %1777 = vmatpush1.msra.mxu0 0.0
        %1778 = vmatprep.subr.mxu0 0.0
        %1779 = vmatpush1.msra.mxu0 0.0
        %1780 = vmatprep.subr.mxu0 0.0
        %1781 = vmatpush1.msra.mxu0 0.0
        %1782 = vmatprep.subr.mxu0 0.0
        %1783 = vmatpush1.msra.mxu0 0.0
        %1784 = vmatprep.subr.mxu0 0.0
        %1785 = vmatpush1.msra.mxu0 0.0
        %1786 = vmatprep.subr.mxu0 0.0
        %1787 = vmatpush1.msra.mxu0 0.0
        %1788 = vmatprep.subr.mxu0 0.0
        %1789 = vmatpush1.msra.mxu0 0.0
        %1790 = vmatprep.subr.mxu0 0.0
        %1791 = vmatpush1.msra.mxu0 0.0
        %1792 = vmatprep.subr.mxu0 0.0
        %1793 = vmatpush1.msra.mxu0 0.0
        %1794 = vmatprep.subr.mxu0 0.0
        %1795 = vmatpush1.msra.mxu0 0.0
        %1796 = vmatprep.subr.mxu0 0.0
        %1797 = vmatpush1.msra.mxu0 0.0
        %1798 = vmatprep.subr.mxu0 0.0
        %1799 = vmatpush1.msra.mxu0 0.0
        %1800 = vmatprep.subr.mxu0 0.0
        %1801 = vmatpush1.msra.mxu0 0.0
        %1802 = vmatprep.subr.mxu0 0.0
        %1803 = vmatpush1.msra.mxu0 0.0
        %1804 = vmatprep.subr.mxu0 0.0
        %1805 = vmatpush1.msra.mxu0 0.0
        %1806 = vmatprep.subr.mxu0 0.0
        %1807 = vmatpush1.msra.mxu0 0.0
        %1808 = vmatprep.mubr.f32.mxu0 0.0
        %1809 = vmatmul.mubr.f32.gmra.mrb[0].mxu0 %v1600
        %v1810 = vpop.f32.mrb[0].mxu0
        %v1811 = vadd.f32 %v1597, %v1810
        %v1812 = vpop.f32.mrb[0].mxu0
        %v1813 = vadd.f32 %v1597, %v1812
        %1814 = vdwg.mxu0
        %v1815 = vld [vmem:[%s8] sm:$0x3]
        %v1816 = vld [vmem:[%s8 + $0x2] sm:$0x3]
        %v1817 = vld [vmem:[%s8 + $0x4] sm:$0x3]
        %v1818 = vld [vmem:[%s8 + $0x6] sm:$0x3]
        %v1819 = vld [vmem:[%s8 + $0x8] sm:$0x3]
        %v1820 = vld [vmem:[%s8 + $0xa] sm:$0x3]
        %v1821 = vld [vmem:[%s8 + $0xc] sm:$0x3]
        %v1822 = vld [vmem:[%s8 + $0xe] sm:$0x3]
        %v1823 = vld [vmem:[%s8 + $0x10] sm:$0x3]
        %1828 = vrot.lane.b32.xlu0 %v1740, 17
        %v1829 = vpop.permute.xlu0 %1828
        %1830 = vrot.lane.b32.xlu0 %v1742, 17
        %v1831 = vpop.permute.xlu0 %1830
        %1832 = vrot.lane.b32.xlu0 %v1811, 17
        %v1833 = vpop.permute.xlu0 %1832
        %1834 = vrot.lane.b32.xlu0 %v1813, 17
        %v1835 = vpop.permute.xlu0 %1834
        %v1836 = vsel %vm714, %v1829, %v1831
        %v1837 = vsel %vm714, %v1833, %v1835
        %v1842 = vsel %vm714, 0.0, %v1829
        %v1843 = vsel %vm714, 0.0, %v1833
        %v1844 = vsel %vm723, %v1842, 0.0
        %v1845 = vsel %vm724, %v1836, 0.0
        %v1846 = vsel %vm723, %v1843, 0.0
        %v1847 = vsel %vm724, %v1837, 0.0
        %1849 = vset.pattern.permute.xlu0 0
        %1850 = vperm.xlu0 %1849, %v1815
        %v1851 = vpop.permute.xlu0 %1850
        %v1853 = vmul.f32 %v1851, %v1844
        %v1854 = vmul.f32 %v1851, %v1845
        %v1855 = vmul.f32 %v1851, %v1846
        %v1856 = vmul.f32 %v1851, %v1847
        %v1857 = vadd.f32 %v1853, 0.0
        %v1858 = vadd.f32 %v1854, 0.0
        %v1859 = vadd.f32 %v1855, 0.0
        %v1860 = vadd.f32 %v1856, 0.0
        %1861 = vrot.lane.b32.xlu0 %v1740, 16
        %v1862 = vpop.permute.xlu0 %1861
        %1863 = vrot.lane.b32.xlu0 %v1742, 16
        %v1864 = vpop.permute.xlu0 %1863
        %1865 = vrot.lane.b32.xlu0 %v1811, 16
        %v1866 = vpop.permute.xlu0 %1865
        %1867 = vrot.lane.b32.xlu0 %v1813, 16
        %v1868 = vpop.permute.xlu0 %1867
        %v1869 = vsel %vm761, %v1862, %v1864
        %v1870 = vsel %vm761, %v1866, %v1868
        %v1875 = vsel %vm761, 0.0, %v1862
        %v1876 = vsel %vm761, 0.0, %v1866
        %1878 = vset.pattern.permute.xlu0 0
        %1879 = vperm.xlu0 %1878, %v1816
        %v1880 = vpop.permute.xlu0 %1879
        %v1882 = vmul.f32 %v1880, %v1875
        %v1883 = vmul.f32 %v1880, %v1869
        %v1884 = vmul.f32 %v1880, %v1876
        %v1885 = vmul.f32 %v1880, %v1870
        %v1886 = vadd.f32 %v1857, %v1882
        %v1887 = vadd.f32 %v1858, %v1883
        %v1888 = vadd.f32 %v1859, %v1884
        %v1889 = vadd.f32 %v1860, %v1885
        %1890 = vrot.lane.b32.xlu0 %v1740, 15
        %v1891 = vpop.permute.xlu0 %1890
        %1892 = vrot.lane.b32.xlu0 %v1742, 15
        %v1893 = vpop.permute.xlu0 %1892
        %1894 = vrot.lane.b32.xlu0 %v1811, 15
        %v1895 = vpop.permute.xlu0 %1894
        %1896 = vrot.lane.b32.xlu0 %v1813, 15
        %v1897 = vpop.permute.xlu0 %1896
        %v1898 = vsel %vm800, %v1891, %v1893
        %v1899 = vsel %vm800, %v1895, %v1897
        %v1904 = vsel %vm800, 0.0, %v1891
        %v1905 = vsel %vm800, 0.0, %v1895
        %v1906 = vsel %vm809, %v1904, 0.0
        %v1907 = vsel %vm810, %v1898, 0.0
        %v1908 = vsel %vm809, %v1905, 0.0
        %v1909 = vsel %vm810, %v1899, 0.0
        %1911 = vset.pattern.permute.xlu0 0
        %1912 = vperm.xlu0 %1911, %v1817
        %v1913 = vpop.permute.xlu0 %1912
        %v1915 = vmul.f32 %v1913, %v1906
        %v1916 = vmul.f32 %v1913, %v1907
        %v1917 = vmul.f32 %v1913, %v1908
        %v1918 = vmul.f32 %v1913, %v1909
        %v1919 = vadd.f32 %v1886, %v1915
        %v1920 = vadd.f32 %v1887, %v1916
        %v1921 = vadd.f32 %v1888, %v1917
        %v1922 = vadd.f32 %v1889, %v1918
        %1923 = vrot.lane.b32.xlu0 %v1740, 1
        %v1924 = vpop.permute.xlu0 %1923
        %1925 = vrot.lane.b32.xlu0 %v1742, 1
        %v1926 = vpop.permute.xlu0 %1925
        %1927 = vrot.lane.b32.xlu0 %v1811, 1
        %v1928 = vpop.permute.xlu0 %1927
        %1929 = vrot.lane.b32.xlu0 %v1813, 1
        %v1930 = vpop.permute.xlu0 %1929
        %v1931 = vsel %vm847, %v1924, %v1926
        %v1932 = vsel %vm847, %v1928, %v1930
        %v1937 = vsel %vm847, 0.0, %v1924
        %v1938 = vsel %vm847, 0.0, %v1928
        %v1939 = vsel %vm723, %v1937, 0.0
        %v1940 = vsel %vm724, %v1931, 0.0
        %v1941 = vsel %vm723, %v1938, 0.0
        %v1942 = vsel %vm724, %v1932, 0.0
        %1944 = vset.pattern.permute.xlu0 0
        %1945 = vperm.xlu0 %1944, %v1818
        %v1946 = vpop.permute.xlu0 %1945
        %v1948 = vmul.f32 %v1946, %v1939
        %v1949 = vmul.f32 %v1946, %v1940
        %v1950 = vmul.f32 %v1946, %v1941
        %v1951 = vmul.f32 %v1946, %v1942
        %v1952 = vadd.f32 %v1919, %v1948
        %v1953 = vadd.f32 %v1920, %v1949
        %v1954 = vadd.f32 %v1921, %v1950
        %v1955 = vadd.f32 %v1922, %v1951
        %1957 = vset.pattern.permute.xlu0 0
        %1958 = vperm.xlu0 %1957, %v1819
        %v1959 = vpop.permute.xlu0 %1958
        %v1961 = vmul.f32 %v1959, %v1740
        %v1962 = vmul.f32 %v1959, %v1742
        %v1963 = vmul.f32 %v1959, %v1811
        %v1964 = vmul.f32 %v1959, %v1813
        %v1965 = vadd.f32 %v1952, %v1961
        %v1966 = vadd.f32 %v1953, %v1962
        %v1967 = vadd.f32 %v1954, %v1963
        %v1968 = vadd.f32 %v1955, %v1964
        %1969 = vrot.lane.b32.xlu0 %v1740, 127
        %v1970 = vpop.permute.xlu0 %1969
        %1971 = vrot.lane.b32.xlu0 %v1742, 127
        %v1972 = vpop.permute.xlu0 %1971
        %1973 = vrot.lane.b32.xlu0 %v1811, 127
        %v1974 = vpop.permute.xlu0 %1973
        %1975 = vrot.lane.b32.xlu0 %v1813, 127
        %v1976 = vpop.permute.xlu0 %1975
        %v1977 = vsel %vm918, %v1970, %v1972
        %v1978 = vsel %vm918, %v1974, %v1976
        %v1983 = vsel %vm918, %v1972, 0.0
        %v1984 = vsel %vm918, %v1976, 0.0
        %v1985 = vsel %vm809, %v1977, 0.0
        %v1986 = vsel %vm810, %v1983, 0.0
        %v1987 = vsel %vm809, %v1978, 0.0
        %v1988 = vsel %vm810, %v1984, 0.0
        %1990 = vset.pattern.permute.xlu0 0
        %1991 = vperm.xlu0 %1990, %v1820
        %v1992 = vpop.permute.xlu0 %1991
        %v1994 = vmul.f32 %v1992, %v1985
        %v1995 = vmul.f32 %v1992, %v1986
        %v1996 = vmul.f32 %v1992, %v1987
        %v1997 = vmul.f32 %v1992, %v1988
        %v1998 = vadd.f32 %v1965, %v1994
        %v1999 = vadd.f32 %v1966, %v1995
        %v2000 = vadd.f32 %v1967, %v1996
        %v2001 = vadd.f32 %v1968, %v1997
        %2002 = vrot.lane.b32.xlu0 %v1740, 113
        %v2003 = vpop.permute.xlu0 %2002
        %2004 = vrot.lane.b32.xlu0 %v1742, 113
        %v2005 = vpop.permute.xlu0 %2004
        %2006 = vrot.lane.b32.xlu0 %v1811, 113
        %v2007 = vpop.permute.xlu0 %2006
        %2008 = vrot.lane.b32.xlu0 %v1813, 113
        %v2009 = vpop.permute.xlu0 %2008
        %v2010 = vsel %vm959, %v2003, %v2005
        %v2011 = vsel %vm959, %v2007, %v2009
        %v2016 = vsel %vm959, %v2005, 0.0
        %v2017 = vsel %vm959, %v2009, 0.0
        %v2018 = vsel %vm723, %v2010, 0.0
        %v2019 = vsel %vm724, %v2016, 0.0
        %v2020 = vsel %vm723, %v2011, 0.0
        %v2021 = vsel %vm724, %v2017, 0.0
        %2023 = vset.pattern.permute.xlu0 0
        %2024 = vperm.xlu0 %2023, %v1821
        %v2025 = vpop.permute.xlu0 %2024
        %v2027 = vmul.f32 %v2025, %v2018
        %v2028 = vmul.f32 %v2025, %v2019
        %v2029 = vmul.f32 %v2025, %v2020
        %v2030 = vmul.f32 %v2025, %v2021
        %v2031 = vadd.f32 %v1998, %v2027
        %v2032 = vadd.f32 %v1999, %v2028
        %v2033 = vadd.f32 %v2000, %v2029
        %v2034 = vadd.f32 %v2001, %v2030
        %2035 = vrot.lane.b32.xlu0 %v1740, 112
        %v2036 = vpop.permute.xlu0 %2035
        %2037 = vrot.lane.b32.xlu0 %v1742, 112
        %v2038 = vpop.permute.xlu0 %2037
        %2039 = vrot.lane.b32.xlu0 %v1811, 112
        %v2040 = vpop.permute.xlu0 %2039
        %2041 = vrot.lane.b32.xlu0 %v1813, 112
        %v2042 = vpop.permute.xlu0 %2041
        %v2043 = vsel %vm1000, %v2036, %v2038
        %v2044 = vsel %vm1000, %v2040, %v2042
        %v2049 = vsel %vm1000, %v2038, 0.0
        %v2050 = vsel %vm1000, %v2042, 0.0
        %2052 = vset.pattern.permute.xlu0 0
        %2053 = vperm.xlu0 %2052, %v1822
        %v2054 = vpop.permute.xlu0 %2053
        %v2056 = vmul.f32 %v2054, %v2043
        %v2057 = vmul.f32 %v2054, %v2049
        %v2058 = vmul.f32 %v2054, %v2044
        %v2059 = vmul.f32 %v2054, %v2050
        %v2060 = vadd.f32 %v2031, %v2056
        %v2061 = vadd.f32 %v2032, %v2057
        %v2062 = vadd.f32 %v2033, %v2058
        %v2063 = vadd.f32 %v2034, %v2059
        %2064 = vrot.lane.b32.xlu0 %v1740, 111
        %v2065 = vpop.permute.xlu0 %2064
        %2066 = vrot.lane.b32.xlu0 %v1742, 111
        %v2067 = vpop.permute.xlu0 %2066
        %2068 = vrot.lane.b32.xlu0 %v1811, 111
        %v2069 = vpop.permute.xlu0 %2068
        %2070 = vrot.lane.b32.xlu0 %v1813, 111
        %v2071 = vpop.permute.xlu0 %2070
        %v2072 = vsel %vm1039, %v2065, %v2067
        %v2073 = vsel %vm1039, %v2069, %v2071
        %v2078 = vsel %vm1039, %v2067, 0.0
        %v2079 = vsel %vm1039, %v2071, 0.0
        %v2080 = vsel %vm809, %v2072, 0.0
        %v2081 = vsel %vm810, %v2078, 0.0
        %v2082 = vsel %vm809, %v2073, 0.0
        %v2083 = vsel %vm810, %v2079, 0.0
        %2085 = vset.pattern.permute.xlu0 0
        %2086 = vperm.xlu0 %2085, %v1823
        %v2087 = vpop.permute.xlu0 %2086
        %v2089 = vmul.f32 %v2087, %v2080
        %v2090 = vmul.f32 %v2087, %v2081
        %v2091 = vmul.f32 %v2087, %v2082
        %v2092 = vmul.f32 %v2087, %v2083
        %v2093 = vadd.f32 %v2060, %v2089
        %v2094 = vadd.f32 %v2061, %v2090
        %v2095 = vadd.f32 %v2062, %v2091
        %v2096 = vadd.f32 %v2063, %v2092
        %v2097 = vsub.f32 %v2093, %v1669
        %v2098 = vsub.f32 %v2094, %v1671
        %v2099 = vsub.f32 %v2095, %v1740
        %v2100 = vsub.f32 %v2096, %v1742
        %v2101 = vsel %vm1237, %v2097, 0.0
        %v2102 = vsel %vm1237, %v2098, 0.0
        %v2103 = vadd.f32 %v2101, %v2102
        %2104 = vadd.xlane.f32.xlu0 %v2103
        %v2105 = vpop.xlane.xlu0 %2104
        %v2106 = vmul.f32 %v2105, %v1100
        %v2107 = vsel %vm1237, %v2099, 0.0
        %v2108 = vsel %vm1237, %v2100, 0.0
        %v2109 = vadd.f32 %v2107, %v2108
        %2110 = vadd.xlane.f32.xlu0 %v2109
        %v2111 = vpop.xlane.xlu0 %2110
        %v2112 = vmul.f32 %v2111, %v1100
        %v2113 = vsel %vm847, %v2106, %v2112
        %v2114 = vsel %vm1141, %v2113, 0.0
        %v2115 = vld [vmem:[%s9] sm:$0xff]
        %v2116 = vld [vmem:[%s9 + $0x8] sm:$0xff]
        %v2117 = vld [vmem:[%s9 + $0x10] sm:$0xff]
        %v2118 = vld [vmem:[%s9 + $0x18] sm:$0xff]
        %v2120 = vsel %vm1141, %v2115, 0
        %v2123 = vsel %vm1141, %v2116, 0
        %v2126 = vsel %vm1141, %v2117, 0
        %v2129 = vsel %vm1141, %v2118, 0
        %v2132 = vsel %vm1237, %v2114, 0
        %2134 = vmatprep.subr.mxu0 0.0
        %2135 = vmatpush1.msra.mxu0 %v2132
        %2136 = vmatprep.subr.mxu0 0.0
        %2137 = vmatpush1.msra.mxu0 0.0
        %2138 = vmatprep.subr.mxu0 0.0
        %2139 = vmatpush1.msra.mxu0 0.0
        %2140 = vmatprep.subr.mxu0 0.0
        %2141 = vmatpush1.msra.mxu0 0.0
        %2142 = vmatprep.subr.mxu0 0.0
        %2143 = vmatpush1.msra.mxu0 0.0
        %2144 = vmatprep.subr.mxu0 0.0
        %2145 = vmatpush1.msra.mxu0 0.0
        %2146 = vmatprep.subr.mxu0 0.0
        %2147 = vmatpush1.msra.mxu0 0.0
        %2148 = vmatprep.subr.mxu0 0.0
        %2149 = vmatpush1.msra.mxu0 0.0
        %2150 = vmatprep.subr.mxu0 0.0
        %2151 = vmatpush1.msra.mxu0 0.0
        %2152 = vmatprep.subr.mxu0 0.0
        %2153 = vmatpush1.msra.mxu0 0.0
        %2154 = vmatprep.subr.mxu0 0.0
        %2155 = vmatpush1.msra.mxu0 0.0
        %2156 = vmatprep.subr.mxu0 0.0
        %2157 = vmatpush1.msra.mxu0 0.0
        %2158 = vmatprep.subr.mxu0 0.0
        %2159 = vmatpush1.msra.mxu0 0.0
        %2160 = vmatprep.subr.mxu0 0.0
        %2161 = vmatpush1.msra.mxu0 0.0
        %2162 = vmatprep.subr.mxu0 0.0
        %2163 = vmatpush1.msra.mxu0 0.0
        %2164 = vmatprep.subr.mxu0 0.0
        %2165 = vmatpush1.msra.mxu0 0.0
        %2166 = vmatprep.subr.mxu0 0.0
        %2167 = vmatpush1.msra.mxu0 0.0
        %2168 = vmatprep.subr.mxu0 0.0
        %2169 = vmatpush1.msra.mxu0 0.0
        %2170 = vmatprep.subr.mxu0 0.0
        %2171 = vmatpush1.msra.mxu0 0.0
        %2172 = vmatprep.subr.mxu0 0.0
        %2173 = vmatpush1.msra.mxu0 0.0
        %2174 = vmatprep.subr.mxu0 0.0
        %2175 = vmatpush1.msra.mxu0 0.0
        %2176 = vmatprep.subr.mxu0 0.0
        %2177 = vmatpush1.msra.mxu0 0.0
        %2178 = vmatprep.subr.mxu0 0.0
        %2179 = vmatpush1.msra.mxu0 0.0
        %2180 = vmatprep.subr.mxu0 0.0
        %2181 = vmatpush1.msra.mxu0 0.0
        %2182 = vmatprep.subr.mxu0 0.0
        %2183 = vmatpush1.msra.mxu0 0.0
        %2184 = vmatprep.subr.mxu0 0.0
        %2185 = vmatpush1.msra.mxu0 0.0
        %2186 = vmatprep.subr.mxu0 0.0
        %2187 = vmatpush1.msra.mxu0 0.0
        %2188 = vmatprep.subr.mxu0 0.0
        %2189 = vmatpush1.msra.mxu0 0.0
        %2190 = vmatprep.subr.mxu0 0.0
        %2191 = vmatpush1.msra.mxu0 0.0
        %2192 = vmatprep.subr.mxu0 0.0
        %2193 = vmatpush1.msra.mxu0 0.0
        %2194 = vmatprep.subr.mxu0 0.0
        %2195 = vmatpush1.msra.mxu0 0.0
        %2196 = vmatprep.subr.mxu0 0.0
        %2197 = vmatpush1.msra.mxu0 0.0
        %2198 = vmatprep.mubr.f32.mxu0 0.0
        %2199 = vmatmul.mubr.f32.gmra.mrb[0].mxu0 %v2120
        %v2200 = vpop.f32.mrb[0].mxu0
        %v2201 = vadd.f32 0.0, %v2200
        %v2202 = vpop.f32.mrb[0].mxu0
        %2203 = vmatprep.mubr.f32.mxu0 0.0
        %2204 = vmatmul.mubr.f32.gmra.mrb[0].mxu0 %v2123
        %v2205 = vpop.f32.mrb[0].mxu0
        %v2206 = vadd.f32 0.0, %v2205
        %v2207 = vpop.f32.mrb[0].mxu0
        %2208 = vmatprep.mubr.f32.mxu0 0.0
        %2209 = vmatmul.mubr.f32.gmra.mrb[0].mxu0 %v2126
        %v2210 = vpop.f32.mrb[0].mxu0
        %v2211 = vadd.f32 0.0, %v2210
        %v2212 = vpop.f32.mrb[0].mxu0
        %2213 = vmatprep.mubr.f32.mxu0 0.0
        %2214 = vmatmul.mubr.f32.gmra.mrb[0].mxu0 %v2129
        %v2215 = vpop.f32.mrb[0].mxu0
        %v2216 = vadd.f32 0.0, %v2215
        %v2217 = vpop.f32.mrb[0].mxu0
        %2218 = vdwg.mxu0
        %v2219 = vxor.u32 %v2201, 2147483648
        %v2220 = vxor.u32 %v2206, 2147483648
        %v2221 = vxor.u32 %v2211, 2147483648
        %v2222 = vxor.u32 %v2216, 2147483648
        %v2223 = vmul.f32 %v2219, 1.442695
        %v2224 = vpow.pop %v2223
        %v2225 = vmul.f32 %v2220, 1.442695
        %v2226 = vpow.pop %v2225
        %v2227 = vmul.f32 %v2221, 1.442695
        %v2228 = vpow.pop %v2227
        %v2229 = vmul.f32 %v2222, 1.442695
        %v2230 = vpow.pop %v2229
        %v2231 = vadd.f32 %v2224, 1.0
        %v2232 = vadd.f32 %v2226, 1.0
        %v2233 = vadd.f32 %v2228, 1.0
        %v2234 = vadd.f32 %v2230, 1.0
        %v2235 = vrcp.pop %v2231
        %v2236 = vmul.f32 1.0, %v2235
        %v2237 = vrcp.pop %v2232
        %v2238 = vmul.f32 1.0, %v2237
        %v2239 = vrcp.pop %v2233
        %v2240 = vmul.f32 1.0, %v2239
        %v2241 = vrcp.pop %v2234
        %v2242 = vmul.f32 1.0, %v2241
        %v2243 = vadd.f32 %v1585, %v2236
        %v2244 = vadd.f32 %v1587, %v2238
        %v2245 = vadd.f32 %v1589, %v2240
        %v2246 = vadd.f32 %v1591, %v2242
        %v2247 = vadd.f32 %v2243, 3.0
        %v2248 = vadd.f32 %v2244, 3.0
        %v2249 = vadd.f32 %v2245, 3.0
        %v2250 = vadd.f32 %v2246, 3.0
        %v2251 = vlaneseq
        %v2252 = vshrl.u32 %v2251, 7
        %v2253 = vsub.s32 0, %v2252
        %v2254 = vrot.slane %v1085, %v2253
        %v2255 = vlaneseq
        %v2256 = vshrl.u32 %v2255, 7
        %v2257 = vsub.s32 0, %v2256
        %v2258 = vrot.slane %v1087, %v2257
        %2260 = vset.pattern.permute.xlu0 0
        %2261 = vperm.xlu0 %2260, %v2247
        %v2262 = vpop.permute.xlu0 %2261
        %2265 = vset.pattern.permute.xlu0 0
        %2266 = vperm.xlu0 %2265, %v2248
        %v2267 = vpop.permute.xlu0 %2266
        %2270 = vset.pattern.permute.xlu0 0
        %2271 = vperm.xlu0 %2270, %v2249
        %v2272 = vpop.permute.xlu0 %2271
        %2275 = vset.pattern.permute.xlu0 0
        %2276 = vperm.xlu0 %2275, %v2250
        %v2277 = vpop.permute.xlu0 %2276
        %v2279 = vadd.f32 %v2254, %v2262
        %v2280 = vadd.f32 %v2258, %v2262
        %v2281 = vadd.f32 %v2254, %v2267
        %v2282 = vadd.f32 %v2258, %v2267
        %v2283 = vadd.f32 %v2254, %v2272
        %v2284 = vadd.f32 %v2258, %v2272
        %v2285 = vadd.f32 %v2254, %v2277
        %v2286 = vadd.f32 %v2258, %v2277
        %v2287 = vmul.f32 %v576, %v2279
        %v2288 = vmul.f32 %v577, %v2280
        %v2289 = vmul.f32 %v578, %v2281
        %v2290 = vmul.f32 %v579, %v2282
        %v2291 = vmul.f32 %v580, %v2283
        %v2292 = vmul.f32 %v581, %v2284
        %v2293 = vmul.f32 %v582, %v2285
        %v2294 = vmul.f32 %v583, %v2286
        %2295 = vst [vmem:[%s391] sm:$0xff] %v2287
        %2296 = vst [vmem:[%s391 + $0x8] sm:$0xff] %v2288
        %2297 = vst [vmem:[%s391 + $0x10] sm:$0xff] %v2289
        %2298 = vst [vmem:[%s391 + $0x18] sm:$0xff] %v2290
        %2299 = vst [vmem:[%s391 + $0x20] sm:$0xff] %v2291
        %2300 = vst [vmem:[%s391 + $0x28] sm:$0xff] %v2292
        %2301 = vst [vmem:[%s391 + $0x30] sm:$0xff] %v2293
        %2302 = vst [vmem:[%s391 + $0x38] sm:$0xff] %v2294
        %v2303 = vlaneseq
        %v2304 = vshrl.u32 %v2303, 7
        %v2305 = vsub.s32 1, %v2304
        %v2306 = vrot.slane %v1085, %v2305
        %v2307 = vlaneseq
        %v2308 = vshrl.u32 %v2307, 7
        %v2309 = vsub.s32 1, %v2308
        %v2310 = vrot.slane %v1087, %v2309
        %2311 = vset.pattern.permute.xlu0 1
        %2312 = vperm.xlu0 %2311, %v2247
        %v2313 = vpop.permute.xlu0 %2312
        %2315 = vset.pattern.permute.xlu0 1
        %2316 = vperm.xlu0 %2315, %v2248
        %v2317 = vpop.permute.xlu0 %2316
        %2319 = vset.pattern.permute.xlu0 1
        %2320 = vperm.xlu0 %2319, %v2249
        %v2321 = vpop.permute.xlu0 %2320
        %2323 = vset.pattern.permute.xlu0 1
        %2324 = vperm.xlu0 %2323, %v2250
        %v2325 = vpop.permute.xlu0 %2324
        %v2327 = vadd.f32 %v2306, %v2313
        %v2328 = vadd.f32 %v2310, %v2313
        %v2329 = vadd.f32 %v2306, %v2317
        %v2330 = vadd.f32 %v2310, %v2317
        %v2331 = vadd.f32 %v2306, %v2321
        %v2332 = vadd.f32 %v2310, %v2321
        %v2333 = vadd.f32 %v2306, %v2325
        %v2334 = vadd.f32 %v2310, %v2325
        %v2335 = vmul.f32 %v584, %v2327
        %v2336 = vmul.f32 %v585, %v2328
        %v2337 = vmul.f32 %v586, %v2329
        %v2338 = vmul.f32 %v587, %v2330
        %v2339 = vmul.f32 %v588, %v2331
        %v2340 = vmul.f32 %v589, %v2332
        %v2341 = vmul.f32 %v590, %v2333
        %v2342 = vmul.f32 %v591, %v2334
        %s2343 = scalar_lea.vmem %s391, 64 [#allocation7]
        %2344 = vst [vmem:[%s2343] sm:$0xff] %v2335
        %2345 = vst [vmem:[%s2343 + $0x8] sm:$0xff] %v2336
        %2346 = vst [vmem:[%s2343 + $0x10] sm:$0xff] %v2337
        %2347 = vst [vmem:[%s2343 + $0x18] sm:$0xff] %v2338
        %2348 = vst [vmem:[%s2343 + $0x20] sm:$0xff] %v2339
        %2349 = vst [vmem:[%s2343 + $0x28] sm:$0xff] %v2340
        %2350 = vst [vmem:[%s2343 + $0x30] sm:$0xff] %v2341
        %2351 = vst [vmem:[%s2343 + $0x38] sm:$0xff] %v2342
        %v2352 = vlaneseq
        %v2353 = vshrl.u32 %v2352, 7
        %v2354 = vsub.s32 2, %v2353
        %v2355 = vrot.slane %v1085, %v2354
        %v2356 = vlaneseq
        %v2357 = vshrl.u32 %v2356, 7
        %v2358 = vsub.s32 2, %v2357
        %v2359 = vrot.slane %v1087, %v2358
        %2360 = vset.pattern.permute.xlu0 2
        %2361 = vperm.xlu0 %2360, %v2247
        %v2362 = vpop.permute.xlu0 %2361
        %2364 = vset.pattern.permute.xlu0 2
        %2365 = vperm.xlu0 %2364, %v2248
        %v2366 = vpop.permute.xlu0 %2365
        %2368 = vset.pattern.permute.xlu0 2
        %2369 = vperm.xlu0 %2368, %v2249
        %v2370 = vpop.permute.xlu0 %2369
        %2372 = vset.pattern.permute.xlu0 2
        %2373 = vperm.xlu0 %2372, %v2250
        %v2374 = vpop.permute.xlu0 %2373
        %v2376 = vadd.f32 %v2355, %v2362
        %v2377 = vadd.f32 %v2359, %v2362
        %v2378 = vadd.f32 %v2355, %v2366
        %v2379 = vadd.f32 %v2359, %v2366
        %v2380 = vadd.f32 %v2355, %v2370
        %v2381 = vadd.f32 %v2359, %v2370
        %v2382 = vadd.f32 %v2355, %v2374
        %v2383 = vadd.f32 %v2359, %v2374
        %v2384 = vmul.f32 %v592, %v2376
        %v2385 = vmul.f32 %v593, %v2377
        %v2386 = vmul.f32 %v594, %v2378
        %v2387 = vmul.f32 %v595, %v2379
        %v2388 = vmul.f32 %v596, %v2380
        %v2389 = vmul.f32 %v597, %v2381
        %v2390 = vmul.f32 %v598, %v2382
        %v2391 = vmul.f32 %v599, %v2383
        %s2392 = scalar_lea.vmem %s391, 128 [#allocation7]
        %2393 = vst [vmem:[%s2392] sm:$0xff] %v2384
        %2394 = vst [vmem:[%s2392 + $0x8] sm:$0xff] %v2385
        %2395 = vst [vmem:[%s2392 + $0x10] sm:$0xff] %v2386
        %2396 = vst [vmem:[%s2392 + $0x18] sm:$0xff] %v2387
        %2397 = vst [vmem:[%s2392 + $0x20] sm:$0xff] %v2388
        %2398 = vst [vmem:[%s2392 + $0x28] sm:$0xff] %v2389
        %2399 = vst [vmem:[%s2392 + $0x30] sm:$0xff] %v2390
        %2400 = vst [vmem:[%s2392 + $0x38] sm:$0xff] %v2391
        %s2401 = sand.u32 %s251, 1
        %s2402 = scalar_lea.sflag [#allocation4], %s2401
        %s2403 = sand.u32 %s251, 1
        %s2404 = smul.addr %s2403, 192
        %s2405 = scalar_lea.vmem [#allocation7], %s2404
        // Predicated region
        $region69: #{tpu_custom_call.1} parent=59 // pred_check
          %p2406 = pneg %p261
        $region70: #{tpu_custom_call.1} parent=59 // pred_check_branch
          %2408 = sbr.rel (%p2406) target = $region72
        $region71: #{tpu_custom_call.1} parent=59 // pred_region
          %s2410 = ssub.s32 3072, 3072
          %2411 = vsyncadd %s2402, %s2410
          %s2412 = smul.addr %s28, 24
          %s2413 = smul.addr %s2412, 128
          %s2414 = scalar_lea.hbm %s10, %s2413
          %s2415 = sshll.u32 %s2405, 4
          %s2416 = int_to_ptr.vmem [resolvable:$true] %s2415
          %2421 = dma.vmem_to_hbm [thread:$0]  %s2416, 3072, %s2414, %s2402, 256, 256, 16
        $region72: #{tpu_custom_call.1} parent=59 // pred_fallthru
          _
      $region60: #{tpu_custom_call.1} parent=5 // pred_fallthru
        _
      %p2422 = scmp.le.s32.totalorder 2, %s23
      // Predicated region
      $region73: #{tpu_custom_call.1} parent=5 // pred_check
        %p2423 = pneg %p2422
      $region74: #{tpu_custom_call.1} parent=5 // pred_check_branch
        %2425 = sbr.rel (%p2423) target = $region76
      $region75: #{tpu_custom_call.1} parent=5 // pred_region
        %s2426 = ssub.s32 %s23, 2
        // Predicated region
        $region77: #{tpu_custom_call.1} parent=75 // pred_check
          %p2427 = pneg %p267
        $region78: #{tpu_custom_call.1} parent=75 // pred_check_branch
          %2429 = sbr.rel (%p2427) target = $region80
        $region79: #{tpu_custom_call.1} parent=75 // pred_region
          %s2430 = sand.u32 %s252, 1
          %s2431 = scalar_lea.sflag [#allocation4], %s2430
          %s2432 = sand.u32 %s252, 1
          %s2433 = smul.addr %s2432, 192
          %s2434 = scalar_lea.vmem [#allocation7], %s2433
          %2435 = dma.done %s2431, 3072
        $region80: #{tpu_custom_call.1} parent=75 // pred_fallthru
          _
      $region76: #{tpu_custom_call.1} parent=5 // pred_fallthru
        _
    $region6: #{tpu_custom_call.1} parent=1 // loop_footer
      %s27 = sadd.s32 1, %s23
    $region7: #{tpu_custom_call.1} parent=1 // loop_footer_branch
      %22 = sbr.rel target = $region3
    $region8: #{tpu_custom_call.1} parent=1 // loop_exit
      _
    %2436 = vsyncpa [#allocation3], 1
    %s2437 = scalar_lea.sflag [#allocation3], 1
    %2438 = vsyncpa %s2437, 1
    %2439 = vsyncpa [#allocation4], 1
    %s2440 = scalar_lea.sflag [#allocation4], 1
    %2441 = vsyncpa %s2440, 1
    %2442 = vsyncpa [#allocation5], 1
    %s2443 = scalar_lea.sflag [#allocation5], 1
    %2444 = vsyncpa %s2443, 1

</llo_original>
